<compile_context>
chip_gen: v7x
topology: tpu7x:2x2x1
jax: 0.10.0
libtpu: 0.0.40
codegen_flags: <defaults>
</compile_context>

<pallas_src>
import jax
import jax.numpy as jnp
from jax import lax
from jax.experimental import pallas as pl
from jax.experimental.pallas import tpu as pltpu

# ---- small synthetic "koelectra" config (real model: H=768, 12 layers, 12 heads) ----
VOCAB = 100
VOCAB_PAD = 128           # lane-dense one-hot gather
MAX_POS = 32
TYPE_VOCAB = 2
HIDDEN = 32
HEADS = 2
HEAD_DIM = HIDDEN // HEADS
LAYERS = 2
INTER = 64
NUM_LABELS = 34
LABELS_PAD = 128          # lane-dense classifier matmul / softmax / store
LN_EPS = 1e-12
NEG_BIG = -1e30


def _layernorm(x, g, b):
    mu = jnp.mean(x, axis=-1, keepdims=True)
    var = jnp.mean((x - mu) ** 2, axis=-1, keepdims=True)
    return (x - mu) * lax.rsqrt(var + LN_EPS) * g + b


# ------------------------- fused forward kernel -------------------------
# One grid step == one example.

def fused_forward_kernel(
        ids_ref, labels_ref,
        wemb_ref, pemb_ref, temb_ref, eg_ref, eb_ref,
        wqkv_ref, bqkv_ref, wo_ref, bo_ref, g1_ref, be1_ref,
        w1_ref, b1_ref, w2_ref, b2_ref, g2_ref, be2_ref,
        clsw_ref, clsb_ref,
        softmax_ref, pred_ref, nll_ref):
    S = pemb_ref.shape[0]
    H = HIDDEN
    Dh = HEAD_DIM
    scale = 1.0 / (Dh ** 0.5)

    # ---- embeddings: one-hot gather on the MXU (bf16 operands, f32 accumulate) ----
    # TODO(synk): for the real ~35k vocab, replace the one-hot matmul with a
    # scalar-prefetch row gather (PrefetchScalarGridSpec + pl.Element index_map).
    ids = ids_ref[0]                                              # (S, 1) int32
    onehot = (ids == lax.broadcasted_iota(jnp.int32, (S, VOCAB_PAD), 1)
              ).astype(jnp.bfloat16)
    tok = jnp.dot(onehot, wemb_ref[...], preferred_element_type=jnp.float32)
    emb = tok + pemb_ref[...] + temb_ref[...]                     # (S, H) f32
    x = _layernorm(emb, eg_ref[...], eb_ref[...])

    # ---- encoder layers ----
    # TODO(synk): for the real 12-layer / H=768 model, stream weights (layer grid axis
    # with Buffered BlockSpecs or manual double-buffered DMA) instead of keeping all
    # stacked layer weights VMEM-resident, and switch this static unroll to
    # lax.fori_loop over the stacked leading L axis.
    for l in range(LAYERS):
        xb = x.astype(jnp.bfloat16)
        # fused QKV projection: one MXU push with N = 3H
        qkv = jnp.dot(xb, wqkv_ref[l],
                      preferred_element_type=jnp.float32) + bqkv_ref[l]   # (S, 3H)

        # per-head attention on (S, S) tiles; bf16 MXU operands, f32 accumulation;
        # k consumed transposed by dot_general (no XLU transpose).
        head_ctx = []
        for h in range(HEADS):
            qh = qkv[:, h * Dh:(h + 1) * Dh].astype(jnp.bfloat16)
            kh = qkv[:, H + h * Dh:H + (h + 1) * Dh].astype(jnp.bfloat16)
            vh = qkv[:, 2 * H + h * Dh:2 * H + (h + 1) * Dh].astype(jnp.bfloat16)
            s = lax.dot_general(qh, kh, (((1,), (1,)), ((), ())),
                                preferred_element_type=jnp.float32) * scale
            s = s - jnp.max(s, axis=-1, keepdims=True)
            p = jnp.exp(s)
            p = p * pl.reciprocal(jnp.sum(p, axis=-1, keepdims=True), approx=True)
            head_ctx.append(jnp.dot(p.astype(jnp.bfloat16), vh,
                                    preferred_element_type=jnp.float32))
        ctx = jnp.concatenate(head_ctx, axis=-1)                  # (S, H)

        attn = jnp.dot(ctx.astype(jnp.bfloat16), wo_ref[l],
                       preferred_element_type=jnp.float32) + bo_ref[l]
        y = _layernorm(x + attn, g1_ref[l], be1_ref[l])

        h1 = jnp.dot(y.astype(jnp.bfloat16), w1_ref[l],
                     preferred_element_type=jnp.float32) + b1_ref[l]
        # TODO(synk): HF Electra uses exact erf-GELU; tanh approximation used for TPU lowering.
        h1 = jax.nn.gelu(h1, approximate=True)
        h2 = jnp.dot(h1.astype(jnp.bfloat16), w2_ref[l],
                     preferred_element_type=jnp.float32) + b2_ref[l]
        x = _layernorm(y + h2, g2_ref[l], be2_ref[l])

    # ---- pooled [CLS] token: free static sublane slice ----
    pooled = x[0:1, :]                                            # (1, H)
    # dropout(0.1) is identity at inference.

    # ---- classifier on a lane-dense 128-wide tile (pad bias = -1e30) ----
    logits = jnp.dot(pooled.astype(jnp.bfloat16), clsw_ref[...],
                     preferred_element_type=jnp.float32) + clsb_ref[...]   # (1, 128)
    m = jnp.max(logits, axis=1, keepdims=True)
    e = jnp.exp(logits - m)                                       # exactly 0 on pad cols
    denom = jnp.sum(e, axis=1, keepdims=True)
    softmax_ref[0] = e / denom        # exact divide: these probs are returned outputs

    iota = lax.broadcasted_iota(jnp.int32, (1, LABELS_PAD), 1)
    pred_ref[0] = jnp.min(jnp.where(logits == m, iota, jnp.int32(LABELS_PAD)),
                          axis=1, keepdims=True)

    # per-example negative log-likelihood (mean over batch taken in the wrapper)
    log_probs = (logits - m) - jnp.log(denom)
    onehot_lab = (iota == labels_ref[0]).astype(jnp.float32)
    nll_ref[0] = -jnp.sum(log_probs * onehot_lab, axis=1, keepdims=True)


# ------------------------- params & wrapper -------------------------

def init_params(key):
    keys = iter(jax.random.split(key, 64))

    def nrm(shape, scale=0.02):
        return (scale * jax.random.normal(next(keys), shape)).astype(jnp.float32)

    params = {
        'word_emb': nrm((VOCAB, HIDDEN)),
        'pos_emb': nrm((MAX_POS, HIDDEN)),
        'type_emb': nrm((TYPE_VOCAB, HIDDEN)),
        'emb_g': jnp.ones((1, HIDDEN), jnp.float32),
        'emb_b': jnp.zeros((1, HIDDEN), jnp.float32),
        'cls_w': nrm((HIDDEN, NUM_LABELS)),
        'cls_b': jnp.zeros((1, NUM_LABELS), jnp.float32),
        'layers': [],
    }
    for _ in range(LAYERS):
        params['layers'].append(dict(
            wq=nrm((HIDDEN, HIDDEN)), bq=jnp.zeros((1, HIDDEN), jnp.float32),
            wk=nrm((HIDDEN, HIDDEN)), bk=jnp.zeros((1, HIDDEN), jnp.float32),
            wv=nrm((HIDDEN, HIDDEN)), bv=jnp.zeros((1, HIDDEN), jnp.float32),
            wo=nrm((HIDDEN, HIDDEN)), bo=jnp.zeros((1, HIDDEN), jnp.float32),
            g1=jnp.ones((1, HIDDEN), jnp.float32), be1=jnp.zeros((1, HIDDEN), jnp.float32),
            w1=nrm((HIDDEN, INTER)), b1=jnp.zeros((1, INTER), jnp.float32),
            w2=nrm((INTER, HIDDEN)), b2=jnp.zeros((1, HIDDEN), jnp.float32),
            g2=jnp.ones((1, HIDDEN), jnp.float32), be2=jnp.zeros((1, HIDDEN), jnp.float32)))
    return params


def _stack(layers, key):
    return jnp.stack([lp[key] for lp in layers], axis=0)


def _full_spec(shape):
    """Whole array as one block; constant index map -> DMA'd once, stays VMEM-resident."""
    n = len(shape)
    return pl.BlockSpec(shape, lambda b: (0,) * n)


def koelectra_m_forward(params, input_ids, labels):
    """Returns (loss, pred, labels, correct, softmax) like the PyTorch module."""
    B, S = input_ids.shape
    ids3 = input_ids.reshape(B, S, 1).astype(jnp.int32)
    labels_i32 = labels.astype(jnp.int32)
    labels3 = labels_i32.reshape(B, 1, 1)

    # weight packing (tiny; fused/const-folded by XLA outside the kernel)
    wemb = jnp.pad(params['word_emb'],
                   ((0, VOCAB_PAD - VOCAB), (0, 0))).astype(jnp.bfloat16)
    pemb = params['pos_emb'][:S]
    temb = params['type_emb'][0:1]          # token_type_ids == 0 everywhere
    L = params['layers']
    wqkv = jnp.stack([jnp.concatenate([lp['wq'], lp['wk'], lp['wv']], axis=1)
                      for lp in L]).astype(jnp.bfloat16)
    bqkv = jnp.stack([jnp.concatenate([lp['bq'], lp['bk'], lp['bv']], axis=1)
                      for lp in L])
    wo = _stack(L, 'wo').astype(jnp.bfloat16)
    bo = _stack(L, 'bo')
    g1 = _stack(L, 'g1')
    be1 = _stack(L, 'be1')
    w1 = _stack(L, 'w1').astype(jnp.bfloat16)
    b1 = _stack(L, 'b1')
    w2 = _stack(L, 'w2').astype(jnp.bfloat16)
    b2 = _stack(L, 'b2')
    g2 = _stack(L, 'g2')
    be2 = _stack(L, 'be2')
    clsw = jnp.pad(params['cls_w'],
                   ((0, 0), (0, LABELS_PAD - NUM_LABELS))).astype(jnp.bfloat16)
    clsb = jnp.concatenate(
        [params['cls_b'],
         jnp.full((1, LABELS_PAD - NUM_LABELS), NEG_BIG, jnp.float32)], axis=1)

    weight_args = (wemb, pemb, temb, params['emb_g'], params['emb_b'],
                   wqkv, bqkv, wo, bo, g1, be1, w1, b1, w2, b2, g2, be2,
                   clsw, clsb)

    in_specs = ([pl.BlockSpec((1, S, 1), lambda b: (b, 0, 0)),        # ids, per example
                 pl.BlockSpec((1, 1, 1), lambda b: (b, 0, 0))]        # label, per example
                + [_full_spec(w.shape) for w in weight_args])
    out_specs = (pl.BlockSpec((1, 1, LABELS_PAD), lambda b: (b, 0, 0)),
                 pl.BlockSpec((1, 1, 1), lambda b: (b, 0, 0)),
                 pl.BlockSpec((1, 1, 1), lambda b: (b, 0, 0)))

    # Rough per-example costs (advisory): embed 66k + 2 layers * 139k + classifier 8k FLOPs.
    softmax_pad, pred3, nll3 = pl.pallas_call(
        fused_forward_kernel,
        out_shape=(jax.ShapeDtypeStruct((B, 1, LABELS_PAD), jnp.float32),
                   jax.ShapeDtypeStruct((B, 1, 1), jnp.int32),
                   jax.ShapeDtypeStruct((B, 1, 1), jnp.float32)),
        grid=(B,),
        in_specs=in_specs,
        out_specs=out_specs,
        compiler_params=pltpu.CompilerParams(
            dimension_semantics=("parallel",)),
        cost_estimate=pl.CostEstimate(flops=360_000 * B,
                                      transcendentals=1_600 * B,
                                      bytes_accessed=120_000),
    )(ids3, labels3, *weight_args)

    softmax = softmax_pad[:, 0, :NUM_LABELS]
    pred = pred3[:, 0, 0]
    loss = jnp.mean(nll3[:, 0, 0])          # CrossEntropyLoss(reduction='mean')
    correct = pred == labels_i32
    return loss, pred, labels, correct, softmax


if __name__ == "__main__":
    key = jax.random.PRNGKey(0)
    k_param, k_ids, k_lab = jax.random.split(key, 3)

    params = init_params(k_param)
    input_ids = jax.random.randint(k_ids, (2, 8), 0, VOCAB, dtype=jnp.int32)
    labels = jax.random.randint(k_lab, (2,), 0, NUM_LABELS, dtype=jnp.int32)

    loss, pred, labels_out, correct, softmax = jax.jit(koelectra_m_forward)(
        params, input_ids, labels)
    jax.block_until_ready((loss, pred, labels_out, correct, softmax))

    assert softmax.shape == (2, NUM_LABELS)
    assert pred.shape == (2,)
    assert correct.shape == (2,)
    assert loss.shape == ()
    assert bool(jnp.isfinite(loss))
    print("KERNEL_OK")
</pallas_src>

<mosaic_0001>
module attributes {stable_mosaic.version = 11 : i64} {
  func.func @fused_forward_kernel(%arg0: i32, %arg1: memref<1x8x1xi32, #tpu.memory_space<vmem>>, %arg2: memref<1x1x1xi32, #tpu.memory_space<vmem>>, %arg3: memref<128x32xbf16, #tpu.memory_space<vmem>>, %arg4: memref<8x32xf32, #tpu.memory_space<vmem>>, %arg5: memref<1x32xf32, #tpu.memory_space<vmem>>, %arg6: memref<1x32xf32, #tpu.memory_space<vmem>>, %arg7: memref<1x32xf32, #tpu.memory_space<vmem>>, %arg8: memref<2x32x96xbf16, #tpu.memory_space<vmem>>, %arg9: memref<2x1x96xf32, #tpu.memory_space<vmem>>, %arg10: memref<2x32x32xbf16, #tpu.memory_space<vmem>>, %arg11: memref<2x1x32xf32, #tpu.memory_space<vmem>>, %arg12: memref<2x1x32xf32, #tpu.memory_space<vmem>>, %arg13: memref<2x1x32xf32, #tpu.memory_space<vmem>>, %arg14: memref<2x32x64xbf16, #tpu.memory_space<vmem>>, %arg15: memref<2x1x64xf32, #tpu.memory_space<vmem>>, %arg16: memref<2x64x32xbf16, #tpu.memory_space<vmem>>, %arg17: memref<2x1x32xf32, #tpu.memory_space<vmem>>, %arg18: memref<2x1x32xf32, #tpu.memory_space<vmem>>, %arg19: memref<2x1x32xf32, #tpu.memory_space<vmem>>, %arg20: memref<32x128xbf16, #tpu.memory_space<vmem>>, %arg21: memref<1x128xf32, #tpu.memory_space<vmem>>, %arg22: memref<1x1x128xf32, #tpu.memory_space<vmem>>, %arg23: memref<1x1x1xi32, #tpu.memory_space<vmem>>, %arg24: memref<1x1x1xf32, #tpu.memory_space<vmem>>) attributes {dimension_semantics = [#tpu.dimension_semantics<parallel>], iteration_bounds = array<i64: 2>, scalar_prefetch = 0 : i64, scratch_operands = 0 : i64, tpu.core_type = #tpu.core_type<tc>, window_params = [{transform_indices = @transform_0, window_bounds = array<i64: 1, 8, 1>}, {transform_indices = @transform_1, window_bounds = array<i64: 1, 1, 1>}, {pipeline_mode = #tpu.pipeline_mode<synchronous>, transform_indices = @transform_2, window_bounds = array<i64: 128, 32>}, {pipeline_mode = #tpu.pipeline_mode<synchronous>, transform_indices = @transform_3, window_bounds = array<i64: 8, 32>}, {pipeline_mode = #tpu.pipeline_mode<synchronous>, transform_indices = @transform_4, window_bounds = array<i64: 1, 32>}, {pipeline_mode = #tpu.pipeline_mode<synchronous>, transform_indices = @transform_5, window_bounds = array<i64: 1, 32>}, {pipeline_mode = #tpu.pipeline_mode<synchronous>, transform_indices = @transform_6, window_bounds = array<i64: 1, 32>}, {pipeline_mode = #tpu.pipeline_mode<synchronous>, transform_indices = @transform_7, window_bounds = array<i64: 2, 32, 96>}, {pipeline_mode = #tpu.pipeline_mode<synchronous>, transform_indices = @transform_8, window_bounds = array<i64: 2, 1, 96>}, {pipeline_mode = #tpu.pipeline_mode<synchronous>, transform_indices = @transform_9, window_bounds = array<i64: 2, 32, 32>}, {pipeline_mode = #tpu.pipeline_mode<synchronous>, transform_indices = @transform_10, window_bounds = array<i64: 2, 1, 32>}, {pipeline_mode = #tpu.pipeline_mode<synchronous>, transform_indices = @transform_11, window_bounds = array<i64: 2, 1, 32>}, {pipeline_mode = #tpu.pipeline_mode<synchronous>, transform_indices = @transform_12, window_bounds = array<i64: 2, 1, 32>}, {pipeline_mode = #tpu.pipeline_mode<synchronous>, transform_indices = @transform_13, window_bounds = array<i64: 2, 32, 64>}, {pipeline_mode = #tpu.pipeline_mode<synchronous>, transform_indices = @transform_14, window_bounds = array<i64: 2, 1, 64>}, {pipeline_mode = #tpu.pipeline_mode<synchronous>, transform_indices = @transform_15, window_bounds = array<i64: 2, 64, 32>}, {pipeline_mode = #tpu.pipeline_mode<synchronous>, transform_indices = @transform_16, window_bounds = array<i64: 2, 1, 32>}, {pipeline_mode = #tpu.pipeline_mode<synchronous>, transform_indices = @transform_17, window_bounds = array<i64: 2, 1, 32>}, {pipeline_mode = #tpu.pipeline_mode<synchronous>, transform_indices = @transform_18, window_bounds = array<i64: 2, 1, 32>}, {pipeline_mode = #tpu.pipeline_mode<synchronous>, transform_indices = @transform_19, window_bounds = array<i64: 32, 128>}, {pipeline_mode = #tpu.pipeline_mode<synchronous>, transform_indices = @transform_20, window_bounds = array<i64: 1, 128>}, {transform_indices = @transform_21, window_bounds = array<i64: 1, 1, 128>}, {transform_indices = @transform_22, window_bounds = array<i64: 1, 1, 1>}, {transform_indices = @transform_23, window_bounds = array<i64: 1, 1, 1>}]} {
    %c0 = arith.constant 0 : index
    %c0_0 = arith.constant 0 : index
    %c0_1 = arith.constant 0 : index
    %0 = vector.load %arg1[%c0, %c0_0, %c0_1] : memref<1x8x1xi32, #tpu.memory_space<vmem>>, vector<1x8x1xi32>
    %1 = vector.shape_cast %0 : vector<1x8x1xi32> to vector<8x1xi32>
    %2 = tpu.iota {dimensions = array<i32: 1>} : vector<8x128xi32>
    %3 = vector.broadcast %1 : vector<8x1xi32> to vector<8x128xi32>
    %4 = arith.cmpi eq, %3, %2 : vector<8x128xi32>
    %5 = arith.extui %4 : vector<8x128xi1> to vector<8x128xi32>
    %6 = arith.sitofp %5 : vector<8x128xi32> to vector<8x128xf32>
    %7 = arith.truncf %6 : vector<8x128xf32> to vector<8x128xbf16>
    %c0_2 = arith.constant 0 : index
    %c0_3 = arith.constant 0 : index
    %8 = vector.load %arg3[%c0_2, %c0_3] : memref<128x32xbf16, #tpu.memory_space<vmem>>, vector<128x32xbf16>
    %cst = arith.constant dense<0.000000e+00> : vector<8x32xf32>
    %9 = tpu.matmul %7, %8, %cst {dimension_numbers = #tpu.dot_dimension_numbers<[1], [0], [0], [1], [0, 0, 1, 1], [], []>} : vector<8x128xbf16>, vector<128x32xbf16>, vector<8x32xf32> -> vector<8x32xf32>
    %c0_4 = arith.constant 0 : index
    %c0_5 = arith.constant 0 : index
    %10 = vector.load %arg4[%c0_4, %c0_5] : memref<8x32xf32, #tpu.memory_space<vmem>>, vector<8x32xf32>
    %11 = arith.addf %9, %10 : vector<8x32xf32>
    %c0_6 = arith.constant 0 : index
    %c0_7 = arith.constant 0 : index
    %12 = vector.load %arg5[%c0_6, %c0_7] : memref<1x32xf32, #tpu.memory_space<vmem>>, vector<1x32xf32>
    %13 = vector.broadcast %12 : vector<1x32xf32> to vector<8x32xf32>
    %14 = arith.addf %11, %13 : vector<8x32xf32>
    %c0_8 = arith.constant 0 : index
    %c0_9 = arith.constant 0 : index
    %15 = vector.load %arg6[%c0_8, %c0_9] : memref<1x32xf32, #tpu.memory_space<vmem>>, vector<1x32xf32>
    %c0_10 = arith.constant 0 : index
    %c0_11 = arith.constant 0 : index
    %16 = vector.load %arg7[%c0_10, %c0_11] : memref<1x32xf32, #tpu.memory_space<vmem>>, vector<1x32xf32>
    %cst_12 = arith.constant dense<0.000000e+00> : vector<8xf32>
    %17 = vector.multi_reduction <add>, %14, %cst_12 [1] : vector<8x32xf32> to vector<8xf32>
    %18 = vector.shape_cast %17 : vector<8xf32> to vector<8x1xf32>
    %cst_13 = arith.constant 3.200000e+01 : f32
    %19 = vector.broadcast %cst_13 : f32 to vector<8x1xf32>
    %20 = arith.divf %18, %19 : vector<8x1xf32>
    %21 = vector.broadcast %20 : vector<8x1xf32> to vector<8x32xf32>
    %22 = arith.subf %14, %21 : vector<8x32xf32>
    %23 = arith.mulf %22, %22 : vector<8x32xf32>
    %cst_14 = arith.constant dense<0.000000e+00> : vector<8xf32>
    %24 = vector.multi_reduction <add>, %23, %cst_14 [1] : vector<8x32xf32> to vector<8xf32>
    %25 = vector.shape_cast %24 : vector<8xf32> to vector<8x1xf32>
    %cst_15 = arith.constant 3.200000e+01 : f32
    %26 = vector.broadcast %cst_15 : f32 to vector<8x1xf32>
    %27 = arith.divf %25, %26 : vector<8x1xf32>
    %28 = vector.broadcast %20 : vector<8x1xf32> to vector<8x32xf32>
    %29 = arith.subf %14, %28 : vector<8x32xf32>
    %cst_16 = arith.constant 9.99999996E-13 : f32
    %30 = vector.broadcast %cst_16 : f32 to vector<8x1xf32>
    %31 = arith.addf %27, %30 : vector<8x1xf32>
    %32 = math.rsqrt %31 : vector<8x1xf32>
    %33 = vector.broadcast %32 : vector<8x1xf32> to vector<8x32xf32>
    %34 = arith.mulf %29, %33 : vector<8x32xf32>
    %35 = vector.broadcast %15 : vector<1x32xf32> to vector<8x32xf32>
    %36 = arith.mulf %34, %35 : vector<8x32xf32>
    %37 = vector.broadcast %16 : vector<1x32xf32> to vector<8x32xf32>
    %38 = arith.addf %36, %37 : vector<8x32xf32>
    %39 = arith.truncf %38 : vector<8x32xf32> to vector<8x32xbf16>
    %c0_17 = arith.constant 0 : index
    %c0_18 = arith.constant 0 : index
    %c0_19 = arith.constant 0 : index
    %40 = vector.load %arg8[%c0_17, %c0_18, %c0_19] : memref<2x32x96xbf16, #tpu.memory_space<vmem>>, vector<1x32x96xbf16>
    %41 = vector.shape_cast %40 : vector<1x32x96xbf16> to vector<32x96xbf16>
    %cst_20 = arith.constant dense<0.000000e+00> : vector<8x96xf32>
    %42 = tpu.matmul %39, %41, %cst_20 {dimension_numbers = #tpu.dot_dimension_numbers<[1], [0], [0], [1], [0, 0, 1, 1], [], []>} : vector<8x32xbf16>, vector<32x96xbf16>, vector<8x96xf32> -> vector<8x96xf32>
    %c0_21 = arith.constant 0 : index
    %c0_22 = arith.constant 0 : index
    %c0_23 = arith.constant 0 : index
    %43 = vector.load %arg9[%c0_21, %c0_22, %c0_23] : memref<2x1x96xf32, #tpu.memory_space<vmem>>, vector<1x1x96xf32>
    %44 = vector.shape_cast %43 : vector<1x1x96xf32> to vector<1x96xf32>
    %45 = vector.broadcast %44 : vector<1x96xf32> to vector<8x96xf32>
    %46 = arith.addf %42, %45 : vector<8x96xf32>
    %47 = vector.extract_strided_slice %46 {offsets = [0, 0], sizes = [8, 16], strides = [1, 1]} : vector<8x96xf32> to vector<8x16xf32>
    %48 = arith.truncf %47 : vector<8x16xf32> to vector<8x16xbf16>
    %49 = vector.extract_strided_slice %46 {offsets = [0, 32], sizes = [8, 16], strides = [1, 1]} : vector<8x96xf32> to vector<8x16xf32>
    %50 = arith.truncf %49 : vector<8x16xf32> to vector<8x16xbf16>
    %51 = vector.extract_strided_slice %46 {offsets = [0, 64], sizes = [8, 16], strides = [1, 1]} : vector<8x96xf32> to vector<8x16xf32>
    %52 = arith.truncf %51 : vector<8x16xf32> to vector<8x16xbf16>
    %cst_24 = arith.constant dense<0.000000e+00> : vector<8x8xf32>
    %53 = tpu.matmul %48, %50, %cst_24 {dimension_numbers = #tpu.dot_dimension_numbers<[1], [1], [0], [0], [0, 0, 1, 0], [], []>} : vector<8x16xbf16>, vector<8x16xbf16>, vector<8x8xf32> -> vector<8x8xf32>
    %cst_25 = arith.constant 2.500000e-01 : f32
    %54 = vector.broadcast %cst_25 : f32 to vector<8x8xf32>
    %55 = arith.mulf %53, %54 : vector<8x8xf32>
    %cst_26 = arith.constant dense<0xFF800000> : vector<8xf32>
    %56 = vector.multi_reduction <maximumf>, %55, %cst_26 [1] : vector<8x8xf32> to vector<8xf32>
    %57 = vector.shape_cast %56 : vector<8xf32> to vector<8x1xf32>
    %58 = vector.broadcast %57 : vector<8x1xf32> to vector<8x8xf32>
    %59 = arith.subf %55, %58 : vector<8x8xf32>
    %60 = math.exp %59 : vector<8x8xf32>
    %cst_27 = arith.constant dense<0.000000e+00> : vector<8xf32>
    %61 = vector.multi_reduction <add>, %60, %cst_27 [1] : vector<8x8xf32> to vector<8xf32>
    %62 = vector.shape_cast %61 : vector<8xf32> to vector<8x1xf32>
    %63 = tpu.reciprocal %62 {approx = true} : vector<8x1xf32> -> vector<8x1xf32>
    %64 = vector.broadcast %63 : vector<8x1xf32> to vector<8x8xf32>
    %65 = arith.mulf %60, %64 : vector<8x8xf32>
    %66 = arith.truncf %65 : vector<8x8xf32> to vector<8x8xbf16>
    %cst_28 = arith.constant dense<0.000000e+00> : vector<8x16xf32>
    %67 = tpu.matmul %66, %52, %cst_28 {dimension_numbers = #tpu.dot_dimension_numbers<[1], [0], [0], [1], [0, 0, 1, 1], [], []>} : vector<8x8xbf16>, vector<8x16xbf16>, vector<8x16xf32> -> vector<8x16xf32>
    %68 = vector.extract_strided_slice %46 {offsets = [0, 16], sizes = [8, 16], strides = [1, 1]} : vector<8x96xf32> to vector<8x16xf32>
    %69 = arith.truncf %68 : vector<8x16xf32> to vector<8x16xbf16>
    %70 = vector.extract_strided_slice %46 {offsets = [0, 48], sizes = [8, 16], strides = [1, 1]} : vector<8x96xf32> to vector<8x16xf32>
    %71 = arith.truncf %70 : vector<8x16xf32> to vector<8x16xbf16>
    %72 = vector.extract_strided_slice %46 {offsets = [0, 80], sizes = [8, 16], strides = [1, 1]} : vector<8x96xf32> to vector<8x16xf32>
    %73 = arith.truncf %72 : vector<8x16xf32> to vector<8x16xbf16>
    %cst_29 = arith.constant dense<0.000000e+00> : vector<8x8xf32>
    %74 = tpu.matmul %69, %71, %cst_29 {dimension_numbers = #tpu.dot_dimension_numbers<[1], [1], [0], [0], [0, 0, 1, 0], [], []>} : vector<8x16xbf16>, vector<8x16xbf16>, vector<8x8xf32> -> vector<8x8xf32>
    %cst_30 = arith.constant 2.500000e-01 : f32
    %75 = vector.broadcast %cst_30 : f32 to vector<8x8xf32>
    %76 = arith.mulf %74, %75 : vector<8x8xf32>
    %cst_31 = arith.constant dense<0xFF800000> : vector<8xf32>
    %77 = vector.multi_reduction <maximumf>, %76, %cst_31 [1] : vector<8x8xf32> to vector<8xf32>
    %78 = vector.shape_cast %77 : vector<8xf32> to vector<8x1xf32>
    %79 = vector.broadcast %78 : vector<8x1xf32> to vector<8x8xf32>
    %80 = arith.subf %76, %79 : vector<8x8xf32>
    %81 = math.exp %80 : vector<8x8xf32>
    %cst_32 = arith.constant dense<0.000000e+00> : vector<8xf32>
    %82 = vector.multi_reduction <add>, %81, %cst_32 [1] : vector<8x8xf32> to vector<8xf32>
    %83 = vector.shape_cast %82 : vector<8xf32> to vector<8x1xf32>
    %84 = tpu.reciprocal %83 {approx = true} : vector<8x1xf32> -> vector<8x1xf32>
    %85 = vector.broadcast %84 : vector<8x1xf32> to vector<8x8xf32>
    %86 = arith.mulf %81, %85 : vector<8x8xf32>
    %87 = arith.truncf %86 : vector<8x8xf32> to vector<8x8xbf16>
    %cst_33 = arith.constant dense<0.000000e+00> : vector<8x16xf32>
    %88 = tpu.matmul %87, %73, %cst_33 {dimension_numbers = #tpu.dot_dimension_numbers<[1], [0], [0], [1], [0, 0, 1, 1], [], []>} : vector<8x8xbf16>, vector<8x16xbf16>, vector<8x16xf32> -> vector<8x16xf32>
    %89 = tpu.concatenate %67, %88 in 1 : vector<8x16xf32>, vector<8x16xf32> -> vector<8x32xf32>
    %90 = arith.truncf %89 : vector<8x32xf32> to vector<8x32xbf16>
    %c0_34 = arith.constant 0 : index
    %c0_35 = arith.constant 0 : index
    %c0_36 = arith.constant 0 : index
    %91 = vector.load %arg10[%c0_34, %c0_35, %c0_36] : memref<2x32x32xbf16, #tpu.memory_space<vmem>>, vector<1x32x32xbf16>
    %92 = vector.shape_cast %91 : vector<1x32x32xbf16> to vector<32x32xbf16>
    %cst_37 = arith.constant dense<0.000000e+00> : vector<8x32xf32>
    %93 = tpu.matmul %90, %92, %cst_37 {dimension_numbers = #tpu.dot_dimension_numbers<[1], [0], [0], [1], [0, 0, 1, 1], [], []>} : vector<8x32xbf16>, vector<32x32xbf16>, vector<8x32xf32> -> vector<8x32xf32>
    %c0_38 = arith.constant 0 : index
    %c0_39 = arith.constant 0 : index
    %c0_40 = arith.constant 0 : index
    %94 = vector.load %arg11[%c0_38, %c0_39, %c0_40] : memref<2x1x32xf32, #tpu.memory_space<vmem>>, vector<1x1x32xf32>
    %95 = vector.shape_cast %94 : vector<1x1x32xf32> to vector<1x32xf32>
    %96 = vector.broadcast %95 : vector<1x32xf32> to vector<8x32xf32>
    %97 = arith.addf %93, %96 : vector<8x32xf32>
    %98 = arith.addf %38, %97 : vector<8x32xf32>
    %c0_41 = arith.constant 0 : index
    %c0_42 = arith.constant 0 : index
    %c0_43 = arith.constant 0 : index
    %99 = vector.load %arg12[%c0_41, %c0_42, %c0_43] : memref<2x1x32xf32, #tpu.memory_space<vmem>>, vector<1x1x32xf32>
    %100 = vector.shape_cast %99 : vector<1x1x32xf32> to vector<1x32xf32>
    %c0_44 = arith.constant 0 : index
    %c0_45 = arith.constant 0 : index
    %c0_46 = arith.constant 0 : index
    %101 = vector.load %arg13[%c0_44, %c0_45, %c0_46] : memref<2x1x32xf32, #tpu.memory_space<vmem>>, vector<1x1x32xf32>
    %102 = vector.shape_cast %101 : vector<1x1x32xf32> to vector<1x32xf32>
    %cst_47 = arith.constant dense<0.000000e+00> : vector<8xf32>
    %103 = vector.multi_reduction <add>, %98, %cst_47 [1] : vector<8x32xf32> to vector<8xf32>
    %104 = vector.shape_cast %103 : vector<8xf32> to vector<8x1xf32>
    %cst_48 = arith.constant 3.200000e+01 : f32
    %105 = vector.broadcast %cst_48 : f32 to vector<8x1xf32>
    %106 = arith.divf %104, %105 : vector<8x1xf32>
    %107 = vector.broadcast %106 : vector<8x1xf32> to vector<8x32xf32>
    %108 = arith.subf %98, %107 : vector<8x32xf32>
    %109 = arith.mulf %108, %108 : vector<8x32xf32>
    %cst_49 = arith.constant dense<0.000000e+00> : vector<8xf32>
    %110 = vector.multi_reduction <add>, %109, %cst_49 [1] : vector<8x32xf32> to vector<8xf32>
    %111 = vector.shape_cast %110 : vector<8xf32> to vector<8x1xf32>
    %cst_50 = arith.constant 3.200000e+01 : f32
    %112 = vector.broadcast %cst_50 : f32 to vector<8x1xf32>
    %113 = arith.divf %111, %112 : vector<8x1xf32>
    %114 = vector.broadcast %106 : vector<8x1xf32> to vector<8x32xf32>
    %115 = arith.subf %98, %114 : vector<8x32xf32>
    %cst_51 = arith.constant 9.99999996E-13 : f32
    %116 = vector.broadcast %cst_51 : f32 to vector<8x1xf32>
    %117 = arith.addf %113, %116 : vector<8x1xf32>
    %118 = math.rsqrt %117 : vector<8x1xf32>
    %119 = vector.broadcast %118 : vector<8x1xf32> to vector<8x32xf32>
    %120 = arith.mulf %115, %119 : vector<8x32xf32>
    %121 = vector.broadcast %100 : vector<1x32xf32> to vector<8x32xf32>
    %122 = arith.mulf %120, %121 : vector<8x32xf32>
    %123 = vector.broadcast %102 : vector<1x32xf32> to vector<8x32xf32>
    %124 = arith.addf %122, %123 : vector<8x32xf32>
    %125 = arith.truncf %124 : vector<8x32xf32> to vector<8x32xbf16>
    %c0_52 = arith.constant 0 : index
    %c0_53 = arith.constant 0 : index
    %c0_54 = arith.constant 0 : index
    %126 = vector.load %arg14[%c0_52, %c0_53, %c0_54] : memref<2x32x64xbf16, #tpu.memory_space<vmem>>, vector<1x32x64xbf16>
    %127 = vector.shape_cast %126 : vector<1x32x64xbf16> to vector<32x64xbf16>
    %cst_55 = arith.constant dense<0.000000e+00> : vector<8x64xf32>
    %128 = tpu.matmul %125, %127, %cst_55 {dimension_numbers = #tpu.dot_dimension_numbers<[1], [0], [0], [1], [0, 0, 1, 1], [], []>} : vector<8x32xbf16>, vector<32x64xbf16>, vector<8x64xf32> -> vector<8x64xf32>
    %c0_56 = arith.constant 0 : index
    %c0_57 = arith.constant 0 : index
    %c0_58 = arith.constant 0 : index
    %129 = vector.load %arg15[%c0_56, %c0_57, %c0_58] : memref<2x1x64xf32, #tpu.memory_space<vmem>>, vector<1x1x64xf32>
    %130 = vector.shape_cast %129 : vector<1x1x64xf32> to vector<1x64xf32>
    %131 = vector.broadcast %130 : vector<1x64xf32> to vector<8x64xf32>
    %132 = arith.addf %128, %131 : vector<8x64xf32>
    %133 = arith.mulf %132, %132 : vector<8x64xf32>
    %134 = arith.mulf %132, %133 : vector<8x64xf32>
    %cst_59 = arith.constant 4.471500e-02 : f32
    %135 = vector.broadcast %cst_59 : f32 to vector<8x64xf32>
    %136 = arith.mulf %135, %134 : vector<8x64xf32>
    %137 = arith.addf %132, %136 : vector<8x64xf32>
    %cst_60 = arith.constant 0.797884583 : f32
    %138 = vector.broadcast %cst_60 : f32 to vector<8x64xf32>
    %139 = arith.mulf %138, %137 : vector<8x64xf32>
    %140 = math.tanh %139 : vector<8x64xf32>
    %cst_61 = arith.constant 1.000000e+00 : f32
    %141 = vector.broadcast %cst_61 : f32 to vector<8x64xf32>
    %142 = arith.addf %141, %140 : vector<8x64xf32>
    %cst_62 = arith.constant 5.000000e-01 : f32
    %143 = vector.broadcast %cst_62 : f32 to vector<8x64xf32>
    %144 = arith.mulf %143, %142 : vector<8x64xf32>
    %145 = arith.mulf %132, %144 : vector<8x64xf32>
    %146 = arith.truncf %145 : vector<8x64xf32> to vector<8x64xbf16>
    %c0_63 = arith.constant 0 : index
    %c0_64 = arith.constant 0 : index
    %c0_65 = arith.constant 0 : index
    %147 = vector.load %arg16[%c0_63, %c0_64, %c0_65] : memref<2x64x32xbf16, #tpu.memory_space<vmem>>, vector<1x64x32xbf16>
    %148 = vector.shape_cast %147 : vector<1x64x32xbf16> to vector<64x32xbf16>
    %cst_66 = arith.constant dense<0.000000e+00> : vector<8x32xf32>
    %149 = tpu.matmul %146, %148, %cst_66 {dimension_numbers = #tpu.dot_dimension_numbers<[1], [0], [0], [1], [0, 0, 1, 1], [], []>} : vector<8x64xbf16>, vector<64x32xbf16>, vector<8x32xf32> -> vector<8x32xf32>
    %c0_67 = arith.constant 0 : index
    %c0_68 = arith.constant 0 : index
    %c0_69 = arith.constant 0 : index
    %150 = vector.load %arg17[%c0_67, %c0_68, %c0_69] : memref<2x1x32xf32, #tpu.memory_space<vmem>>, vector<1x1x32xf32>
    %151 = vector.shape_cast %150 : vector<1x1x32xf32> to vector<1x32xf32>
    %152 = vector.broadcast %151 : vector<1x32xf32> to vector<8x32xf32>
    %153 = arith.addf %149, %152 : vector<8x32xf32>
    %154 = arith.addf %124, %153 : vector<8x32xf32>
    %c0_70 = arith.constant 0 : index
    %c0_71 = arith.constant 0 : index
    %c0_72 = arith.constant 0 : index
    %155 = vector.load %arg18[%c0_70, %c0_71, %c0_72] : memref<2x1x32xf32, #tpu.memory_space<vmem>>, vector<1x1x32xf32>
    %156 = vector.shape_cast %155 : vector<1x1x32xf32> to vector<1x32xf32>
    %c0_73 = arith.constant 0 : index
    %c0_74 = arith.constant 0 : index
    %c0_75 = arith.constant 0 : index
    %157 = vector.load %arg19[%c0_73, %c0_74, %c0_75] : memref<2x1x32xf32, #tpu.memory_space<vmem>>, vector<1x1x32xf32>
    %158 = vector.shape_cast %157 : vector<1x1x32xf32> to vector<1x32xf32>
    %cst_76 = arith.constant dense<0.000000e+00> : vector<8xf32>
    %159 = vector.multi_reduction <add>, %154, %cst_76 [1] : vector<8x32xf32> to vector<8xf32>
    %160 = vector.shape_cast %159 : vector<8xf32> to vector<8x1xf32>
    %cst_77 = arith.constant 3.200000e+01 : f32
    %161 = vector.broadcast %cst_77 : f32 to vector<8x1xf32>
    %162 = arith.divf %160, %161 : vector<8x1xf32>
    %163 = vector.broadcast %162 : vector<8x1xf32> to vector<8x32xf32>
    %164 = arith.subf %154, %163 : vector<8x32xf32>
    %165 = arith.mulf %164, %164 : vector<8x32xf32>
    %cst_78 = arith.constant dense<0.000000e+00> : vector<8xf32>
    %166 = vector.multi_reduction <add>, %165, %cst_78 [1] : vector<8x32xf32> to vector<8xf32>
    %167 = vector.shape_cast %166 : vector<8xf32> to vector<8x1xf32>
    %cst_79 = arith.constant 3.200000e+01 : f32
    %168 = vector.broadcast %cst_79 : f32 to vector<8x1xf32>
    %169 = arith.divf %167, %168 : vector<8x1xf32>
    %170 = vector.broadcast %162 : vector<8x1xf32> to vector<8x32xf32>
    %171 = arith.subf %154, %170 : vector<8x32xf32>
    %cst_80 = arith.constant 9.99999996E-13 : f32
    %172 = vector.broadcast %cst_80 : f32 to vector<8x1xf32>
    %173 = arith.addf %169, %172 : vector<8x1xf32>
    %174 = math.rsqrt %173 : vector<8x1xf32>
    %175 = vector.broadcast %174 : vector<8x1xf32> to vector<8x32xf32>
    %176 = arith.mulf %171, %175 : vector<8x32xf32>
    %177 = vector.broadcast %156 : vector<1x32xf32> to vector<8x32xf32>
    %178 = arith.mulf %176, %177 : vector<8x32xf32>
    %179 = vector.broadcast %158 : vector<1x32xf32> to vector<8x32xf32>
    %180 = arith.addf %178, %179 : vector<8x32xf32>
    %181 = arith.truncf %180 : vector<8x32xf32> to vector<8x32xbf16>
    %c1 = arith.constant 1 : index
    %c0_81 = arith.constant 0 : index
    %c0_82 = arith.constant 0 : index
    %182 = vector.load %arg8[%c1, %c0_81, %c0_82] : memref<2x32x96xbf16, #tpu.memory_space<vmem>>, vector<1x32x96xbf16>
    %183 = vector.shape_cast %182 : vector<1x32x96xbf16> to vector<32x96xbf16>
    %cst_83 = arith.constant dense<0.000000e+00> : vector<8x96xf32>
    %184 = tpu.matmul %181, %183, %cst_83 {dimension_numbers = #tpu.dot_dimension_numbers<[1], [0], [0], [1], [0, 0, 1, 1], [], []>} : vector<8x32xbf16>, vector<32x96xbf16>, vector<8x96xf32> -> vector<8x96xf32>
    %c1_84 = arith.constant 1 : index
    %c0_85 = arith.constant 0 : index
    %c0_86 = arith.constant 0 : index
    %185 = vector.load %arg9[%c1_84, %c0_85, %c0_86] : memref<2x1x96xf32, #tpu.memory_space<vmem>>, vector<1x1x96xf32>
    %186 = vector.shape_cast %185 : vector<1x1x96xf32> to vector<1x96xf32>
    %187 = vector.broadcast %186 : vector<1x96xf32> to vector<8x96xf32>
    %188 = arith.addf %184, %187 : vector<8x96xf32>
    %189 = vector.extract_strided_slice %188 {offsets = [0, 0], sizes = [8, 16], strides = [1, 1]} : vector<8x96xf32> to vector<8x16xf32>
    %190 = arith.truncf %189 : vector<8x16xf32> to vector<8x16xbf16>
    %191 = vector.extract_strided_slice %188 {offsets = [0, 32], sizes = [8, 16], strides = [1, 1]} : vector<8x96xf32> to vector<8x16xf32>
    %192 = arith.truncf %191 : vector<8x16xf32> to vector<8x16xbf16>
    %193 = vector.extract_strided_slice %188 {offsets = [0, 64], sizes = [8, 16], strides = [1, 1]} : vector<8x96xf32> to vector<8x16xf32>
    %194 = arith.truncf %193 : vector<8x16xf32> to vector<8x16xbf16>
    %cst_87 = arith.constant dense<0.000000e+00> : vector<8x8xf32>
    %195 = tpu.matmul %190, %192, %cst_87 {dimension_numbers = #tpu.dot_dimension_numbers<[1], [1], [0], [0], [0, 0, 1, 0], [], []>} : vector<8x16xbf16>, vector<8x16xbf16>, vector<8x8xf32> -> vector<8x8xf32>
    %cst_88 = arith.constant 2.500000e-01 : f32
    %196 = vector.broadcast %cst_88 : f32 to vector<8x8xf32>
    %197 = arith.mulf %195, %196 : vector<8x8xf32>
    %cst_89 = arith.constant dense<0xFF800000> : vector<8xf32>
    %198 = vector.multi_reduction <maximumf>, %197, %cst_89 [1] : vector<8x8xf32> to vector<8xf32>
    %199 = vector.shape_cast %198 : vector<8xf32> to vector<8x1xf32>
    %200 = vector.broadcast %199 : vector<8x1xf32> to vector<8x8xf32>
    %201 = arith.subf %197, %200 : vector<8x8xf32>
    %202 = math.exp %201 : vector<8x8xf32>
    %cst_90 = arith.constant dense<0.000000e+00> : vector<8xf32>
    %203 = vector.multi_reduction <add>, %202, %cst_90 [1] : vector<8x8xf32> to vector<8xf32>
    %204 = vector.shape_cast %203 : vector<8xf32> to vector<8x1xf32>
    %205 = tpu.reciprocal %204 {approx = true} : vector<8x1xf32> -> vector<8x1xf32>
    %206 = vector.broadcast %205 : vector<8x1xf32> to vector<8x8xf32>
    %207 = arith.mulf %202, %206 : vector<8x8xf32>
    %208 = arith.truncf %207 : vector<8x8xf32> to vector<8x8xbf16>
    %cst_91 = arith.constant dense<0.000000e+00> : vector<8x16xf32>
    %209 = tpu.matmul %208, %194, %cst_91 {dimension_numbers = #tpu.dot_dimension_numbers<[1], [0], [0], [1], [0, 0, 1, 1], [], []>} : vector<8x8xbf16>, vector<8x16xbf16>, vector<8x16xf32> -> vector<8x16xf32>
    %210 = vector.extract_strided_slice %188 {offsets = [0, 16], sizes = [8, 16], strides = [1, 1]} : vector<8x96xf32> to vector<8x16xf32>
    %211 = arith.truncf %210 : vector<8x16xf32> to vector<8x16xbf16>
    %212 = vector.extract_strided_slice %188 {offsets = [0, 48], sizes = [8, 16], strides = [1, 1]} : vector<8x96xf32> to vector<8x16xf32>
    %213 = arith.truncf %212 : vector<8x16xf32> to vector<8x16xbf16>
    %214 = vector.extract_strided_slice %188 {offsets = [0, 80], sizes = [8, 16], strides = [1, 1]} : vector<8x96xf32> to vector<8x16xf32>
    %215 = arith.truncf %214 : vector<8x16xf32> to vector<8x16xbf16>
    %cst_92 = arith.constant dense<0.000000e+00> : vector<8x8xf32>
    %216 = tpu.matmul %211, %213, %cst_92 {dimension_numbers = #tpu.dot_dimension_numbers<[1], [1], [0], [0], [0, 0, 1, 0], [], []>} : vector<8x16xbf16>, vector<8x16xbf16>, vector<8x8xf32> -> vector<8x8xf32>
    %cst_93 = arith.constant 2.500000e-01 : f32
    %217 = vector.broadcast %cst_93 : f32 to vector<8x8xf32>
    %218 = arith.mulf %216, %217 : vector<8x8xf32>
    %cst_94 = arith.constant dense<0xFF800000> : vector<8xf32>
    %219 = vector.multi_reduction <maximumf>, %218, %cst_94 [1] : vector<8x8xf32> to vector<8xf32>
    %220 = vector.shape_cast %219 : vector<8xf32> to vector<8x1xf32>
    %221 = vector.broadcast %220 : vector<8x1xf32> to vector<8x8xf32>
    %222 = arith.subf %218, %221 : vector<8x8xf32>
    %223 = math.exp %222 : vector<8x8xf32>
    %cst_95 = arith.constant dense<0.000000e+00> : vector<8xf32>
    %224 = vector.multi_reduction <add>, %223, %cst_95 [1] : vector<8x8xf32> to vector<8xf32>
    %225 = vector.shape_cast %224 : vector<8xf32> to vector<8x1xf32>
    %226 = tpu.reciprocal %225 {approx = true} : vector<8x1xf32> -> vector<8x1xf32>
    %227 = vector.broadcast %226 : vector<8x1xf32> to vector<8x8xf32>
    %228 = arith.mulf %223, %227 : vector<8x8xf32>
    %229 = arith.truncf %228 : vector<8x8xf32> to vector<8x8xbf16>
    %cst_96 = arith.constant dense<0.000000e+00> : vector<8x16xf32>
    %230 = tpu.matmul %229, %215, %cst_96 {dimension_numbers = #tpu.dot_dimension_numbers<[1], [0], [0], [1], [0, 0, 1, 1], [], []>} : vector<8x8xbf16>, vector<8x16xbf16>, vector<8x16xf32> -> vector<8x16xf32>
    %231 = tpu.concatenate %209, %230 in 1 : vector<8x16xf32>, vector<8x16xf32> -> vector<8x32xf32>
    %232 = arith.truncf %231 : vector<8x32xf32> to vector<8x32xbf16>
    %c1_97 = arith.constant 1 : index
    %c0_98 = arith.constant 0 : index
    %c0_99 = arith.constant 0 : index
    %233 = vector.load %arg10[%c1_97, %c0_98, %c0_99] : memref<2x32x32xbf16, #tpu.memory_space<vmem>>, vector<1x32x32xbf16>
    %234 = vector.shape_cast %233 : vector<1x32x32xbf16> to vector<32x32xbf16>
    %cst_100 = arith.constant dense<0.000000e+00> : vector<8x32xf32>
    %235 = tpu.matmul %232, %234, %cst_100 {dimension_numbers = #tpu.dot_dimension_numbers<[1], [0], [0], [1], [0, 0, 1, 1], [], []>} : vector<8x32xbf16>, vector<32x32xbf16>, vector<8x32xf32> -> vector<8x32xf32>
    %c1_101 = arith.constant 1 : index
    %c0_102 = arith.constant 0 : index
    %c0_103 = arith.constant 0 : index
    %236 = vector.load %arg11[%c1_101, %c0_102, %c0_103] : memref<2x1x32xf32, #tpu.memory_space<vmem>>, vector<1x1x32xf32>
    %237 = vector.shape_cast %236 : vector<1x1x32xf32> to vector<1x32xf32>
    %238 = vector.broadcast %237 : vector<1x32xf32> to vector<8x32xf32>
    %239 = arith.addf %235, %238 : vector<8x32xf32>
    %240 = arith.addf %180, %239 : vector<8x32xf32>
    %c1_104 = arith.constant 1 : index
    %c0_105 = arith.constant 0 : index
    %c0_106 = arith.constant 0 : index
    %241 = vector.load %arg12[%c1_104, %c0_105, %c0_106] : memref<2x1x32xf32, #tpu.memory_space<vmem>>, vector<1x1x32xf32>
    %242 = vector.shape_cast %241 : vector<1x1x32xf32> to vector<1x32xf32>
    %c1_107 = arith.constant 1 : index
    %c0_108 = arith.constant 0 : index
    %c0_109 = arith.constant 0 : index
    %243 = vector.load %arg13[%c1_107, %c0_108, %c0_109] : memref<2x1x32xf32, #tpu.memory_space<vmem>>, vector<1x1x32xf32>
    %244 = vector.shape_cast %243 : vector<1x1x32xf32> to vector<1x32xf32>
    %cst_110 = arith.constant dense<0.000000e+00> : vector<8xf32>
    %245 = vector.multi_reduction <add>, %240, %cst_110 [1] : vector<8x32xf32> to vector<8xf32>
    %246 = vector.shape_cast %245 : vector<8xf32> to vector<8x1xf32>
    %cst_111 = arith.constant 3.200000e+01 : f32
    %247 = vector.broadcast %cst_111 : f32 to vector<8x1xf32>
    %248 = arith.divf %246, %247 : vector<8x1xf32>
    %249 = vector.broadcast %248 : vector<8x1xf32> to vector<8x32xf32>
    %250 = arith.subf %240, %249 : vector<8x32xf32>
    %251 = arith.mulf %250, %250 : vector<8x32xf32>
    %cst_112 = arith.constant dense<0.000000e+00> : vector<8xf32>
    %252 = vector.multi_reduction <add>, %251, %cst_112 [1] : vector<8x32xf32> to vector<8xf32>
    %253 = vector.shape_cast %252 : vector<8xf32> to vector<8x1xf32>
    %cst_113 = arith.constant 3.200000e+01 : f32
    %254 = vector.broadcast %cst_113 : f32 to vector<8x1xf32>
    %255 = arith.divf %253, %254 : vector<8x1xf32>
    %256 = vector.broadcast %248 : vector<8x1xf32> to vector<8x32xf32>
    %257 = arith.subf %240, %256 : vector<8x32xf32>
    %cst_114 = arith.constant 9.99999996E-13 : f32
    %258 = vector.broadcast %cst_114 : f32 to vector<8x1xf32>
    %259 = arith.addf %255, %258 : vector<8x1xf32>
    %260 = math.rsqrt %259 : vector<8x1xf32>
    %261 = vector.broadcast %260 : vector<8x1xf32> to vector<8x32xf32>
    %262 = arith.mulf %257, %261 : vector<8x32xf32>
    %263 = vector.broadcast %242 : vector<1x32xf32> to vector<8x32xf32>
    %264 = arith.mulf %262, %263 : vector<8x32xf32>
    %265 = vector.broadcast %244 : vector<1x32xf32> to vector<8x32xf32>
    %266 = arith.addf %264, %265 : vector<8x32xf32>
    %267 = arith.truncf %266 : vector<8x32xf32> to vector<8x32xbf16>
    %c1_115 = arith.constant 1 : index
    %c0_116 = arith.constant 0 : index
    %c0_117 = arith.constant 0 : index
    %268 = vector.load %arg14[%c1_115, %c0_116, %c0_117] : memref<2x32x64xbf16, #tpu.memory_space<vmem>>, vector<1x32x64xbf16>
    %269 = vector.shape_cast %268 : vector<1x32x64xbf16> to vector<32x64xbf16>
    %cst_118 = arith.constant dense<0.000000e+00> : vector<8x64xf32>
    %270 = tpu.matmul %267, %269, %cst_118 {dimension_numbers = #tpu.dot_dimension_numbers<[1], [0], [0], [1], [0, 0, 1, 1], [], []>} : vector<8x32xbf16>, vector<32x64xbf16>, vector<8x64xf32> -> vector<8x64xf32>
    %c1_119 = arith.constant 1 : index
    %c0_120 = arith.constant 0 : index
    %c0_121 = arith.constant 0 : index
    %271 = vector.load %arg15[%c1_119, %c0_120, %c0_121] : memref<2x1x64xf32, #tpu.memory_space<vmem>>, vector<1x1x64xf32>
    %272 = vector.shape_cast %271 : vector<1x1x64xf32> to vector<1x64xf32>
    %273 = vector.broadcast %272 : vector<1x64xf32> to vector<8x64xf32>
    %274 = arith.addf %270, %273 : vector<8x64xf32>
    %275 = arith.mulf %274, %274 : vector<8x64xf32>
    %276 = arith.mulf %274, %275 : vector<8x64xf32>
    %cst_122 = arith.constant 4.471500e-02 : f32
    %277 = vector.broadcast %cst_122 : f32 to vector<8x64xf32>
    %278 = arith.mulf %277, %276 : vector<8x64xf32>
    %279 = arith.addf %274, %278 : vector<8x64xf32>
    %cst_123 = arith.constant 0.797884583 : f32
    %280 = vector.broadcast %cst_123 : f32 to vector<8x64xf32>
    %281 = arith.mulf %280, %279 : vector<8x64xf32>
    %282 = math.tanh %281 : vector<8x64xf32>
    %cst_124 = arith.constant 1.000000e+00 : f32
    %283 = vector.broadcast %cst_124 : f32 to vector<8x64xf32>
    %284 = arith.addf %283, %282 : vector<8x64xf32>
    %cst_125 = arith.constant 5.000000e-01 : f32
    %285 = vector.broadcast %cst_125 : f32 to vector<8x64xf32>
    %286 = arith.mulf %285, %284 : vector<8x64xf32>
    %287 = arith.mulf %274, %286 : vector<8x64xf32>
    %288 = arith.truncf %287 : vector<8x64xf32> to vector<8x64xbf16>
    %c1_126 = arith.constant 1 : index
    %c0_127 = arith.constant 0 : index
    %c0_128 = arith.constant 0 : index
    %289 = vector.load %arg16[%c1_126, %c0_127, %c0_128] : memref<2x64x32xbf16, #tpu.memory_space<vmem>>, vector<1x64x32xbf16>
    %290 = vector.shape_cast %289 : vector<1x64x32xbf16> to vector<64x32xbf16>
    %cst_129 = arith.constant dense<0.000000e+00> : vector<8x32xf32>
    %291 = tpu.matmul %288, %290, %cst_129 {dimension_numbers = #tpu.dot_dimension_numbers<[1], [0], [0], [1], [0, 0, 1, 1], [], []>} : vector<8x64xbf16>, vector<64x32xbf16>, vector<8x32xf32> -> vector<8x32xf32>
    %c1_130 = arith.constant 1 : index
    %c0_131 = arith.constant 0 : index
    %c0_132 = arith.constant 0 : index
    %292 = vector.load %arg17[%c1_130, %c0_131, %c0_132] : memref<2x1x32xf32, #tpu.memory_space<vmem>>, vector<1x1x32xf32>
    %293 = vector.shape_cast %292 : vector<1x1x32xf32> to vector<1x32xf32>
    %294 = vector.broadcast %293 : vector<1x32xf32> to vector<8x32xf32>
    %295 = arith.addf %291, %294 : vector<8x32xf32>
    %296 = arith.addf %266, %295 : vector<8x32xf32>
    %c1_133 = arith.constant 1 : index
    %c0_134 = arith.constant 0 : index
    %c0_135 = arith.constant 0 : index
    %297 = vector.load %arg18[%c1_133, %c0_134, %c0_135] : memref<2x1x32xf32, #tpu.memory_space<vmem>>, vector<1x1x32xf32>
    %298 = vector.shape_cast %297 : vector<1x1x32xf32> to vector<1x32xf32>
    %c1_136 = arith.constant 1 : index
    %c0_137 = arith.constant 0 : index
    %c0_138 = arith.constant 0 : index
    %299 = vector.load %arg19[%c1_136, %c0_137, %c0_138] : memref<2x1x32xf32, #tpu.memory_space<vmem>>, vector<1x1x32xf32>
    %300 = vector.shape_cast %299 : vector<1x1x32xf32> to vector<1x32xf32>
    %cst_139 = arith.constant dense<0.000000e+00> : vector<8xf32>
    %301 = vector.multi_reduction <add>, %296, %cst_139 [1] : vector<8x32xf32> to vector<8xf32>
    %302 = vector.shape_cast %301 : vector<8xf32> to vector<8x1xf32>
    %cst_140 = arith.constant 3.200000e+01 : f32
    %303 = vector.broadcast %cst_140 : f32 to vector<8x1xf32>
    %304 = arith.divf %302, %303 : vector<8x1xf32>
    %305 = vector.broadcast %304 : vector<8x1xf32> to vector<8x32xf32>
    %306 = arith.subf %296, %305 : vector<8x32xf32>
    %307 = arith.mulf %306, %306 : vector<8x32xf32>
    %cst_141 = arith.constant dense<0.000000e+00> : vector<8xf32>
    %308 = vector.multi_reduction <add>, %307, %cst_141 [1] : vector<8x32xf32> to vector<8xf32>
    %309 = vector.shape_cast %308 : vector<8xf32> to vector<8x1xf32>
    %cst_142 = arith.constant 3.200000e+01 : f32
    %310 = vector.broadcast %cst_142 : f32 to vector<8x1xf32>
    %311 = arith.divf %309, %310 : vector<8x1xf32>
    %312 = vector.broadcast %304 : vector<8x1xf32> to vector<8x32xf32>
    %313 = arith.subf %296, %312 : vector<8x32xf32>
    %cst_143 = arith.constant 9.99999996E-13 : f32
    %314 = vector.broadcast %cst_143 : f32 to vector<8x1xf32>
    %315 = arith.addf %311, %314 : vector<8x1xf32>
    %316 = math.rsqrt %315 : vector<8x1xf32>
    %317 = vector.broadcast %316 : vector<8x1xf32> to vector<8x32xf32>
    %318 = arith.mulf %313, %317 : vector<8x32xf32>
    %319 = vector.broadcast %298 : vector<1x32xf32> to vector<8x32xf32>
    %320 = arith.mulf %318, %319 : vector<8x32xf32>
    %321 = vector.broadcast %300 : vector<1x32xf32> to vector<8x32xf32>
    %322 = arith.addf %320, %321 : vector<8x32xf32>
    %323 = vector.extract_strided_slice %322 {offsets = [0, 0], sizes = [1, 32], strides = [1, 1]} : vector<8x32xf32> to vector<1x32xf32>
    %324 = arith.truncf %323 : vector<1x32xf32> to vector<1x32xbf16>
    %c0_144 = arith.constant 0 : index
    %c0_145 = arith.constant 0 : index
    %325 = vector.load %arg20[%c0_144, %c0_145] : memref<32x128xbf16, #tpu.memory_space<vmem>>, vector<32x128xbf16>
    %cst_146 = arith.constant dense<0.000000e+00> : vector<1x128xf32>
    %326 = tpu.matmul %324, %325, %cst_146 {dimension_numbers = #tpu.dot_dimension_numbers<[1], [0], [0], [1], [0, 0, 1, 1], [], []>} : vector<1x32xbf16>, vector<32x128xbf16>, vector<1x128xf32> -> vector<1x128xf32>
    %c0_147 = arith.constant 0 : index
    %c0_148 = arith.constant 0 : index
    %327 = vector.load %arg21[%c0_147, %c0_148] : memref<1x128xf32, #tpu.memory_space<vmem>>, vector<1x128xf32>
    %328 = arith.addf %326, %327 : vector<1x128xf32>
    %cst_149 = arith.constant dense<0xFF800000> : vector<1xf32>
    %329 = vector.multi_reduction <maximumf>, %328, %cst_149 [1] : vector<1x128xf32> to vector<1xf32>
    %330 = vector.shape_cast %329 : vector<1xf32> to vector<1x1xf32>
    %331 = vector.broadcast %330 : vector<1x1xf32> to vector<1x128xf32>
    %332 = arith.subf %328, %331 : vector<1x128xf32>
    %333 = math.exp %332 : vector<1x128xf32>
    %cst_150 = arith.constant dense<0.000000e+00> : vector<1xf32>
    %334 = vector.multi_reduction <add>, %333, %cst_150 [1] : vector<1x128xf32> to vector<1xf32>
    %335 = vector.shape_cast %334 : vector<1xf32> to vector<1x1xf32>
    %336 = vector.broadcast %335 : vector<1x1xf32> to vector<1x128xf32>
    %337 = arith.divf %333, %336 : vector<1x128xf32>
    %c0_151 = arith.constant 0 : index
    %c0_152 = arith.constant 0 : index
    %c0_153 = arith.constant 0 : index
    %338 = vector.load %arg22[%c0_151, %c0_152, %c0_153] : memref<1x1x128xf32, #tpu.memory_space<vmem>>, vector<1x1x128xf32>
    %339 = vector.shape_cast %338 : vector<1x1x128xf32> to vector<1x128xf32>
    %340 = vector.shape_cast %337 : vector<1x128xf32> to vector<1x1x128xf32>
    tpu.vector_store %arg22[%c0_151, %c0_152, %c0_153], %340 {strides = array<i32>} : memref<1x1x128xf32, #tpu.memory_space<vmem>>, vector<1x1x128xf32>,
    %341 = tpu.iota {dimensions = array<i32: 1>} : vector<1x128xi32>
    %342 = vector.broadcast %330 : vector<1x1xf32> to vector<1x128xf32>
    %343 = arith.cmpf oeq, %328, %342 : vector<1x128xf32>
    %c128_i32 = arith.constant 128 : i32
    %344 = vector.broadcast %c128_i32 : i32 to vector<1x128xi32>
    %345 = arith.select %343, %341, %344 : vector<1x128xi1>, vector<1x128xi32>
    %cst_154 = arith.constant dense<2147483647> : vector<1xi32>
    %346 = vector.multi_reduction <minsi>, %345, %cst_154 [1] : vector<1x128xi32> to vector<1xi32>
    %347 = vector.shape_cast %346 : vector<1xi32> to vector<1x1xi32>
    %c0_155 = arith.constant 0 : index
    %c0_156 = arith.constant 0 : index
    %c0_157 = arith.constant 0 : index
    %348 = vector.load %arg23[%c0_155, %c0_156, %c0_157] : memref<1x1x1xi32, #tpu.memory_space<vmem>>, vector<1x1x1xi32>
    %349 = vector.shape_cast %348 : vector<1x1x1xi32> to vector<1x1xi32>
    %350 = vector.shape_cast %347 : vector<1x1xi32> to vector<1x1x1xi32>
    tpu.vector_store %arg23[%c0_155, %c0_156, %c0_157], %350 {strides = array<i32>} : memref<1x1x1xi32, #tpu.memory_space<vmem>>, vector<1x1x1xi32>,
    %351 = vector.broadcast %330 : vector<1x1xf32> to vector<1x128xf32>
    %352 = arith.subf %328, %351 : vector<1x128xf32>
    %353 = math.log %335 : vector<1x1xf32>
    %354 = vector.broadcast %353 : vector<1x1xf32> to vector<1x128xf32>
    %355 = arith.subf %352, %354 : vector<1x128xf32>
    %c0_158 = arith.constant 0 : index
    %c0_159 = arith.constant 0 : index
    %c0_160 = arith.constant 0 : index
    %356 = vector.load %arg2[%c0_158, %c0_159, %c0_160] : memref<1x1x1xi32, #tpu.memory_space<vmem>>, vector<1x1x1xi32>
    %357 = vector.shape_cast %356 : vector<1x1x1xi32> to vector<1x1xi32>
    %358 = vector.broadcast %357 : vector<1x1xi32> to vector<1x128xi32>
    %359 = arith.cmpi eq, %341, %358 : vector<1x128xi32>
    %360 = arith.extui %359 : vector<1x128xi1> to vector<1x128xi32>
    %361 = arith.sitofp %360 : vector<1x128xi32> to vector<1x128xf32>
    %362 = arith.mulf %355, %361 : vector<1x128xf32>
    %cst_161 = arith.constant dense<0.000000e+00> : vector<1xf32>
    %363 = vector.multi_reduction <add>, %362, %cst_161 [1] : vector<1x128xf32> to vector<1xf32>
    %364 = vector.shape_cast %363 : vector<1xf32> to vector<1x1xf32>
    %cst_162 = arith.constant 0.000000e+00 : f32
    %365 = vector.broadcast %cst_162 : f32 to vector<1x1xf32>
    %366 = arith.subf %365, %364 : vector<1x1xf32>
    %c0_163 = arith.constant 0 : index
    %c0_164 = arith.constant 0 : index
    %c0_165 = arith.constant 0 : index
    %367 = vector.load %arg24[%c0_163, %c0_164, %c0_165] : memref<1x1x1xf32, #tpu.memory_space<vmem>>, vector<1x1x1xf32>
    %368 = vector.shape_cast %367 : vector<1x1x1xf32> to vector<1x1xf32>
    %369 = vector.shape_cast %366 : vector<1x1xf32> to vector<1x1x1xf32>
    tpu.vector_store %arg24[%c0_163, %c0_164, %c0_165], %369 {strides = array<i32>} : memref<1x1x1xf32, #tpu.memory_space<vmem>>, vector<1x1x1xf32>,
    return
  }
  func.func @transform_0(%arg0: i32) -> (i32, i32, i32) {
    %c0_i32 = arith.constant 0 : i32
    %c0_i32_0 = arith.constant 0 : i32
    %c0_i32_1 = arith.constant 0 : i32
    return %arg0, %c0_i32, %c0_i32_0 : i32, i32, i32
  }
  func.func @transform_1(%arg0: i32) -> (i32, i32, i32) {
    %c0_i32 = arith.constant 0 : i32
    %c0_i32_0 = arith.constant 0 : i32
    %c0_i32_1 = arith.constant 0 : i32
    return %arg0, %c0_i32, %c0_i32_0 : i32, i32, i32
  }
  func.func @transform_2(%arg0: i32) -> (i32, i32) {
    %c0_i32 = arith.constant 0 : i32
    %c0_i32_0 = arith.constant 0 : i32
    %c0_i32_1 = arith.constant 0 : i32
    return %c0_i32, %c0_i32_0 : i32, i32
  }
  func.func @transform_3(%arg0: i32) -> (i32, i32) {
    %c0_i32 = arith.constant 0 : i32
    %c0_i32_0 = arith.constant 0 : i32
    %c0_i32_1 = arith.constant 0 : i32
    return %c0_i32, %c0_i32_0 : i32, i32
  }
  func.func @transform_4(%arg0: i32) -> (i32, i32) {
    %c0_i32 = arith.constant 0 : i32
    %c0_i32_0 = arith.constant 0 : i32
    %c0_i32_1 = arith.constant 0 : i32
    return %c0_i32, %c0_i32_0 : i32, i32
  }
  func.func @transform_5(%arg0: i32) -> (i32, i32) {
    %c0_i32 = arith.constant 0 : i32
    %c0_i32_0 = arith.constant 0 : i32
    %c0_i32_1 = arith.constant 0 : i32
    return %c0_i32, %c0_i32_0 : i32, i32
  }
  func.func @transform_6(%arg0: i32) -> (i32, i32) {
    %c0_i32 = arith.constant 0 : i32
    %c0_i32_0 = arith.constant 0 : i32
    %c0_i32_1 = arith.constant 0 : i32
    return %c0_i32, %c0_i32_0 : i32, i32
  }
  func.func @transform_7(%arg0: i32) -> (i32, i32, i32) {
    %c0_i32 = arith.constant 0 : i32
    %c0_i32_0 = arith.constant 0 : i32
    %c0_i32_1 = arith.constant 0 : i32
    %c0_i32_2 = arith.constant 0 : i32
    return %c0_i32, %c0_i32_0, %c0_i32_1 : i32, i32, i32
  }
  func.func @transform_8(%arg0: i32) -> (i32, i32, i32) {
    %c0_i32 = arith.constant 0 : i32
    %c0_i32_0 = arith.constant 0 : i32
    %c0_i32_1 = arith.constant 0 : i32
    %c0_i32_2 = arith.constant 0 : i32
    return %c0_i32, %c0_i32_0, %c0_i32_1 : i32, i32, i32
  }
  func.func @transform_9(%arg0: i32) -> (i32, i32, i32) {
    %c0_i32 = arith.constant 0 : i32
    %c0_i32_0 = arith.constant 0 : i32
    %c0_i32_1 = arith.constant 0 : i32
    %c0_i32_2 = arith.constant 0 : i32
    return %c0_i32, %c0_i32_0, %c0_i32_1 : i32, i32, i32
  }
  func.func @transform_10(%arg0: i32) -> (i32, i32, i32) {
    %c0_i32 = arith.constant 0 : i32
    %c0_i32_0 = arith.constant 0 : i32
    %c0_i32_1 = arith.constant 0 : i32
    %c0_i32_2 = arith.constant 0 : i32
    return %c0_i32, %c0_i32_0, %c0_i32_1 : i32, i32, i32
  }
  func.func @transform_11(%arg0: i32) -> (i32, i32, i32) {
    %c0_i32 = arith.constant 0 : i32
    %c0_i32_0 = arith.constant 0 : i32
    %c0_i32_1 = arith.constant 0 : i32
    %c0_i32_2 = arith.constant 0 : i32
    return %c0_i32, %c0_i32_0, %c0_i32_1 : i32, i32, i32
  }
  func.func @transform_12(%arg0: i32) -> (i32, i32, i32) {
    %c0_i32 = arith.constant 0 : i32
    %c0_i32_0 = arith.constant 0 : i32
    %c0_i32_1 = arith.constant 0 : i32
    %c0_i32_2 = arith.constant 0 : i32
    return %c0_i32, %c0_i32_0, %c0_i32_1 : i32, i32, i32
  }
  func.func @transform_13(%arg0: i32) -> (i32, i32, i32) {
    %c0_i32 = arith.constant 0 : i32
    %c0_i32_0 = arith.constant 0 : i32
    %c0_i32_1 = arith.constant 0 : i32
    %c0_i32_2 = arith.constant 0 : i32
    return %c0_i32, %c0_i32_0, %c0_i32_1 : i32, i32, i32
  }
  func.func @transform_14(%arg0: i32) -> (i32, i32, i32) {
    %c0_i32 = arith.constant 0 : i32
    %c0_i32_0 = arith.constant 0 : i32
    %c0_i32_1 = arith.constant 0 : i32
    %c0_i32_2 = arith.constant 0 : i32
    return %c0_i32, %c0_i32_0, %c0_i32_1 : i32, i32, i32
  }
  func.func @transform_15(%arg0: i32) -> (i32, i32, i32) {
    %c0_i32 = arith.constant 0 : i32
    %c0_i32_0 = arith.constant 0 : i32
    %c0_i32_1 = arith.constant 0 : i32
    %c0_i32_2 = arith.constant 0 : i32
    return %c0_i32, %c0_i32_0, %c0_i32_1 : i32, i32, i32
  }
  func.func @transform_16(%arg0: i32) -> (i32, i32, i32) {
    %c0_i32 = arith.constant 0 : i32
    %c0_i32_0 = arith.constant 0 : i32
    %c0_i32_1 = arith.constant 0 : i32
    %c0_i32_2 = arith.constant 0 : i32
    return %c0_i32, %c0_i32_0, %c0_i32_1 : i32, i32, i32
  }
  func.func @transform_17(%arg0: i32) -> (i32, i32, i32) {
    %c0_i32 = arith.constant 0 : i32
    %c0_i32_0 = arith.constant 0 : i32
    %c0_i32_1 = arith.constant 0 : i32
    %c0_i32_2 = arith.constant 0 : i32
    return %c0_i32, %c0_i32_0, %c0_i32_1 : i32, i32, i32
  }
  func.func @transform_18(%arg0: i32) -> (i32, i32, i32) {
    %c0_i32 = arith.constant 0 : i32
    %c0_i32_0 = arith.constant 0 : i32
    %c0_i32_1 = arith.constant 0 : i32
    %c0_i32_2 = arith.constant 0 : i32
    return %c0_i32, %c0_i32_0, %c0_i32_1 : i32, i32, i32
  }
  func.func @transform_19(%arg0: i32) -> (i32, i32) {
    %c0_i32 = arith.constant 0 : i32
    %c0_i32_0 = arith.constant 0 : i32
    %c0_i32_1 = arith.constant 0 : i32
    return %c0_i32, %c0_i32_0 : i32, i32
  }
  func.func @transform_20(%arg0: i32) -> (i32, i32) {
    %c0_i32 = arith.constant 0 : i32
    %c0_i32_0 = arith.constant 0 : i32
    %c0_i32_1 = arith.constant 0 : i32
    return %c0_i32, %c0_i32_0 : i32, i32
  }
  func.func @transform_21(%arg0: i32) -> (i32, i32, i32) {
    %c0_i32 = arith.constant 0 : i32
    %c0_i32_0 = arith.constant 0 : i32
    %c0_i32_1 = arith.constant 0 : i32
    return %arg0, %c0_i32, %c0_i32_0 : i32, i32, i32
  }
  func.func @transform_22(%arg0: i32) -> (i32, i32, i32) {
    %c0_i32 = arith.constant 0 : i32
    %c0_i32_0 = arith.constant 0 : i32
    %c0_i32_1 = arith.constant 0 : i32
    return %arg0, %c0_i32, %c0_i32_0 : i32, i32, i32
  }
  func.func @transform_23(%arg0: i32) -> (i32, i32, i32) {
    %c0_i32 = arith.constant 0 : i32
    %c0_i32_0 = arith.constant 0 : i32
    %c0_i32_1 = arith.constant 0 : i32
    return %arg0, %c0_i32, %c0_i32_0 : i32, i32, i32
  }
}

</mosaic_0001>

<llo_original>
// kernel: eq.1
$region0: #{eq.1}
  #allocation2 [shape = 's32[1]{0}', space=sflag, size = 0x4, scoped, tag = 'scoped memory for eq.1']
  %s0 = inlined_call_operand.vmem [shape: s32[2], index: 0, kind: input, shape index: {}]
  %s1 = inlined_call_operand.vmem [shape: s32[2], index: 1, kind: input, shape index: {}]
  %s2 = inlined_call_operand.hbm [shape: pred[2], index: 2, kind: output, shape index: {}]
  $region1: #{eq.1} parent=0
    #allocation0 [shape = 'u8[512]{0}', space=vmem, size = 0x400, scoped, tag = 'operand span for operand 2']
    #allocation1 [shape = 's32[1]{0}', space=sflag, size = 0x4, scoped, tag = 'scoped memory for eq.1']
    %3 = vsyncpa [#allocation1], 0
    %v4 = vld [vmem:[%s0] sm:$0x1]
    %v5 = vld [vmem:[%s1] sm:$0x1]
    %6 = xla_tuple %v4, %v5
    %7 = xla_tuple %6
    %vm8 = vcmp.eq.s32.totalorder %v4, %v5
    %v9 = vsel %vm8, 1, 0
    %10 = xla_tuple %v9
    %v11 = vpack.c.b16 0, %v9
    %v12 = vpack.c.b8 0, %v11
    %14 = vst [vmem:[#allocation0] sm:$0x1] %v12
    %s16 = ssub.s32 16, 16
    %17 = vsyncadd [#allocation1], %s16
    %s19 = sshll.u32 [#allocation0], 4
    %s20 = int_to_ptr.vmem [resolvable:$true] %s19
    %22 = dma.vmem_to_hbm [thread:$0]  %s20, 16, %s2, [#allocation1]
    %23 = dma.done [#allocation1], 16
    %24 = vsyncpa [#allocation1], 1

// kernel: koelectra_m_forward.1
$region0: #{koelectra_m_forward.1}
  #allocation0 [shape = 'u32[]', space=smem, size = 0x4, offset = 0x4, fixed_abs, tag = 'smem constant byte address 0x4 - core index']
  #allocation1 [shape = 'u32[144,128]{1,0:T(1,128)}', space=vmem, size = 0x12000, scoped, tag = 'internal scratch']
  %s0 = inlined_call_operand.vmem [shape: s32[2,8,1], index: 0, kind: input, shape index: {}]
  %s1 = inlined_call_operand.vmem [shape: s32[2,1,1], index: 1, kind: input, shape index: {}]
  %s2 = inlined_call_operand.vmem [shape: bf16[128,32], index: 2, kind: input, shape index: {}]
  %s3 = inlined_call_operand.vmem [shape: f32[8,32], index: 3, kind: input, shape index: {}]
  %s4 = inlined_call_operand.vmem [shape: f32[1,32], index: 4, kind: input, shape index: {}]
  %s5 = inlined_call_operand.vmem [shape: f32[1,32], index: 5, kind: input, shape index: {}]
  %s6 = inlined_call_operand.vmem [shape: f32[1,32], index: 6, kind: input, shape index: {}]
  %s7 = inlined_call_operand.vmem [shape: bf16[2,32,96], index: 7, kind: input, shape index: {}]
  %s8 = inlined_call_operand.vmem [shape: f32[2,1,96], index: 8, kind: input, shape index: {}]
  %s9 = inlined_call_operand.vmem [shape: bf16[2,32,32], index: 9, kind: input, shape index: {}]
  %s10 = inlined_call_operand.vmem [shape: f32[2,1,32], index: 10, kind: input, shape index: {}]
  %s11 = inlined_call_operand.vmem [shape: f32[2,1,32], index: 11, kind: input, shape index: {}]
  %s12 = inlined_call_operand.vmem [shape: f32[2,1,32], index: 12, kind: input, shape index: {}]
  %s13 = inlined_call_operand.vmem [shape: bf16[2,32,64], index: 13, kind: input, shape index: {}]
  %s14 = inlined_call_operand.vmem [shape: f32[2,1,64], index: 14, kind: input, shape index: {}]
  %s15 = inlined_call_operand.vmem [shape: bf16[2,64,32], index: 15, kind: input, shape index: {}]
  %s16 = inlined_call_operand.vmem [shape: f32[2,1,32], index: 16, kind: input, shape index: {}]
  %s17 = inlined_call_operand.vmem [shape: f32[2,1,32], index: 17, kind: input, shape index: {}]
  %s18 = inlined_call_operand.vmem [shape: f32[2,1,32], index: 18, kind: input, shape index: {}]
  %s19 = inlined_call_operand.vmem [shape: bf16[32,128], index: 19, kind: input, shape index: {}]
  %s20 = inlined_call_operand.vmem [shape: f32[1,128], index: 20, kind: input, shape index: {}]
  %s21 = inlined_call_operand.hbm [shape: f32[2,1,128], index: 21, kind: output, shape index: {0}]
  %s22 = inlined_call_operand.vmem [shape: s32[2,1,1], index: 22, kind: output, shape index: {1}]
  %s23 = inlined_call_operand.vmem [shape: f32[2,1,1], index: 23, kind: output, shape index: {2}]
  %24 = xla_tuple %s21, %s22, %s23
  %s25 = sld [smem:[#allocation0]]
  $region133: #{koelectra_m_forward.1} parent=0
    _
  %s27 = ssub.s32 1, %s25
  %s28 = scalar_select 0, %s27, %s25
  $region1: #{koelectra_m_forward.1} parent=0
    #allocation2 [shape = 'u8[1024]{0}', space=vmem, size = 0x400, scoped, tag = 'output window, operand 0']
    #allocation3 [shape = 's32[2]{0}', space=sflag, size = 0x8, scoped, tag = 'scoped memory for koelectra_m_forward.1']
    %29 = vsyncpa [#allocation3], 0
    %s30 = scalar_lea.sflag [#allocation3], 1
    %31 = vsyncpa %s30, 0
    loop: start=0, step=1, limit=4
    $region2: #{koelectra_m_forward.1} parent=1 // loop_pre_header
      _
    $region3: #{koelectra_m_forward.1} parent=1 // loop_header
      %s33 = sphi 0, %s37
      %p34 = scmp.ge.s32.totalorder %s33, 4
      %s43 = sphi 0, %s45
      %s46 = sphi 0, %s43
      %s47 = sphi 0, %s46
      %s63 = sphi 0, %s47
      %s69 = sphi 0, %s71
      %s72 = sphi 0, %s69
      %s73 = sphi 0, %s72
      %s89 = sphi 0, %s73
      %s93 = sphi 0, %s93
      %s95 = sphi 0, %s93
      %s96 = sphi 0, %s95
      %s110 = sphi 0, %s96
      %s114 = sphi 0, %s114
      %s116 = sphi 0, %s114
      %s117 = sphi 0, %s116
      %s131 = sphi 0, %s117
      %s135 = sphi 0, %s135
      %s137 = sphi 0, %s135
      %s138 = sphi 0, %s137
      %s152 = sphi 0, %s138
      %s156 = sphi 0, %s156
      %s158 = sphi 0, %s156
      %s159 = sphi 0, %s158
      %s173 = sphi 0, %s159
      %s177 = sphi 0, %s177
      %s179 = sphi 0, %s177
      %s180 = sphi 0, %s179
      %s194 = sphi 0, %s180
      %s198 = sphi 0, %s198
      %s200 = sphi 0, %s198
      %s201 = sphi 0, %s200
      %s215 = sphi 0, %s201
      %s219 = sphi 0, %s219
      %s221 = sphi 0, %s219
      %s222 = sphi 0, %s221
      %s236 = sphi 0, %s222
      %s240 = sphi 0, %s240
      %s242 = sphi 0, %s240
      %s243 = sphi 0, %s242
      %s257 = sphi 0, %s243
      %s261 = sphi 0, %s261
      %s263 = sphi 0, %s261
      %s264 = sphi 0, %s263
      %s278 = sphi 0, %s264
      %s282 = sphi 0, %s282
      %s284 = sphi 0, %s282
      %s285 = sphi 0, %s284
      %s299 = sphi 0, %s285
      %s303 = sphi 0, %s303
      %s305 = sphi 0, %s303
      %s306 = sphi 0, %s305
      %s320 = sphi 0, %s306
      %s324 = sphi 0, %s324
      %s326 = sphi 0, %s324
      %s327 = sphi 0, %s326
      %s341 = sphi 0, %s327
      %s345 = sphi 0, %s345
      %s347 = sphi 0, %s345
      %s348 = sphi 0, %s347
      %s362 = sphi 0, %s348
      %s366 = sphi 0, %s366
      %s368 = sphi 0, %s366
      %s369 = sphi 0, %s368
      %s383 = sphi 0, %s369
      %s387 = sphi 0, %s387
      %s389 = sphi 0, %s387
      %s390 = sphi 0, %s389
      %s404 = sphi 0, %s390
      %s408 = sphi 0, %s408
      %s410 = sphi 0, %s408
      %s411 = sphi 0, %s410
      %s425 = sphi 0, %s411
      %s429 = sphi 0, %s429
      %s431 = sphi 0, %s429
      %s432 = sphi 0, %s431
      %s446 = sphi 0, %s432
      %s450 = sphi 0, %s450
      %s452 = sphi 0, %s450
      %s453 = sphi 0, %s452
      %s467 = sphi 0, %s453
      %s471 = sphi 0, %s471
      %s473 = sphi 0, %s471
      %s474 = sphi 0, %s473
      %s488 = sphi 0, %s474
      %s494 = sphi 0, %s496
      %s497 = sphi 0, %s494
      %s498 = sphi 0, %s497
      %s514 = sphi 0, %s498
      %s520 = sphi 0, %s522
      %s523 = sphi 0, %s520
      %s524 = sphi 0, %s523
      %s540 = sphi 0, %s524
      %s546 = sphi 0, %s548
      %s549 = sphi 0, %s546
      %s550 = sphi 0, %s549
      %s566 = sphi 0, %s550
    $region4: #{koelectra_m_forward.1} parent=1 // loop_header_branch
      %36 = sbr.rel (%p34) target = $region8
    $region5: #{koelectra_m_forward.1} parent=1 // loop_body
      %s38 = ssub.s32 %s33, 1
      %s39 = ssub.s32 %s33, 2
      %s40 = sadd.s32 %s33, 1
      %s41 = ssub.s32 %s33, %s40
      %p42 = scmp.eq.s32.totalorder %s41, 0
      %s44 = sadd.s32 %s43, 1
      %s45 = scalar_select %p42, %s43, %s44
      %p48 = pneg %p42
      %p49 = scmp.eq.s32.totalorder %s33, 1
      %p50 = por %p48, %p49
      %p51 = scmp.ne.s32.totalorder %s43, %s46
      %p52 = scmp.eq.s32.totalorder %s33, 0
      %p53 = por %p51, %p52
      %p54 = scmp.ne.s32.totalorder %s43, %s46
      %p55 = scmp.eq.s32.totalorder %s38, 1
      %p56 = por %p54, %p55
      %p57 = scmp.ne.s32.totalorder %s46, %s47
      %p58 = scmp.eq.s32.totalorder %s38, 0
      %p59 = por %p57, %p58
      %p60 = scmp.ne.s32.totalorder %s46, %s47
      %p61 = scmp.eq.s32.totalorder %s39, 1
      %p62 = por %p60, %p61
      %p64 = scmp.ne.s32.totalorder %s47, %s63
      %p65 = scmp.eq.s32.totalorder %s39, 0
      %p66 = por %p64, %p65
      %s67 = ssub.s32 %s33, %s40
      %p68 = scmp.eq.s32.totalorder %s67, 0
      %s70 = sadd.s32 %s69, 1
      %s71 = scalar_select %p68, %s69, %s70
      %p74 = pneg %p68
      %p75 = scmp.eq.s32.totalorder %s33, 1
      %p76 = por %p74, %p75
      %p77 = scmp.ne.s32.totalorder %s69, %s72
      %p78 = scmp.eq.s32.totalorder %s33, 0
      %p79 = por %p77, %p78
      %p80 = scmp.ne.s32.totalorder %s69, %s72
      %p81 = scmp.eq.s32.totalorder %s38, 1
      %p82 = por %p80, %p81
      %p83 = scmp.ne.s32.totalorder %s72, %s73
      %p84 = scmp.eq.s32.totalorder %s38, 0
      %p85 = por %p83, %p84
      %p86 = scmp.ne.s32.totalorder %s72, %s73
      %p87 = scmp.eq.s32.totalorder %s39, 1
      %p88 = por %p86, %p87
      %p90 = scmp.ne.s32.totalorder %s73, %s89
      %p91 = scmp.eq.s32.totalorder %s39, 0
      %p92 = por %p90, %p91
      %s94 = sadd.s32 %s93, 1
      %p97 = scmp.eq.s32.totalorder %s33, 1
      %p98 = scmp.ne.s32.totalorder %s93, %s95
      %p99 = scmp.eq.s32.totalorder %s33, 0
      %p100 = por %p98, %p99
      %p101 = scmp.ne.s32.totalorder %s93, %s95
      %p102 = scmp.eq.s32.totalorder %s38, 1
      %p103 = por %p101, %p102
      %p104 = scmp.ne.s32.totalorder %s95, %s96
      %p105 = scmp.eq.s32.totalorder %s38, 0
      %p106 = por %p104, %p105
      %p107 = scmp.ne.s32.totalorder %s95, %s96
      %p108 = scmp.eq.s32.totalorder %s39, 1
      %p109 = por %p107, %p108
      %p111 = scmp.ne.s32.totalorder %s96, %s110
      %p112 = scmp.eq.s32.totalorder %s39, 0
      %p113 = por %p111, %p112
      %s115 = sadd.s32 %s114, 1
      %p118 = scmp.eq.s32.totalorder %s33, 1
      %p119 = scmp.ne.s32.totalorder %s114, %s116
      %p120 = scmp.eq.s32.totalorder %s33, 0
      %p121 = por %p119, %p120
      %p122 = scmp.ne.s32.totalorder %s114, %s116
      %p123 = scmp.eq.s32.totalorder %s38, 1
      %p124 = por %p122, %p123
      %p125 = scmp.ne.s32.totalorder %s116, %s117
      %p126 = scmp.eq.s32.totalorder %s38, 0
      %p127 = por %p125, %p126
      %p128 = scmp.ne.s32.totalorder %s116, %s117
      %p129 = scmp.eq.s32.totalorder %s39, 1
      %p130 = por %p128, %p129
      %p132 = scmp.ne.s32.totalorder %s117, %s131
      %p133 = scmp.eq.s32.totalorder %s39, 0
      %p134 = por %p132, %p133
      %s136 = sadd.s32 %s135, 1
      %p139 = scmp.eq.s32.totalorder %s33, 1
      %p140 = scmp.ne.s32.totalorder %s135, %s137
      %p141 = scmp.eq.s32.totalorder %s33, 0
      %p142 = por %p140, %p141
      %p143 = scmp.ne.s32.totalorder %s135, %s137
      %p144 = scmp.eq.s32.totalorder %s38, 1
      %p145 = por %p143, %p144
      %p146 = scmp.ne.s32.totalorder %s137, %s138
      %p147 = scmp.eq.s32.totalorder %s38, 0
      %p148 = por %p146, %p147
      %p149 = scmp.ne.s32.totalorder %s137, %s138
      %p150 = scmp.eq.s32.totalorder %s39, 1
      %p151 = por %p149, %p150
      %p153 = scmp.ne.s32.totalorder %s138, %s152
      %p154 = scmp.eq.s32.totalorder %s39, 0
      %p155 = por %p153, %p154
      %s157 = sadd.s32 %s156, 1
      %p160 = scmp.eq.s32.totalorder %s33, 1
      %p161 = scmp.ne.s32.totalorder %s156, %s158
      %p162 = scmp.eq.s32.totalorder %s33, 0
      %p163 = por %p161, %p162
      %p164 = scmp.ne.s32.totalorder %s156, %s158
      %p165 = scmp.eq.s32.totalorder %s38, 1
      %p166 = por %p164, %p165
      %p167 = scmp.ne.s32.totalorder %s158, %s159
      %p168 = scmp.eq.s32.totalorder %s38, 0
      %p169 = por %p167, %p168
      %p170 = scmp.ne.s32.totalorder %s158, %s159
      %p171 = scmp.eq.s32.totalorder %s39, 1
      %p172 = por %p170, %p171
      %p174 = scmp.ne.s32.totalorder %s159, %s173
      %p175 = scmp.eq.s32.totalorder %s39, 0
      %p176 = por %p174, %p175
      %s178 = sadd.s32 %s177, 1
      %p181 = scmp.eq.s32.totalorder %s33, 1
      %p182 = scmp.ne.s32.totalorder %s177, %s179
      %p183 = scmp.eq.s32.totalorder %s33, 0
      %p184 = por %p182, %p183
      %p185 = scmp.ne.s32.totalorder %s177, %s179
      %p186 = scmp.eq.s32.totalorder %s38, 1
      %p187 = por %p185, %p186
      %p188 = scmp.ne.s32.totalorder %s179, %s180
      %p189 = scmp.eq.s32.totalorder %s38, 0
      %p190 = por %p188, %p189
      %p191 = scmp.ne.s32.totalorder %s179, %s180
      %p192 = scmp.eq.s32.totalorder %s39, 1
      %p193 = por %p191, %p192
      %p195 = scmp.ne.s32.totalorder %s180, %s194
      %p196 = scmp.eq.s32.totalorder %s39, 0
      %p197 = por %p195, %p196
      %s199 = sadd.s32 %s198, 1
      %p202 = scmp.eq.s32.totalorder %s33, 1
      %p203 = scmp.ne.s32.totalorder %s198, %s200
      %p204 = scmp.eq.s32.totalorder %s33, 0
      %p205 = por %p203, %p204
      %p206 = scmp.ne.s32.totalorder %s198, %s200
      %p207 = scmp.eq.s32.totalorder %s38, 1
      %p208 = por %p206, %p207
      %p209 = scmp.ne.s32.totalorder %s200, %s201
      %p210 = scmp.eq.s32.totalorder %s38, 0
      %p211 = por %p209, %p210
      %p212 = scmp.ne.s32.totalorder %s200, %s201
      %p213 = scmp.eq.s32.totalorder %s39, 1
      %p214 = por %p212, %p213
      %p216 = scmp.ne.s32.totalorder %s201, %s215
      %p217 = scmp.eq.s32.totalorder %s39, 0
      %p218 = por %p216, %p217
      %s220 = sadd.s32 %s219, 1
      %p223 = scmp.eq.s32.totalorder %s33, 1
      %p224 = scmp.ne.s32.totalorder %s219, %s221
      %p225 = scmp.eq.s32.totalorder %s33, 0
      %p226 = por %p224, %p225
      %p227 = scmp.ne.s32.totalorder %s219, %s221
      %p228 = scmp.eq.s32.totalorder %s38, 1
      %p229 = por %p227, %p228
      %p230 = scmp.ne.s32.totalorder %s221, %s222
      %p231 = scmp.eq.s32.totalorder %s38, 0
      %p232 = por %p230, %p231
      %p233 = scmp.ne.s32.totalorder %s221, %s222
      %p234 = scmp.eq.s32.totalorder %s39, 1
      %p235 = por %p233, %p234
      %p237 = scmp.ne.s32.totalorder %s222, %s236
      %p238 = scmp.eq.s32.totalorder %s39, 0
      %p239 = por %p237, %p238
      %s241 = sadd.s32 %s240, 1
      %p244 = scmp.eq.s32.totalorder %s33, 1
      %p245 = scmp.ne.s32.totalorder %s240, %s242
      %p246 = scmp.eq.s32.totalorder %s33, 0
      %p247 = por %p245, %p246
      %p248 = scmp.ne.s32.totalorder %s240, %s242
      %p249 = scmp.eq.s32.totalorder %s38, 1
      %p250 = por %p248, %p249
      %p251 = scmp.ne.s32.totalorder %s242, %s243
      %p252 = scmp.eq.s32.totalorder %s38, 0
      %p253 = por %p251, %p252
      %p254 = scmp.ne.s32.totalorder %s242, %s243
      %p255 = scmp.eq.s32.totalorder %s39, 1
      %p256 = por %p254, %p255
      %p258 = scmp.ne.s32.totalorder %s243, %s257
      %p259 = scmp.eq.s32.totalorder %s39, 0
      %p260 = por %p258, %p259
      %s262 = sadd.s32 %s261, 1
      %p265 = scmp.eq.s32.totalorder %s33, 1
      %p266 = scmp.ne.s32.totalorder %s261, %s263
      %p267 = scmp.eq.s32.totalorder %s33, 0
      %p268 = por %p266, %p267
      %p269 = scmp.ne.s32.totalorder %s261, %s263
      %p270 = scmp.eq.s32.totalorder %s38, 1
      %p271 = por %p269, %p270
      %p272 = scmp.ne.s32.totalorder %s263, %s264
      %p273 = scmp.eq.s32.totalorder %s38, 0
      %p274 = por %p272, %p273
      %p275 = scmp.ne.s32.totalorder %s263, %s264
      %p276 = scmp.eq.s32.totalorder %s39, 1
      %p277 = por %p275, %p276
      %p279 = scmp.ne.s32.totalorder %s264, %s278
      %p280 = scmp.eq.s32.totalorder %s39, 0
      %p281 = por %p279, %p280
      %s283 = sadd.s32 %s282, 1
      %p286 = scmp.eq.s32.totalorder %s33, 1
      %p287 = scmp.ne.s32.totalorder %s282, %s284
      %p288 = scmp.eq.s32.totalorder %s33, 0
      %p289 = por %p287, %p288
      %p290 = scmp.ne.s32.totalorder %s282, %s284
      %p291 = scmp.eq.s32.totalorder %s38, 1
      %p292 = por %p290, %p291
      %p293 = scmp.ne.s32.totalorder %s284, %s285
      %p294 = scmp.eq.s32.totalorder %s38, 0
      %p295 = por %p293, %p294
      %p296 = scmp.ne.s32.totalorder %s284, %s285
      %p297 = scmp.eq.s32.totalorder %s39, 1
      %p298 = por %p296, %p297
      %p300 = scmp.ne.s32.totalorder %s285, %s299
      %p301 = scmp.eq.s32.totalorder %s39, 0
      %p302 = por %p300, %p301
      %s304 = sadd.s32 %s303, 1
      %p307 = scmp.eq.s32.totalorder %s33, 1
      %p308 = scmp.ne.s32.totalorder %s303, %s305
      %p309 = scmp.eq.s32.totalorder %s33, 0
      %p310 = por %p308, %p309
      %p311 = scmp.ne.s32.totalorder %s303, %s305
      %p312 = scmp.eq.s32.totalorder %s38, 1
      %p313 = por %p311, %p312
      %p314 = scmp.ne.s32.totalorder %s305, %s306
      %p315 = scmp.eq.s32.totalorder %s38, 0
      %p316 = por %p314, %p315
      %p317 = scmp.ne.s32.totalorder %s305, %s306
      %p318 = scmp.eq.s32.totalorder %s39, 1
      %p319 = por %p317, %p318
      %p321 = scmp.ne.s32.totalorder %s306, %s320
      %p322 = scmp.eq.s32.totalorder %s39, 0
      %p323 = por %p321, %p322
      %s325 = sadd.s32 %s324, 1
      %p328 = scmp.eq.s32.totalorder %s33, 1
      %p329 = scmp.ne.s32.totalorder %s324, %s326
      %p330 = scmp.eq.s32.totalorder %s33, 0
      %p331 = por %p329, %p330
      %p332 = scmp.ne.s32.totalorder %s324, %s326
      %p333 = scmp.eq.s32.totalorder %s38, 1
      %p334 = por %p332, %p333
      %p335 = scmp.ne.s32.totalorder %s326, %s327
      %p336 = scmp.eq.s32.totalorder %s38, 0
      %p337 = por %p335, %p336
      %p338 = scmp.ne.s32.totalorder %s326, %s327
      %p339 = scmp.eq.s32.totalorder %s39, 1
      %p340 = por %p338, %p339
      %p342 = scmp.ne.s32.totalorder %s327, %s341
      %p343 = scmp.eq.s32.totalorder %s39, 0
      %p344 = por %p342, %p343
      %s346 = sadd.s32 %s345, 1
      %p349 = scmp.eq.s32.totalorder %s33, 1
      %p350 = scmp.ne.s32.totalorder %s345, %s347
      %p351 = scmp.eq.s32.totalorder %s33, 0
      %p352 = por %p350, %p351
      %p353 = scmp.ne.s32.totalorder %s345, %s347
      %p354 = scmp.eq.s32.totalorder %s38, 1
      %p355 = por %p353, %p354
      %p356 = scmp.ne.s32.totalorder %s347, %s348
      %p357 = scmp.eq.s32.totalorder %s38, 0
      %p358 = por %p356, %p357
      %p359 = scmp.ne.s32.totalorder %s347, %s348
      %p360 = scmp.eq.s32.totalorder %s39, 1
      %p361 = por %p359, %p360
      %p363 = scmp.ne.s32.totalorder %s348, %s362
      %p364 = scmp.eq.s32.totalorder %s39, 0
      %p365 = por %p363, %p364
      %s367 = sadd.s32 %s366, 1
      %p370 = scmp.eq.s32.totalorder %s33, 1
      %p371 = scmp.ne.s32.totalorder %s366, %s368
      %p372 = scmp.eq.s32.totalorder %s33, 0
      %p373 = por %p371, %p372
      %p374 = scmp.ne.s32.totalorder %s366, %s368
      %p375 = scmp.eq.s32.totalorder %s38, 1
      %p376 = por %p374, %p375
      %p377 = scmp.ne.s32.totalorder %s368, %s369
      %p378 = scmp.eq.s32.totalorder %s38, 0
      %p379 = por %p377, %p378
      %p380 = scmp.ne.s32.totalorder %s368, %s369
      %p381 = scmp.eq.s32.totalorder %s39, 1
      %p382 = por %p380, %p381
      %p384 = scmp.ne.s32.totalorder %s369, %s383
      %p385 = scmp.eq.s32.totalorder %s39, 0
      %p386 = por %p384, %p385
      %s388 = sadd.s32 %s387, 1
      %p391 = scmp.eq.s32.totalorder %s33, 1
      %p392 = scmp.ne.s32.totalorder %s387, %s389
      %p393 = scmp.eq.s32.totalorder %s33, 0
      %p394 = por %p392, %p393
      %p395 = scmp.ne.s32.totalorder %s387, %s389
      %p396 = scmp.eq.s32.totalorder %s38, 1
      %p397 = por %p395, %p396
      %p398 = scmp.ne.s32.totalorder %s389, %s390
      %p399 = scmp.eq.s32.totalorder %s38, 0
      %p400 = por %p398, %p399
      %p401 = scmp.ne.s32.totalorder %s389, %s390
      %p402 = scmp.eq.s32.totalorder %s39, 1
      %p403 = por %p401, %p402
      %p405 = scmp.ne.s32.totalorder %s390, %s404
      %p406 = scmp.eq.s32.totalorder %s39, 0
      %p407 = por %p405, %p406
      %s409 = sadd.s32 %s408, 1
      %p412 = scmp.eq.s32.totalorder %s33, 1
      %p413 = scmp.ne.s32.totalorder %s408, %s410
      %p414 = scmp.eq.s32.totalorder %s33, 0
      %p415 = por %p413, %p414
      %p416 = scmp.ne.s32.totalorder %s408, %s410
      %p417 = scmp.eq.s32.totalorder %s38, 1
      %p418 = por %p416, %p417
      %p419 = scmp.ne.s32.totalorder %s410, %s411
      %p420 = scmp.eq.s32.totalorder %s38, 0
      %p421 = por %p419, %p420
      %p422 = scmp.ne.s32.totalorder %s410, %s411
      %p423 = scmp.eq.s32.totalorder %s39, 1
      %p424 = por %p422, %p423
      %p426 = scmp.ne.s32.totalorder %s411, %s425
      %p427 = scmp.eq.s32.totalorder %s39, 0
      %p428 = por %p426, %p427
      %s430 = sadd.s32 %s429, 1
      %p433 = scmp.eq.s32.totalorder %s33, 1
      %p434 = scmp.ne.s32.totalorder %s429, %s431
      %p435 = scmp.eq.s32.totalorder %s33, 0
      %p436 = por %p434, %p435
      %p437 = scmp.ne.s32.totalorder %s429, %s431
      %p438 = scmp.eq.s32.totalorder %s38, 1
      %p439 = por %p437, %p438
      %p440 = scmp.ne.s32.totalorder %s431, %s432
      %p441 = scmp.eq.s32.totalorder %s38, 0
      %p442 = por %p440, %p441
      %p443 = scmp.ne.s32.totalorder %s431, %s432
      %p444 = scmp.eq.s32.totalorder %s39, 1
      %p445 = por %p443, %p444
      %p447 = scmp.ne.s32.totalorder %s432, %s446
      %p448 = scmp.eq.s32.totalorder %s39, 0
      %p449 = por %p447, %p448
      %s451 = sadd.s32 %s450, 1
      %p454 = scmp.eq.s32.totalorder %s33, 1
      %p455 = scmp.ne.s32.totalorder %s450, %s452
      %p456 = scmp.eq.s32.totalorder %s33, 0
      %p457 = por %p455, %p456
      %p458 = scmp.ne.s32.totalorder %s450, %s452
      %p459 = scmp.eq.s32.totalorder %s38, 1
      %p460 = por %p458, %p459
      %p461 = scmp.ne.s32.totalorder %s452, %s453
      %p462 = scmp.eq.s32.totalorder %s38, 0
      %p463 = por %p461, %p462
      %p464 = scmp.ne.s32.totalorder %s452, %s453
      %p465 = scmp.eq.s32.totalorder %s39, 1
      %p466 = por %p464, %p465
      %p468 = scmp.ne.s32.totalorder %s453, %s467
      %p469 = scmp.eq.s32.totalorder %s39, 0
      %p470 = por %p468, %p469
      %s472 = sadd.s32 %s471, 1
      %p475 = scmp.eq.s32.totalorder %s33, 1
      %p476 = scmp.ne.s32.totalorder %s471, %s473
      %p477 = scmp.eq.s32.totalorder %s33, 0
      %p478 = por %p476, %p477
      %p479 = scmp.ne.s32.totalorder %s471, %s473
      %p480 = scmp.eq.s32.totalorder %s38, 1
      %p481 = por %p479, %p480
      %p482 = scmp.ne.s32.totalorder %s473, %s474
      %p483 = scmp.eq.s32.totalorder %s38, 0
      %p484 = por %p482, %p483
      %p485 = scmp.ne.s32.totalorder %s473, %s474
      %p486 = scmp.eq.s32.totalorder %s39, 1
      %p487 = por %p485, %p486
      %p489 = scmp.ne.s32.totalorder %s474, %s488
      %p490 = scmp.eq.s32.totalorder %s39, 0
      %p491 = por %p489, %p490
      %s492 = ssub.s32 %s33, %s40
      %p493 = scmp.eq.s32.totalorder %s492, 0
      %s495 = sadd.s32 %s494, 1
      %s496 = scalar_select %p493, %s494, %s495
      %p499 = pneg %p493
      %p500 = scmp.eq.s32.totalorder %s33, 1
      %p501 = por %p499, %p500
      %p502 = scmp.ne.s32.totalorder %s494, %s497
      %p503 = scmp.eq.s32.totalorder %s33, 0
      %p504 = por %p502, %p503
      %p505 = scmp.ne.s32.totalorder %s494, %s497
      %p506 = scmp.eq.s32.totalorder %s38, 1
      %p507 = por %p505, %p506
      %p508 = scmp.ne.s32.totalorder %s497, %s498
      %p509 = scmp.eq.s32.totalorder %s38, 0
      %p510 = por %p508, %p509
      %p511 = scmp.ne.s32.totalorder %s497, %s498
      %p512 = scmp.eq.s32.totalorder %s39, 1
      %p513 = por %p511, %p512
      %p515 = scmp.ne.s32.totalorder %s498, %s514
      %p516 = scmp.eq.s32.totalorder %s39, 0
      %p517 = por %p515, %p516
      %s518 = ssub.s32 %s33, %s40
      %p519 = scmp.eq.s32.totalorder %s518, 0
      %s521 = sadd.s32 %s520, 1
      %s522 = scalar_select %p519, %s520, %s521
      %p525 = pneg %p519
      %p526 = scmp.eq.s32.totalorder %s33, 1
      %p527 = por %p525, %p526
      %p528 = scmp.ne.s32.totalorder %s520, %s523
      %p529 = scmp.eq.s32.totalorder %s33, 0
      %p530 = por %p528, %p529
      %p531 = scmp.ne.s32.totalorder %s520, %s523
      %p532 = scmp.eq.s32.totalorder %s38, 1
      %p533 = por %p531, %p532
      %p534 = scmp.ne.s32.totalorder %s523, %s524
      %p535 = scmp.eq.s32.totalorder %s38, 0
      %p536 = por %p534, %p535
      %p537 = scmp.ne.s32.totalorder %s523, %s524
      %p538 = scmp.eq.s32.totalorder %s39, 1
      %p539 = por %p537, %p538
      %p541 = scmp.ne.s32.totalorder %s524, %s540
      %p542 = scmp.eq.s32.totalorder %s39, 0
      %p543 = por %p541, %p542
      %s544 = ssub.s32 %s33, %s40
      %p545 = scmp.eq.s32.totalorder %s544, 0
      %s547 = sadd.s32 %s546, 1
      %s548 = scalar_select %p545, %s546, %s547
      %p551 = pneg %p545
      %p552 = scmp.eq.s32.totalorder %s33, 1
      %p553 = por %p551, %p552
      %p554 = scmp.ne.s32.totalorder %s546, %s549
      %p555 = scmp.eq.s32.totalorder %s33, 0
      %p556 = por %p554, %p555
      %p557 = scmp.ne.s32.totalorder %s546, %s549
      %p558 = scmp.eq.s32.totalorder %s38, 1
      %p559 = por %p557, %p558
      %p560 = scmp.ne.s32.totalorder %s549, %s550
      %p561 = scmp.eq.s32.totalorder %s38, 0
      %p562 = por %p560, %p561
      %p563 = scmp.ne.s32.totalorder %s549, %s550
      %p564 = scmp.eq.s32.totalorder %s39, 1
      %p565 = por %p563, %p564
      %p567 = scmp.ne.s32.totalorder %s550, %s566
      %p568 = scmp.eq.s32.totalorder %s39, 0
      %p569 = por %p567, %p568
      %p570 = scmp.le.s32.totalorder 1, %s33
      %p571 = scmp.lt.s32.totalorder %s33, 3
      %p572 = pnand %p570, %p571
      %p573 = pneg %p572
      // Predicated region
      $region9: #{koelectra_m_forward.1} parent=5 // pred_check
        _
      $region10: #{koelectra_m_forward.1} parent=5 // pred_check_branch
        %575 = sbr.rel (%p572) target = $region12
      $region11: #{koelectra_m_forward.1} parent=5 // pred_region
        %s576 = ssub.s32 %s33, 1
        // Predicated region
        $region13: #{koelectra_m_forward.1} parent=11 // pred_check
          %p577 = pneg %p106
        $region14: #{koelectra_m_forward.1} parent=11 // pred_check_branch
          %579 = sbr.rel (%p577) target = $region16
        $region15: #{koelectra_m_forward.1} parent=11 // pred_region
          _
        $region16: #{koelectra_m_forward.1} parent=11 // pred_fallthru
          _
        // Predicated region
        $region17: #{koelectra_m_forward.1} parent=11 // pred_check
          %p580 = pneg %p127
        $region18: #{koelectra_m_forward.1} parent=11 // pred_check_branch
          %582 = sbr.rel (%p580) target = $region20
        $region19: #{koelectra_m_forward.1} parent=11 // pred_region
          _
        $region20: #{koelectra_m_forward.1} parent=11 // pred_fallthru
          _
        // Predicated region
        $region21: #{koelectra_m_forward.1} parent=11 // pred_check
          %p583 = pneg %p148
        $region22: #{koelectra_m_forward.1} parent=11 // pred_check_branch
          %585 = sbr.rel (%p583) target = $region24
        $region23: #{koelectra_m_forward.1} parent=11 // pred_region
          _
        $region24: #{koelectra_m_forward.1} parent=11 // pred_fallthru
          _
        // Predicated region
        $region25: #{koelectra_m_forward.1} parent=11 // pred_check
          %p586 = pneg %p169
        $region26: #{koelectra_m_forward.1} parent=11 // pred_check_branch
          %588 = sbr.rel (%p586) target = $region28
        $region27: #{koelectra_m_forward.1} parent=11 // pred_region
          _
        $region28: #{koelectra_m_forward.1} parent=11 // pred_fallthru
          _
        // Predicated region
        $region29: #{koelectra_m_forward.1} parent=11 // pred_check
          %p589 = pneg %p190
        $region30: #{koelectra_m_forward.1} parent=11 // pred_check_branch
          %591 = sbr.rel (%p589) target = $region32
        $region31: #{koelectra_m_forward.1} parent=11 // pred_region
          _
        $region32: #{koelectra_m_forward.1} parent=11 // pred_fallthru
          _
        // Predicated region
        $region33: #{koelectra_m_forward.1} parent=11 // pred_check
          %p592 = pneg %p211
        $region34: #{koelectra_m_forward.1} parent=11 // pred_check_branch
          %594 = sbr.rel (%p592) target = $region36
        $region35: #{koelectra_m_forward.1} parent=11 // pred_region
          _
        $region36: #{koelectra_m_forward.1} parent=11 // pred_fallthru
          _
        // Predicated region
        $region37: #{koelectra_m_forward.1} parent=11 // pred_check
          %p595 = pneg %p232
        $region38: #{koelectra_m_forward.1} parent=11 // pred_check_branch
          %597 = sbr.rel (%p595) target = $region40
        $region39: #{koelectra_m_forward.1} parent=11 // pred_region
          _
        $region40: #{koelectra_m_forward.1} parent=11 // pred_fallthru
          _
        // Predicated region
        $region41: #{koelectra_m_forward.1} parent=11 // pred_check
          %p598 = pneg %p253
        $region42: #{koelectra_m_forward.1} parent=11 // pred_check_branch
          %600 = sbr.rel (%p598) target = $region44
        $region43: #{koelectra_m_forward.1} parent=11 // pred_region
          _
        $region44: #{koelectra_m_forward.1} parent=11 // pred_fallthru
          _
        // Predicated region
        $region45: #{koelectra_m_forward.1} parent=11 // pred_check
          %p601 = pneg %p274
        $region46: #{koelectra_m_forward.1} parent=11 // pred_check_branch
          %603 = sbr.rel (%p601) target = $region48
        $region47: #{koelectra_m_forward.1} parent=11 // pred_region
          _
        $region48: #{koelectra_m_forward.1} parent=11 // pred_fallthru
          _
        // Predicated region
        $region49: #{koelectra_m_forward.1} parent=11 // pred_check
          %p604 = pneg %p295
        $region50: #{koelectra_m_forward.1} parent=11 // pred_check_branch
          %606 = sbr.rel (%p604) target = $region52
        $region51: #{koelectra_m_forward.1} parent=11 // pred_region
          _
        $region52: #{koelectra_m_forward.1} parent=11 // pred_fallthru
          _
        // Predicated region
        $region53: #{koelectra_m_forward.1} parent=11 // pred_check
          %p607 = pneg %p316
        $region54: #{koelectra_m_forward.1} parent=11 // pred_check_branch
          %609 = sbr.rel (%p607) target = $region56
        $region55: #{koelectra_m_forward.1} parent=11 // pred_region
          _
        $region56: #{koelectra_m_forward.1} parent=11 // pred_fallthru
          _
        // Predicated region
        $region57: #{koelectra_m_forward.1} parent=11 // pred_check
          %p610 = pneg %p337
        $region58: #{koelectra_m_forward.1} parent=11 // pred_check_branch
          %612 = sbr.rel (%p610) target = $region60
        $region59: #{koelectra_m_forward.1} parent=11 // pred_region
          _
        $region60: #{koelectra_m_forward.1} parent=11 // pred_fallthru
          _
        // Predicated region
        $region61: #{koelectra_m_forward.1} parent=11 // pred_check
          %p613 = pneg %p358
        $region62: #{koelectra_m_forward.1} parent=11 // pred_check_branch
          %615 = sbr.rel (%p613) target = $region64
        $region63: #{koelectra_m_forward.1} parent=11 // pred_region
          _
        $region64: #{koelectra_m_forward.1} parent=11 // pred_fallthru
          _
        // Predicated region
        $region65: #{koelectra_m_forward.1} parent=11 // pred_check
          %p616 = pneg %p379
        $region66: #{koelectra_m_forward.1} parent=11 // pred_check_branch
          %618 = sbr.rel (%p616) target = $region68
        $region67: #{koelectra_m_forward.1} parent=11 // pred_region
          _
        $region68: #{koelectra_m_forward.1} parent=11 // pred_fallthru
          _
        // Predicated region
        $region69: #{koelectra_m_forward.1} parent=11 // pred_check
          %p619 = pneg %p400
        $region70: #{koelectra_m_forward.1} parent=11 // pred_check_branch
          %621 = sbr.rel (%p619) target = $region72
        $region71: #{koelectra_m_forward.1} parent=11 // pred_region
          _
        $region72: #{koelectra_m_forward.1} parent=11 // pred_fallthru
          _
        // Predicated region
        $region73: #{koelectra_m_forward.1} parent=11 // pred_check
          %p622 = pneg %p421
        $region74: #{koelectra_m_forward.1} parent=11 // pred_check_branch
          %624 = sbr.rel (%p622) target = $region76
        $region75: #{koelectra_m_forward.1} parent=11 // pred_region
          _
        $region76: #{koelectra_m_forward.1} parent=11 // pred_fallthru
          _
        // Predicated region
        $region77: #{koelectra_m_forward.1} parent=11 // pred_check
          %p625 = pneg %p442
        $region78: #{koelectra_m_forward.1} parent=11 // pred_check_branch
          %627 = sbr.rel (%p625) target = $region80
        $region79: #{koelectra_m_forward.1} parent=11 // pred_region
          _
        $region80: #{koelectra_m_forward.1} parent=11 // pred_fallthru
          _
        // Predicated region
        $region81: #{koelectra_m_forward.1} parent=11 // pred_check
          %p628 = pneg %p463
        $region82: #{koelectra_m_forward.1} parent=11 // pred_check_branch
          %630 = sbr.rel (%p628) target = $region84
        $region83: #{koelectra_m_forward.1} parent=11 // pred_region
          _
        $region84: #{koelectra_m_forward.1} parent=11 // pred_fallthru
          _
        // Predicated region
        $region85: #{koelectra_m_forward.1} parent=11 // pred_check
          %p631 = pneg %p484
        $region86: #{koelectra_m_forward.1} parent=11 // pred_check_branch
          %633 = sbr.rel (%p631) target = $region88
        $region87: #{koelectra_m_forward.1} parent=11 // pred_region
          _
        $region88: #{koelectra_m_forward.1} parent=11 // pred_fallthru
          _
      $region12: #{koelectra_m_forward.1} parent=5 // pred_fallthru
        _
      %p634 = scmp.lt.s32.totalorder %s33, 2
      // Predicated region
      $region89: #{koelectra_m_forward.1} parent=5 // pred_check
        %p635 = pneg %p634
      $region90: #{koelectra_m_forward.1} parent=5 // pred_check_branch
        %637 = sbr.rel (%p635) target = $region92
      $region91: #{koelectra_m_forward.1} parent=5 // pred_region
        // Predicated region
        $region93: #{koelectra_m_forward.1} parent=91 // pred_check
          %p638 = pneg %p53
        $region94: #{koelectra_m_forward.1} parent=91 // pred_check_branch
          %640 = sbr.rel (%p638) target = $region96
        $region95: #{koelectra_m_forward.1} parent=91 // pred_region
          %p641 = scmp.lt.s32.totalorder %s33, 1
          %s642 = scalar_select %p641, %s33, 1
          %s643 = smul.addr %s642, 8
          %s644 = scalar_lea.vmem %s0, %s643
        $region96: #{koelectra_m_forward.1} parent=91 // pred_fallthru
          _
        // Predicated region
        $region97: #{koelectra_m_forward.1} parent=91 // pred_check
          %p645 = pneg %p79
        $region98: #{koelectra_m_forward.1} parent=91 // pred_check_branch
          %647 = sbr.rel (%p645) target = $region100
        $region99: #{koelectra_m_forward.1} parent=91 // pred_region
          %p648 = scmp.lt.s32.totalorder %s33, 1
          %s649 = scalar_select %p648, %s33, 1
          %s650 = scalar_lea.vmem %s1, %s649
        $region100: #{koelectra_m_forward.1} parent=91 // pred_fallthru
          _
      $region92: #{koelectra_m_forward.1} parent=5 // pred_fallthru
        _
      %p651 = scmp.le.s32.totalorder 1, %s33
      %p652 = scmp.lt.s32.totalorder %s33, 3
      %p653 = pnand %p651, %p652
      %p654 = pneg %p653
      // Predicated region
      $region101: #{koelectra_m_forward.1} parent=5 // pred_check
        _
      $region102: #{koelectra_m_forward.1} parent=5 // pred_check_branch
        %656 = sbr.rel (%p653) target = $region104
      $region103: #{koelectra_m_forward.1} parent=5 // pred_region
        %s657 = ssub.s32 %s33, 1
        %p658 = scmp.lt.s32.totalorder %s38, 1
        %s659 = scalar_select %p658, %s38, 1
        %s660 = smul.addr %s659, 8
        %s661 = scalar_lea.vmem %s0, %s660
        %p662 = pneg %p59
        %p663 = pneg %p56
        %p664 = scmp.lt.s32.totalorder %s38, 1
        %s665 = scalar_select %p664, %s38, 1
        %s666 = scalar_lea.vmem %s1, %s665
        %p667 = pneg %p85
        %p668 = pneg %p82
        %p669 = pneg %p106
        %p670 = pneg %p103
        %p671 = pneg %p127
        %p672 = pneg %p124
        %p673 = pneg %p148
        %p674 = pneg %p145
        %p675 = pneg %p169
        %p676 = pneg %p166
        %p677 = pneg %p190
        %p678 = pneg %p187
        %p679 = pneg %p211
        %p680 = pneg %p208
        %p681 = pneg %p232
        %p682 = pneg %p229
        %p683 = pneg %p253
        %p684 = pneg %p250
        %p685 = pneg %p274
        %p686 = pneg %p271
        %p687 = pneg %p295
        %p688 = pneg %p292
        %p689 = pneg %p316
        %p690 = pneg %p313
        %p691 = pneg %p337
        %p692 = pneg %p334
        %p693 = pneg %p358
        %p694 = pneg %p355
        %p695 = pneg %p379
        %p696 = pneg %p376
        %p697 = pneg %p400
        %p698 = pneg %p397
        %p699 = pneg %p421
        %p700 = pneg %p418
        %p701 = pneg %p442
        %p702 = pneg %p439
        %p703 = pneg %p463
        %p704 = pneg %p460
        %p705 = pneg %p484
        %p706 = pneg %p481
        %p707 = pneg %p510
        %p708 = pneg %p507
        %s709 = sand.u32 %s497, 1
        %s710 = scalar_lea.sflag [#allocation3], %s709
        %s711 = sand.u32 %s497, 1
        %s712 = scalar_lea.vmem [#allocation2], %s711
        %p713 = pneg %p536
        %p714 = pneg %p533
        %p715 = scmp.lt.s32.totalorder %s38, 1
        %s716 = scalar_select %p715, %s38, 1
        %s717 = scalar_lea.vmem %s22, %s716
        %p718 = pneg %p562
        %p719 = pneg %p559
        %p720 = scmp.lt.s32.totalorder %s38, 1
        %s721 = scalar_select %p720, %s38, 1
        %s722 = scalar_lea.vmem %s23, %s721
        %p723 = scmp.lt.s32.totalorder %s38, 1
        %s724 = scalar_select %p723, %s38, 1
        %s725 = smul.addr %s724, 8
        %s726 = scalar_lea.vmem %s0, %s725
        %p727 = scmp.lt.s32.totalorder %s38, 1
        %s728 = scalar_select %p727, %s38, 1
        %s729 = scalar_lea.vmem %s1, %s728
        %p730 = scmp.lt.s32.totalorder %s38, 1
        %s731 = scalar_select %p730, %s38, 1
        %s732 = scalar_lea.vmem %s22, %s731
        %p733 = scmp.lt.s32.totalorder %s38, 1
        %s734 = scalar_select %p733, %s38, 1
        %s735 = scalar_lea.vmem %s23, %s734
        %v737 = vld [vmem:[%s726] sm:$0xff]
        %v738 = vlaneseq
        %v739 = vand.u32 %v738, 127
        %740 = vset.pattern.permute.xlu0 0
        %741 = vperm.xlu0 %740, %v737
        %v742 = vpop.permute.xlu0 %741
        %vm743 = vcmp.eq.s32.totalorder %v742, %v739
        %v744 = vsel %vm743, 1, 0
        %v745 = vcvt.s32.f32 %v744
        %v746 = vpack.c.bf16 %v745, %v745
        %v747 = vld [vmem:[%s2] sm:$0xf]
        %v748 = vld [vmem:[%s2 + $0x4] sm:$0xf]
        %v749 = vld [vmem:[%s2 + $0x8] sm:$0xf]
        %v750 = vld [vmem:[%s2 + $0xc] sm:$0xf]
        %v751 = vld [vmem:[%s2 + $0x10] sm:$0xf]
        %v752 = vld [vmem:[%s2 + $0x14] sm:$0xf]
        %v753 = vld [vmem:[%s2 + $0x18] sm:$0xf]
        %v754 = vld [vmem:[%s2 + $0x1c] sm:$0xf]
        %v755 = vld [vmem:[%s2 + $0x20] sm:$0xf]
        %v756 = vld [vmem:[%s2 + $0x24] sm:$0xf]
        %v757 = vld [vmem:[%s2 + $0x28] sm:$0xf]
        %v758 = vld [vmem:[%s2 + $0x2c] sm:$0xf]
        %v759 = vld [vmem:[%s2 + $0x30] sm:$0xf]
        %v760 = vld [vmem:[%s2 + $0x34] sm:$0xf]
        %v761 = vld [vmem:[%s2 + $0x38] sm:$0xf]
        %v762 = vld [vmem:[%s2 + $0x3c] sm:$0xf]
        %v763 = vld [vmem:[%s3] sm:$0xff]
        %v780 = vunpack.c.l.b16 %v747
        %v781 = vunpack.c.l.b16 %v748
        %v782 = vunpack.c.l.b16 %v749
        %v783 = vunpack.c.l.b16 %v750
        %v784 = vunpack.c.l.b16 %v751
        %v785 = vunpack.c.l.b16 %v752
        %v786 = vunpack.c.l.b16 %v753
        %v787 = vunpack.c.l.b16 %v754
        %v788 = vunpack.c.l.b16 %v755
        %v789 = vunpack.c.l.b16 %v756
        %v790 = vunpack.c.l.b16 %v757
        %v791 = vunpack.c.l.b16 %v758
        %v792 = vunpack.c.l.b16 %v759
        %v793 = vunpack.c.l.b16 %v760
        %v794 = vunpack.c.l.b16 %v761
        %v795 = vunpack.c.l.b16 %v762
        %v796 = vpack.c.b16 %v781, %v780
        %v797 = vpack.c.b16 %v783, %v782
        %v798 = vpack.c.b16 %v785, %v784
        %v799 = vpack.c.b16 %v787, %v786
        %v800 = vpack.c.b16 %v789, %v788
        %v801 = vpack.c.b16 %v791, %v790
        %v802 = vpack.c.b16 %v793, %v792
        %v803 = vpack.c.b16 %v795, %v794
        %812 = vmatprep.subr.bf16.mxu0 0
        %813 = vmatpush1.bf16.msra.mxu0 %v796
        %814 = vmatprep.subr.bf16.mxu0 0
        %815 = vmatpush1.bf16.msra.mxu0 %v797
        %816 = vmatprep.subr.bf16.mxu0 0
        %817 = vmatpush1.bf16.msra.mxu0 %v798
        %818 = vmatprep.subr.bf16.mxu0 0
        %819 = vmatpush1.bf16.msra.mxu0 %v799
        %820 = vmatprep.subr.bf16.mxu0 0
        %821 = vmatpush1.bf16.msra.mxu0 %v800
        %822 = vmatprep.subr.bf16.mxu0 0
        %823 = vmatpush1.bf16.msra.mxu0 %v801
        %824 = vmatprep.subr.bf16.mxu0 0
        %825 = vmatpush1.bf16.msra.mxu0 %v802
        %826 = vmatprep.subr.bf16.mxu0 0
        %827 = vmatpush1.bf16.msra.mxu0 %v803
        %828 = vmatprep.subr.bf16.mxu0 0
        %829 = vmatpush1.bf16.msra.mxu0 0
        %830 = vmatprep.subr.bf16.mxu0 0
        %831 = vmatpush1.bf16.msra.mxu0 0
        %832 = vmatprep.subr.bf16.mxu0 0
        %833 = vmatpush1.bf16.msra.mxu0 0
        %834 = vmatprep.subr.bf16.mxu0 0
        %835 = vmatpush1.bf16.msra.mxu0 0
        %836 = vmatprep.subr.bf16.mxu0 0
        %837 = vmatpush1.bf16.msra.mxu0 0
        %838 = vmatprep.subr.bf16.mxu0 0
        %839 = vmatpush1.bf16.msra.mxu0 0
        %840 = vmatprep.subr.bf16.mxu0 0
        %841 = vmatpush1.bf16.msra.mxu0 0
        %842 = vmatprep.subr.bf16.mxu0 0
        %843 = vmatpush1.bf16.msra.mxu0 0
        %844 = vmatprep.mubr.bf16.mxu0 0
        %845 = vmatmul.mubr.bf16.gmra.mrb[0].mxu0 %v746
        %v846 = vpop.f32.mrb[0].mxu0
        %v847 = vadd.f32 %v763, %v846
        %v848 = vpop.f32.mrb[0].mxu0
        %v849 = vpop.f32.mrb[0].mxu0
        %v850 = vpop.f32.mrb[0].mxu0
        %851 = vdwg.mxu0
        %v852 = vld [vmem:[%s4] sm:$0x1]
        %v854 = vlaneseq
        %v855 = vshrl.u32 %v854, 7
        %v856 = vsub.s32 0, %v855
        %v857 = vrot.slane %v852, %v856
        %v859 = vadd.f32 %v847, %v857
        %v860 = vld [vmem:[%s5] sm:$0x1]
        %v861 = vld [vmem:[%s6] sm:$0x1]
        %vm862 = vcmask 261120
        %v863 = vsel %vm862, %v859, 0.0
        %864 = vadd.xlane.f32.xlu0 %v863
        %v865 = vpop.xlane.xlu0 %864
        %v866 = vrcp.pop 32.0
        %v867 = vmul.f32 %v865, %v866
        %v868 = vsub.f32 %v859, %v867
        %v869 = vmul.f32 %v868, %v868
        %v870 = vsel %vm862, %v869, 0.0
        %871 = vadd.xlane.f32.xlu0 %v870
        %v872 = vpop.xlane.xlu0 %871
        %v873 = vmul.f32 %v872, %v866
        %v874 = vadd.f32 %v873, 1e-12
        %v875 = vrsqrt.pop %v874
        %v876 = vmul.f32 %v868, %v875
        %v878 = vlaneseq
        %v879 = vshrl.u32 %v878, 7
        %v880 = vsub.s32 0, %v879
        %v881 = vrot.slane %v860, %v880
        %v883 = vmul.f32 %v876, %v881
        %v885 = vlaneseq
        %v886 = vshrl.u32 %v885, 7
        %v887 = vsub.s32 0, %v886
        %v888 = vrot.slane %v861, %v887
        %v890 = vadd.f32 %v883, %v888
        %v891 = vpack.c.bf16 %v890, %v890
        %v892 = vld [vmem:[%s7] sm:$0xf]
        %v893 = vld [vmem:[%s7 + $0x4] sm:$0xf]
        %v894 = vld [vmem:[%s7 + $0x8] sm:$0xf]
        %v895 = vld [vmem:[%s7 + $0xc] sm:$0xf]
        %v896 = vld [vmem:[%s8] sm:$0x1]
        %v898 = vlaneseq
        %v899 = vshrl.u32 %v898, 7
        %v900 = vsub.s32 0, %v899
        %v901 = vrot.slane %v896, %v900
        %v907 = vunpack.c.l.b16 %v892
        %v908 = vunpack.c.l.b16 %v893
        %v909 = vunpack.c.l.b16 %v894
        %v910 = vunpack.c.l.b16 %v895
        %v911 = vpack.c.b16 %v908, %v907
        %v912 = vpack.c.b16 %v910, %v909
        %v916 = vsel %vm862, %v891, 0
        %918 = vmatprep.subr.bf16.mxu0 0
        %919 = vmatpush1.bf16.msra.mxu0 %v911
        %920 = vmatprep.subr.bf16.mxu0 0
        %921 = vmatpush1.bf16.msra.mxu0 %v912
        %922 = vmatprep.subr.bf16.mxu0 0
        %923 = vmatpush1.bf16.msra.mxu0 0
        %924 = vmatprep.subr.bf16.mxu0 0
        %925 = vmatpush1.bf16.msra.mxu0 0
        %926 = vmatprep.subr.bf16.mxu0 0
        %927 = vmatpush1.bf16.msra.mxu0 0
        %928 = vmatprep.subr.bf16.mxu0 0
        %929 = vmatpush1.bf16.msra.mxu0 0
        %930 = vmatprep.subr.bf16.mxu0 0
        %931 = vmatpush1.bf16.msra.mxu0 0
        %932 = vmatprep.subr.bf16.mxu0 0
        %933 = vmatpush1.bf16.msra.mxu0 0
        %934 = vmatprep.subr.bf16.mxu0 0
        %935 = vmatpush1.bf16.msra.mxu0 0
        %936 = vmatprep.subr.bf16.mxu0 0
        %937 = vmatpush1.bf16.msra.mxu0 0
        %938 = vmatprep.subr.bf16.mxu0 0
        %939 = vmatpush1.bf16.msra.mxu0 0
        %940 = vmatprep.subr.bf16.mxu0 0
        %941 = vmatpush1.bf16.msra.mxu0 0
        %942 = vmatprep.subr.bf16.mxu0 0
        %943 = vmatpush1.bf16.msra.mxu0 0
        %944 = vmatprep.subr.bf16.mxu0 0
        %945 = vmatpush1.bf16.msra.mxu0 0
        %946 = vmatprep.subr.bf16.mxu0 0
        %947 = vmatpush1.bf16.msra.mxu0 0
        %948 = vmatprep.subr.bf16.mxu0 0
        %949 = vmatpush1.bf16.msra.mxu0 0
        %950 = vmatprep.mubr.bf16.mxu0 0
        %951 = vmatmul.mubr.bf16.gmra.mrb[0].mxu0 %v916
        %v952 = vpop.f32.mrb[0].mxu0
        %v953 = vadd.f32 %v901, %v952
        %v954 = vpop.f32.mrb[0].mxu0
        %v955 = vpop.f32.mrb[0].mxu0
        %v956 = vpop.f32.mrb[0].mxu0
        %957 = vdwg.mxu0
        %v958 = vpack.c.bf16 %v953, %v953
        %960 = vrot.lane.b32.xlu0 %v958, 96
        %v961 = vpop.permute.xlu0 %960
        %vm962 = vcmask 130048
        %v964 = vsel %vm962, %v958, 0
        %v967 = vsel %vm962, %v961, 0
        %969 = vmatprep.subr.bf16.mxu0 0
        %970 = vmatpush1.bf16.xpose.msra.mxu0 %v967
        %971 = vmatprep.subr.bf16.mxu0 0
        %972 = vmatpush1.bf16.xpose.msra.mxu0 0
        %973 = vmatprep.subr.bf16.mxu0 0
        %974 = vmatpush1.bf16.xpose.msra.mxu0 0
        %975 = vmatprep.subr.bf16.mxu0 0
        %976 = vmatpush1.bf16.xpose.msra.mxu0 0
        %977 = vmatprep.subr.bf16.mxu0 0
        %978 = vmatpush1.bf16.xpose.msra.mxu0 0
        %979 = vmatprep.subr.bf16.mxu0 0
        %980 = vmatpush1.bf16.xpose.msra.mxu0 0
        %981 = vmatprep.subr.bf16.mxu0 0
        %982 = vmatpush1.bf16.xpose.msra.mxu0 0
        %983 = vmatprep.subr.bf16.mxu0 0
        %984 = vmatpush1.bf16.xpose.msra.mxu0 0
        %985 = vmatprep.subr.bf16.mxu0 0
        %986 = vmatpush1.bf16.xpose.msra.mxu0 0
        %987 = vmatprep.subr.bf16.mxu0 0
        %988 = vmatpush1.bf16.xpose.msra.mxu0 0
        %989 = vmatprep.subr.bf16.mxu0 0
        %990 = vmatpush1.bf16.xpose.msra.mxu0 0
        %991 = vmatprep.subr.bf16.mxu0 0
        %992 = vmatpush1.bf16.xpose.msra.mxu0 0
        %993 = vmatprep.subr.bf16.mxu0 0
        %994 = vmatpush1.bf16.xpose.msra.mxu0 0
        %995 = vmatprep.subr.bf16.mxu0 0
        %996 = vmatpush1.bf16.xpose.msra.mxu0 0
        %997 = vmatprep.subr.bf16.mxu0 0
        %998 = vmatpush1.bf16.xpose.msra.mxu0 0
        %999 = vmatprep.subr.bf16.mxu0 0
        %1000 = vmatpush1.bf16.xpose.msra.mxu0 0
        %1001 = vmatprep.mubr.bf16.mxu0 0
        %1002 = vmatmul.mubr.bf16.gmra.mrb[0].mxu0 %v964
        %v1003 = vpop.f32.mrb[0].mxu0
        %v1004 = vadd.f32 0.0, %v1003
        %v1005 = vpop.f32.mrb[0].mxu0
        %v1006 = vpop.f32.mrb[0].mxu0
        %v1007 = vpop.f32.mrb[0].mxu0
        %1008 = vdwg.mxu0
        %v1009 = vmul.f32 %v1004, 0.25
        %vm1010 = vcmask 64512
        %v1011 = vsel %vm1010, %v1009, -inf
        %1012 = vmax.xlane.f32.xlu0 %v1011
        %v1013 = vpop.xlane.xlu0 %1012
        %v1014 = vsub.f32 %v1009, %v1013
        %v1015 = vmul.f32 %v1014, 1.442695
        %v1016 = vpow.pop %v1015
        %v1017 = vsel %vm1010, %v1016, 0.0
        %1018 = vadd.xlane.f32.xlu0 %v1017
        %v1019 = vpop.xlane.xlu0 %1018
        %v1020 = vrcp.pop %v1019
        %v1021 = vmul.f32 %v1016, %v1020
        %v1022 = vpack.c.bf16 %v1021, %v1021
        %1023 = vrot.lane.b32.xlu0 %v958, 64
        %v1024 = vpop.permute.xlu0 %1023
        %v1026 = vsel %vm1010, %v1022, 0
        %vm1028 = vcmask 1043456
        %v1030 = vsel %vm1028, %v1024, 0
        %1032 = vmatprep.subr.bf16.mxu0 0
        %1033 = vmatpush1.bf16.msra.mxu0 %v1030
        %1034 = vmatprep.subr.bf16.mxu0 0
        %1035 = vmatpush1.bf16.msra.mxu0 0
        %1036 = vmatprep.subr.bf16.mxu0 0
        %1037 = vmatpush1.bf16.msra.mxu0 0
        %1038 = vmatprep.subr.bf16.mxu0 0
        %1039 = vmatpush1.bf16.msra.mxu0 0
        %1040 = vmatprep.subr.bf16.mxu0 0
        %1041 = vmatpush1.bf16.msra.mxu0 0
        %1042 = vmatprep.subr.bf16.mxu0 0
        %1043 = vmatpush1.bf16.msra.mxu0 0
        %1044 = vmatprep.subr.bf16.mxu0 0
        %1045 = vmatpush1.bf16.msra.mxu0 0
        %1046 = vmatprep.subr.bf16.mxu0 0
        %1047 = vmatpush1.bf16.msra.mxu0 0
        %1048 = vmatprep.subr.bf16.mxu0 0
        %1049 = vmatpush1.bf16.msra.mxu0 0
        %1050 = vmatprep.subr.bf16.mxu0 0
        %1051 = vmatpush1.bf16.msra.mxu0 0
        %1052 = vmatprep.subr.bf16.mxu0 0
        %1053 = vmatpush1.bf16.msra.mxu0 0
        %1054 = vmatprep.subr.bf16.mxu0 0
        %1055 = vmatpush1.bf16.msra.mxu0 0
        %1056 = vmatprep.subr.bf16.mxu0 0
        %1057 = vmatpush1.bf16.msra.mxu0 0
        %1058 = vmatprep.subr.bf16.mxu0 0
        %1059 = vmatpush1.bf16.msra.mxu0 0
        %1060 = vmatprep.subr.bf16.mxu0 0
        %1061 = vmatpush1.bf16.msra.mxu0 0
        %1062 = vmatprep.subr.bf16.mxu0 0
        %1063 = vmatpush1.bf16.msra.mxu0 0
        %1064 = vmatprep.mubr.bf16.mxu0 0
        %1065 = vmatmul.mubr.bf16.gmra.mrb[0].mxu0 %v1026
        %v1066 = vpop.f32.mrb[0].mxu0
        %v1067 = vadd.f32 0.0, %v1066
        %v1068 = vpop.f32.mrb[0].mxu0
        %v1069 = vpop.f32.mrb[0].mxu0
        %v1070 = vpop.f32.mrb[0].mxu0
        %1071 = vdwg.mxu0
        %1072 = vrot.lane.b32.xlu0 %v958, 112
        %v1073 = vpop.permute.xlu0 %1072
        %1074 = vrot.lane.b32.xlu0 %v958, 80
        %v1075 = vpop.permute.xlu0 %1074
        %v1077 = vsel %vm962, %v1073, 0
        %v1080 = vsel %vm962, %v1075, 0
        %1082 = vmatprep.subr.bf16.mxu0 0
        %1083 = vmatpush1.bf16.xpose.msra.mxu0 %v1080
        %1084 = vmatprep.subr.bf16.mxu0 0
        %1085 = vmatpush1.bf16.xpose.msra.mxu0 0
        %1086 = vmatprep.subr.bf16.mxu0 0
        %1087 = vmatpush1.bf16.xpose.msra.mxu0 0
        %1088 = vmatprep.subr.bf16.mxu0 0
        %1089 = vmatpush1.bf16.xpose.msra.mxu0 0
        %1090 = vmatprep.subr.bf16.mxu0 0
        %1091 = vmatpush1.bf16.xpose.msra.mxu0 0
        %1092 = vmatprep.subr.bf16.mxu0 0
        %1093 = vmatpush1.bf16.xpose.msra.mxu0 0
        %1094 = vmatprep.subr.bf16.mxu0 0
        %1095 = vmatpush1.bf16.xpose.msra.mxu0 0
        %1096 = vmatprep.subr.bf16.mxu0 0
        %1097 = vmatpush1.bf16.xpose.msra.mxu0 0
        %1098 = vmatprep.subr.bf16.mxu0 0
        %1099 = vmatpush1.bf16.xpose.msra.mxu0 0
        %1100 = vmatprep.subr.bf16.mxu0 0
        %1101 = vmatpush1.bf16.xpose.msra.mxu0 0
        %1102 = vmatprep.subr.bf16.mxu0 0
        %1103 = vmatpush1.bf16.xpose.msra.mxu0 0
        %1104 = vmatprep.subr.bf16.mxu0 0
        %1105 = vmatpush1.bf16.xpose.msra.mxu0 0
        %1106 = vmatprep.subr.bf16.mxu0 0
        %1107 = vmatpush1.bf16.xpose.msra.mxu0 0
        %1108 = vmatprep.subr.bf16.mxu0 0
        %1109 = vmatpush1.bf16.xpose.msra.mxu0 0
        %1110 = vmatprep.subr.bf16.mxu0 0
        %1111 = vmatpush1.bf16.xpose.msra.mxu0 0
        %1112 = vmatprep.subr.bf16.mxu0 0
        %1113 = vmatpush1.bf16.xpose.msra.mxu0 0
        %1114 = vmatprep.mubr.bf16.mxu0 0
        %1115 = vmatmul.mubr.bf16.gmra.mrb[0].mxu0 %v1077
        %v1116 = vpop.f32.mrb[0].mxu0
        %v1117 = vadd.f32 0.0, %v1116
        %v1118 = vpop.f32.mrb[0].mxu0
        %v1119 = vpop.f32.mrb[0].mxu0
        %v1120 = vpop.f32.mrb[0].mxu0
        %1121 = vdwg.mxu0
        %v1122 = vmul.f32 %v1117, 0.25
        %v1123 = vsel %vm1010, %v1122, -inf
        %1124 = vmax.xlane.f32.xlu0 %v1123
        %v1125 = vpop.xlane.xlu0 %1124
        %v1126 = vsub.f32 %v1122, %v1125
        %v1127 = vmul.f32 %v1126, 1.442695
        %v1128 = vpow.pop %v1127
        %v1129 = vsel %vm1010, %v1128, 0.0
        %1130 = vadd.xlane.f32.xlu0 %v1129
        %v1131 = vpop.xlane.xlu0 %1130
        %v1132 = vrcp.pop %v1131
        %v1133 = vmul.f32 %v1128, %v1132
        %v1134 = vpack.c.bf16 %v1133, %v1133
        %1135 = vrot.lane.b32.xlu0 %v958, 48
        %v1136 = vpop.permute.xlu0 %1135
        %v1138 = vsel %vm1010, %v1134, 0
        %v1141 = vsel %vm1028, %v1136, 0
        %1143 = vmatprep.subr.bf16.mxu0 0
        %1144 = vmatpush1.bf16.msra.mxu0 %v1141
        %1145 = vmatprep.subr.bf16.mxu0 0
        %1146 = vmatpush1.bf16.msra.mxu0 0
        %1147 = vmatprep.subr.bf16.mxu0 0
        %1148 = vmatpush1.bf16.msra.mxu0 0
        %1149 = vmatprep.subr.bf16.mxu0 0
        %1150 = vmatpush1.bf16.msra.mxu0 0
        %1151 = vmatprep.subr.bf16.mxu0 0
        %1152 = vmatpush1.bf16.msra.mxu0 0
        %1153 = vmatprep.subr.bf16.mxu0 0
        %1154 = vmatpush1.bf16.msra.mxu0 0
        %1155 = vmatprep.subr.bf16.mxu0 0
        %1156 = vmatpush1.bf16.msra.mxu0 0
        %1157 = vmatprep.subr.bf16.mxu0 0
        %1158 = vmatpush1.bf16.msra.mxu0 0
        %1159 = vmatprep.subr.bf16.mxu0 0
        %1160 = vmatpush1.bf16.msra.mxu0 0
        %1161 = vmatprep.subr.bf16.mxu0 0
        %1162 = vmatpush1.bf16.msra.mxu0 0
        %1163 = vmatprep.subr.bf16.mxu0 0
        %1164 = vmatpush1.bf16.msra.mxu0 0
        %1165 = vmatprep.subr.bf16.mxu0 0
        %1166 = vmatpush1.bf16.msra.mxu0 0
        %1167 = vmatprep.subr.bf16.mxu0 0
        %1168 = vmatpush1.bf16.msra.mxu0 0
        %1169 = vmatprep.subr.bf16.mxu0 0
        %1170 = vmatpush1.bf16.msra.mxu0 0
        %1171 = vmatprep.subr.bf16.mxu0 0
        %1172 = vmatpush1.bf16.msra.mxu0 0
        %1173 = vmatprep.subr.bf16.mxu0 0
        %1174 = vmatpush1.bf16.msra.mxu0 0
        %1175 = vmatprep.mubr.bf16.mxu0 0
        %1176 = vmatmul.mubr.bf16.gmra.mrb[0].mxu0 %v1138
        %v1177 = vpop.f32.mrb[0].mxu0
        %v1178 = vadd.f32 0.0, %v1177
        %v1179 = vpop.f32.mrb[0].mxu0
        %v1180 = vpop.f32.mrb[0].mxu0
        %v1181 = vpop.f32.mrb[0].mxu0
        %1182 = vdwg.mxu0
        %1184 = vrot.lane.b32.xlu0 %v1178, 16
        %v1185 = vpop.permute.xlu0 %1184
        %v1187 = vsel %vm962, %v1067, %v1185
        %v1188 = vpack.c.bf16 %v1187, %v1187
        %v1189 = vld [vmem:[%s9] sm:$0xf]
        %v1190 = vld [vmem:[%s9 + $0x4] sm:$0xf]
        %v1191 = vld [vmem:[%s9 + $0x8] sm:$0xf]
        %v1192 = vld [vmem:[%s9 + $0xc] sm:$0xf]
        %v1193 = vld [vmem:[%s10] sm:$0x1]
        %v1195 = vlaneseq
        %v1196 = vshrl.u32 %v1195, 7
        %v1197 = vsub.s32 0, %v1196
        %v1198 = vrot.slane %v1193, %v1197
        %v1204 = vunpack.c.l.b16 %v1189
        %v1205 = vunpack.c.l.b16 %v1190
        %v1206 = vunpack.c.l.b16 %v1191
        %v1207 = vunpack.c.l.b16 %v1192
        %v1208 = vpack.c.b16 %v1205, %v1204
        %v1209 = vpack.c.b16 %v1207, %v1206
        %v1213 = vsel %vm862, %v1188, 0
        %1215 = vmatprep.subr.bf16.mxu0 0
        %1216 = vmatpush1.bf16.msra.mxu0 %v1208
        %1217 = vmatprep.subr.bf16.mxu0 0
        %1218 = vmatpush1.bf16.msra.mxu0 %v1209
        %1219 = vmatprep.subr.bf16.mxu0 0
        %1220 = vmatpush1.bf16.msra.mxu0 0
        %1221 = vmatprep.subr.bf16.mxu0 0
        %1222 = vmatpush1.bf16.msra.mxu0 0
        %1223 = vmatprep.subr.bf16.mxu0 0
        %1224 = vmatpush1.bf16.msra.mxu0 0
        %1225 = vmatprep.subr.bf16.mxu0 0
        %1226 = vmatpush1.bf16.msra.mxu0 0
        %1227 = vmatprep.subr.bf16.mxu0 0
        %1228 = vmatpush1.bf16.msra.mxu0 0
        %1229 = vmatprep.subr.bf16.mxu0 0
        %1230 = vmatpush1.bf16.msra.mxu0 0
        %1231 = vmatprep.subr.bf16.mxu0 0
        %1232 = vmatpush1.bf16.msra.mxu0 0
        %1233 = vmatprep.subr.bf16.mxu0 0
        %1234 = vmatpush1.bf16.msra.mxu0 0
        %1235 = vmatprep.subr.bf16.mxu0 0
        %1236 = vmatpush1.bf16.msra.mxu0 0
        %1237 = vmatprep.subr.bf16.mxu0 0
        %1238 = vmatpush1.bf16.msra.mxu0 0
        %1239 = vmatprep.subr.bf16.mxu0 0
        %1240 = vmatpush1.bf16.msra.mxu0 0
        %1241 = vmatprep.subr.bf16.mxu0 0
        %1242 = vmatpush1.bf16.msra.mxu0 0
        %1243 = vmatprep.subr.bf16.mxu0 0
        %1244 = vmatpush1.bf16.msra.mxu0 0
        %1245 = vmatprep.subr.bf16.mxu0 0
        %1246 = vmatpush1.bf16.msra.mxu0 0
        %1247 = vmatprep.mubr.bf16.mxu0 0
        %1248 = vmatmul.mubr.bf16.gmra.mrb[0].mxu0 %v1213
        %v1249 = vpop.f32.mrb[0].mxu0
        %v1250 = vadd.f32 %v1198, %v1249
        %v1251 = vpop.f32.mrb[0].mxu0
        %v1252 = vpop.f32.mrb[0].mxu0
        %v1253 = vpop.f32.mrb[0].mxu0
        %1254 = vdwg.mxu0
        %v1255 = vadd.f32 %v890, %v1250
        %v1256 = vld [vmem:[%s11] sm:$0x1]
        %v1257 = vld [vmem:[%s12] sm:$0x1]
        %v1258 = vsel %vm862, %v1255, 0.0
        %1259 = vadd.xlane.f32.xlu0 %v1258
        %v1260 = vpop.xlane.xlu0 %1259
        %v1261 = vmul.f32 %v1260, %v866
        %v1262 = vsub.f32 %v1255, %v1261
        %v1263 = vmul.f32 %v1262, %v1262
        %v1264 = vsel %vm862, %v1263, 0.0
        %1265 = vadd.xlane.f32.xlu0 %v1264
        %v1266 = vpop.xlane.xlu0 %1265
        %v1267 = vmul.f32 %v1266, %v866
        %v1268 = vadd.f32 %v1267, 1e-12
        %v1269 = vrsqrt.pop %v1268
        %v1270 = vmul.f32 %v1262, %v1269
        %v1272 = vlaneseq
        %v1273 = vshrl.u32 %v1272, 7
        %v1274 = vsub.s32 0, %v1273
        %v1275 = vrot.slane %v1256, %v1274
        %v1277 = vmul.f32 %v1270, %v1275
        %v1279 = vlaneseq
        %v1280 = vshrl.u32 %v1279, 7
        %v1281 = vsub.s32 0, %v1280
        %v1282 = vrot.slane %v1257, %v1281
        %v1284 = vadd.f32 %v1277, %v1282
        %v1285 = vpack.c.bf16 %v1284, %v1284
        %v1286 = vld [vmem:[%s13] sm:$0xf]
        %v1287 = vld [vmem:[%s13 + $0x4] sm:$0xf]
        %v1288 = vld [vmem:[%s13 + $0x8] sm:$0xf]
        %v1289 = vld [vmem:[%s13 + $0xc] sm:$0xf]
        %v1290 = vld [vmem:[%s14] sm:$0x1]
        %v1292 = vlaneseq
        %v1293 = vshrl.u32 %v1292, 7
        %v1294 = vsub.s32 0, %v1293
        %v1295 = vrot.slane %v1290, %v1294
        %v1301 = vunpack.c.l.b16 %v1286
        %v1302 = vunpack.c.l.b16 %v1287
        %v1303 = vunpack.c.l.b16 %v1288
        %v1304 = vunpack.c.l.b16 %v1289
        %v1305 = vpack.c.b16 %v1302, %v1301
        %v1306 = vpack.c.b16 %v1304, %v1303
        %v1310 = vsel %vm862, %v1285, 0
        %1312 = vmatprep.subr.bf16.mxu0 0
        %1313 = vmatpush1.bf16.msra.mxu0 %v1305
        %1314 = vmatprep.subr.bf16.mxu0 0
        %1315 = vmatpush1.bf16.msra.mxu0 %v1306
        %1316 = vmatprep.subr.bf16.mxu0 0
        %1317 = vmatpush1.bf16.msra.mxu0 0
        %1318 = vmatprep.subr.bf16.mxu0 0
        %1319 = vmatpush1.bf16.msra.mxu0 0
        %1320 = vmatprep.subr.bf16.mxu0 0
        %1321 = vmatpush1.bf16.msra.mxu0 0
        %1322 = vmatprep.subr.bf16.mxu0 0
        %1323 = vmatpush1.bf16.msra.mxu0 0
        %1324 = vmatprep.subr.bf16.mxu0 0
        %1325 = vmatpush1.bf16.msra.mxu0 0
        %1326 = vmatprep.subr.bf16.mxu0 0
        %1327 = vmatpush1.bf16.msra.mxu0 0
        %1328 = vmatprep.subr.bf16.mxu0 0
        %1329 = vmatpush1.bf16.msra.mxu0 0
        %1330 = vmatprep.subr.bf16.mxu0 0
        %1331 = vmatpush1.bf16.msra.mxu0 0
        %1332 = vmatprep.subr.bf16.mxu0 0
        %1333 = vmatpush1.bf16.msra.mxu0 0
        %1334 = vmatprep.subr.bf16.mxu0 0
        %1335 = vmatpush1.bf16.msra.mxu0 0
        %1336 = vmatprep.subr.bf16.mxu0 0
        %1337 = vmatpush1.bf16.msra.mxu0 0
        %1338 = vmatprep.subr.bf16.mxu0 0
        %1339 = vmatpush1.bf16.msra.mxu0 0
        %1340 = vmatprep.subr.bf16.mxu0 0
        %1341 = vmatpush1.bf16.msra.mxu0 0
        %1342 = vmatprep.subr.bf16.mxu0 0
        %1343 = vmatpush1.bf16.msra.mxu0 0
        %1344 = vmatprep.mubr.bf16.mxu0 0
        %1345 = vmatmul.mubr.bf16.gmra.mrb[0].mxu0 %v1310
        %v1346 = vpop.f32.mrb[0].mxu0
        %v1347 = vadd.f32 %v1295, %v1346
        %v1348 = vpop.f32.mrb[0].mxu0
        %v1349 = vpop.f32.mrb[0].mxu0
        %v1350 = vpop.f32.mrb[0].mxu0
        %1351 = vdwg.mxu0
        %v1352 = vmul.f32 %v1347, %v1347
        %v1353 = vmul.f32 %v1347, %v1352
        %v1354 = vmul.f32 %v1353, 0.044715
        %v1355 = vadd.f32 %v1347, %v1354
        %v1356 = vmul.f32 %v1355, 0.7978846
        %v1357 = vtanh.pop %v1356
        %v1358 = vadd.f32 %v1357, 1.0
        %v1359 = vmul.f32 %v1358, 0.5
        %v1360 = vmul.f32 %v1347, %v1359
        %v1361 = vpack.c.bf16 %v1360, %v1360
        %v1362 = vld [vmem:[%s15] sm:$0xf]
        %v1363 = vld [vmem:[%s15 + $0x4] sm:$0xf]
        %v1364 = vld [vmem:[%s15 + $0x8] sm:$0xf]
        %v1365 = vld [vmem:[%s15 + $0xc] sm:$0xf]
        %v1366 = vld [vmem:[%s15 + $0x10] sm:$0xf]
        %v1367 = vld [vmem:[%s15 + $0x14] sm:$0xf]
        %v1368 = vld [vmem:[%s15 + $0x18] sm:$0xf]
        %v1369 = vld [vmem:[%s15 + $0x1c] sm:$0xf]
        %v1370 = vld [vmem:[%s16] sm:$0x1]
        %v1372 = vlaneseq
        %v1373 = vshrl.u32 %v1372, 7
        %v1374 = vsub.s32 0, %v1373
        %v1375 = vrot.slane %v1370, %v1374
        %v1385 = vunpack.c.l.b16 %v1362
        %v1386 = vunpack.c.l.b16 %v1363
        %v1387 = vunpack.c.l.b16 %v1364
        %v1388 = vunpack.c.l.b16 %v1365
        %v1389 = vunpack.c.l.b16 %v1366
        %v1390 = vunpack.c.l.b16 %v1367
        %v1391 = vunpack.c.l.b16 %v1368
        %v1392 = vunpack.c.l.b16 %v1369
        %v1393 = vpack.c.b16 %v1386, %v1385
        %v1394 = vpack.c.b16 %v1388, %v1387
        %v1395 = vpack.c.b16 %v1390, %v1389
        %v1396 = vpack.c.b16 %v1392, %v1391
        %vm1401 = vcmask 523264
        %v1403 = vsel %vm1401, %v1361, 0
        %1405 = vmatprep.subr.bf16.mxu0 0
        %1406 = vmatpush1.bf16.msra.mxu0 %v1393
        %1407 = vmatprep.subr.bf16.mxu0 0
        %1408 = vmatpush1.bf16.msra.mxu0 %v1394
        %1409 = vmatprep.subr.bf16.mxu0 0
        %1410 = vmatpush1.bf16.msra.mxu0 %v1395
        %1411 = vmatprep.subr.bf16.mxu0 0
        %1412 = vmatpush1.bf16.msra.mxu0 %v1396
        %1413 = vmatprep.subr.bf16.mxu0 0
        %1414 = vmatpush1.bf16.msra.mxu0 0
        %1415 = vmatprep.subr.bf16.mxu0 0
        %1416 = vmatpush1.bf16.msra.mxu0 0
        %1417 = vmatprep.subr.bf16.mxu0 0
        %1418 = vmatpush1.bf16.msra.mxu0 0
        %1419 = vmatprep.subr.bf16.mxu0 0
        %1420 = vmatpush1.bf16.msra.mxu0 0
        %1421 = vmatprep.subr.bf16.mxu0 0
        %1422 = vmatpush1.bf16.msra.mxu0 0
        %1423 = vmatprep.subr.bf16.mxu0 0
        %1424 = vmatpush1.bf16.msra.mxu0 0
        %1425 = vmatprep.subr.bf16.mxu0 0
        %1426 = vmatpush1.bf16.msra.mxu0 0
        %1427 = vmatprep.subr.bf16.mxu0 0
        %1428 = vmatpush1.bf16.msra.mxu0 0
        %1429 = vmatprep.subr.bf16.mxu0 0
        %1430 = vmatpush1.bf16.msra.mxu0 0
        %1431 = vmatprep.subr.bf16.mxu0 0
        %1432 = vmatpush1.bf16.msra.mxu0 0
        %1433 = vmatprep.subr.bf16.mxu0 0
        %1434 = vmatpush1.bf16.msra.mxu0 0
        %1435 = vmatprep.subr.bf16.mxu0 0
        %1436 = vmatpush1.bf16.msra.mxu0 0
        %1437 = vmatprep.mubr.bf16.mxu0 0
        %1438 = vmatmul.mubr.bf16.gmra.mrb[0].mxu0 %v1403
        %v1439 = vpop.f32.mrb[0].mxu0
        %v1440 = vadd.f32 %v1375, %v1439
        %v1441 = vpop.f32.mrb[0].mxu0
        %v1442 = vpop.f32.mrb[0].mxu0
        %v1443 = vpop.f32.mrb[0].mxu0
        %1444 = vdwg.mxu0
        %v1445 = vadd.f32 %v1284, %v1440
        %v1446 = vld [vmem:[%s17] sm:$0x1]
        %v1447 = vld [vmem:[%s18] sm:$0x1]
        %v1448 = vsel %vm862, %v1445, 0.0
        %1449 = vadd.xlane.f32.xlu0 %v1448
        %v1450 = vpop.xlane.xlu0 %1449
        %v1451 = vmul.f32 %v1450, %v866
        %v1452 = vsub.f32 %v1445, %v1451
        %v1453 = vmul.f32 %v1452, %v1452
        %v1454 = vsel %vm862, %v1453, 0.0
        %1455 = vadd.xlane.f32.xlu0 %v1454
        %v1456 = vpop.xlane.xlu0 %1455
        %v1457 = vmul.f32 %v1456, %v866
        %v1458 = vadd.f32 %v1457, 1e-12
        %v1459 = vrsqrt.pop %v1458
        %v1460 = vmul.f32 %v1452, %v1459
        %v1462 = vlaneseq
        %v1463 = vshrl.u32 %v1462, 7
        %v1464 = vsub.s32 0, %v1463
        %v1465 = vrot.slane %v1446, %v1464
        %v1467 = vmul.f32 %v1460, %v1465
        %v1469 = vlaneseq
        %v1470 = vshrl.u32 %v1469, 7
        %v1471 = vsub.s32 0, %v1470
        %v1472 = vrot.slane %v1447, %v1471
        %v1474 = vadd.f32 %v1467, %v1472
        %v1475 = vpack.c.bf16 %v1474, %v1474
        %s1476 = scalar_lea.vmem %s7, 16
        %v1477 = vld [vmem:[%s1476] sm:$0xf]
        %v1478 = vld [vmem:[%s1476 + $0x4] sm:$0xf]
        %v1479 = vld [vmem:[%s1476 + $0x8] sm:$0xf]
        %v1480 = vld [vmem:[%s1476 + $0xc] sm:$0xf]
        %s1481 = scalar_lea.vmem %s8, 1
        %v1482 = vld [vmem:[%s1481] sm:$0x1]
        %v1484 = vlaneseq
        %v1485 = vshrl.u32 %v1484, 7
        %v1486 = vsub.s32 0, %v1485
        %v1487 = vrot.slane %v1482, %v1486
        %v1493 = vunpack.c.l.b16 %v1477
        %v1494 = vunpack.c.l.b16 %v1478
        %v1495 = vunpack.c.l.b16 %v1479
        %v1496 = vunpack.c.l.b16 %v1480
        %v1497 = vpack.c.b16 %v1494, %v1493
        %v1498 = vpack.c.b16 %v1496, %v1495
        %v1502 = vsel %vm862, %v1475, 0
        %1504 = vmatprep.subr.bf16.mxu0 0
        %1505 = vmatpush1.bf16.msra.mxu0 %v1497
        %1506 = vmatprep.subr.bf16.mxu0 0
        %1507 = vmatpush1.bf16.msra.mxu0 %v1498
        %1508 = vmatprep.subr.bf16.mxu0 0
        %1509 = vmatpush1.bf16.msra.mxu0 0
        %1510 = vmatprep.subr.bf16.mxu0 0
        %1511 = vmatpush1.bf16.msra.mxu0 0
        %1512 = vmatprep.subr.bf16.mxu0 0
        %1513 = vmatpush1.bf16.msra.mxu0 0
        %1514 = vmatprep.subr.bf16.mxu0 0
        %1515 = vmatpush1.bf16.msra.mxu0 0
        %1516 = vmatprep.subr.bf16.mxu0 0
        %1517 = vmatpush1.bf16.msra.mxu0 0
        %1518 = vmatprep.subr.bf16.mxu0 0
        %1519 = vmatpush1.bf16.msra.mxu0 0
        %1520 = vmatprep.subr.bf16.mxu0 0
        %1521 = vmatpush1.bf16.msra.mxu0 0
        %1522 = vmatprep.subr.bf16.mxu0 0
        %1523 = vmatpush1.bf16.msra.mxu0 0
        %1524 = vmatprep.subr.bf16.mxu0 0
        %1525 = vmatpush1.bf16.msra.mxu0 0
        %1526 = vmatprep.subr.bf16.mxu0 0
        %1527 = vmatpush1.bf16.msra.mxu0 0
        %1528 = vmatprep.subr.bf16.mxu0 0
        %1529 = vmatpush1.bf16.msra.mxu0 0
        %1530 = vmatprep.subr.bf16.mxu0 0
        %1531 = vmatpush1.bf16.msra.mxu0 0
        %1532 = vmatprep.subr.bf16.mxu0 0
        %1533 = vmatpush1.bf16.msra.mxu0 0
        %1534 = vmatprep.subr.bf16.mxu0 0
        %1535 = vmatpush1.bf16.msra.mxu0 0
        %1536 = vmatprep.mubr.bf16.mxu0 0
        %1537 = vmatmul.mubr.bf16.gmra.mrb[0].mxu0 %v1502
        %v1538 = vpop.f32.mrb[0].mxu0
        %v1539 = vadd.f32 %v1487, %v1538
        %v1540 = vpop.f32.mrb[0].mxu0
        %v1541 = vpop.f32.mrb[0].mxu0
        %v1542 = vpop.f32.mrb[0].mxu0
        %1543 = vdwg.mxu0
        %v1544 = vpack.c.bf16 %v1539, %v1539
        %1546 = vrot.lane.b32.xlu0 %v1544, 96
        %v1547 = vpop.permute.xlu0 %1546
        %v1549 = vsel %vm962, %v1544, 0
        %v1552 = vsel %vm962, %v1547, 0
        %1554 = vmatprep.subr.bf16.mxu0 0
        %1555 = vmatpush1.bf16.xpose.msra.mxu0 %v1552
        %1556 = vmatprep.subr.bf16.mxu0 0
        %1557 = vmatpush1.bf16.xpose.msra.mxu0 0
        %1558 = vmatprep.subr.bf16.mxu0 0
        %1559 = vmatpush1.bf16.xpose.msra.mxu0 0
        %1560 = vmatprep.subr.bf16.mxu0 0
        %1561 = vmatpush1.bf16.xpose.msra.mxu0 0
        %1562 = vmatprep.subr.bf16.mxu0 0
        %1563 = vmatpush1.bf16.xpose.msra.mxu0 0
        %1564 = vmatprep.subr.bf16.mxu0 0
        %1565 = vmatpush1.bf16.xpose.msra.mxu0 0
        %1566 = vmatprep.subr.bf16.mxu0 0
        %1567 = vmatpush1.bf16.xpose.msra.mxu0 0
        %1568 = vmatprep.subr.bf16.mxu0 0
        %1569 = vmatpush1.bf16.xpose.msra.mxu0 0
        %1570 = vmatprep.subr.bf16.mxu0 0
        %1571 = vmatpush1.bf16.xpose.msra.mxu0 0
        %1572 = vmatprep.subr.bf16.mxu0 0
        %1573 = vmatpush1.bf16.xpose.msra.mxu0 0
        %1574 = vmatprep.subr.bf16.mxu0 0
        %1575 = vmatpush1.bf16.xpose.msra.mxu0 0
        %1576 = vmatprep.subr.bf16.mxu0 0
        %1577 = vmatpush1.bf16.xpose.msra.mxu0 0
        %1578 = vmatprep.subr.bf16.mxu0 0
        %1579 = vmatpush1.bf16.xpose.msra.mxu0 0
        %1580 = vmatprep.subr.bf16.mxu0 0
        %1581 = vmatpush1.bf16.xpose.msra.mxu0 0
        %1582 = vmatprep.subr.bf16.mxu0 0
        %1583 = vmatpush1.bf16.xpose.msra.mxu0 0
        %1584 = vmatprep.subr.bf16.mxu0 0
        %1585 = vmatpush1.bf16.xpose.msra.mxu0 0
        %1586 = vmatprep.mubr.bf16.mxu0 0
        %1587 = vmatmul.mubr.bf16.gmra.mrb[0].mxu0 %v1549
        %v1588 = vpop.f32.mrb[0].mxu0
        %v1589 = vadd.f32 0.0, %v1588
        %v1590 = vpop.f32.mrb[0].mxu0
        %v1591 = vpop.f32.mrb[0].mxu0
        %v1592 = vpop.f32.mrb[0].mxu0
        %1593 = vdwg.mxu0
        %v1594 = vmul.f32 %v1589, 0.25
        %v1595 = vsel %vm1010, %v1594, -inf
        %1596 = vmax.xlane.f32.xlu0 %v1595
        %v1597 = vpop.xlane.xlu0 %1596
        %v1598 = vsub.f32 %v1594, %v1597
        %v1599 = vmul.f32 %v1598, 1.442695
        %v1600 = vpow.pop %v1599
        %v1601 = vsel %vm1010, %v1600, 0.0
        %1602 = vadd.xlane.f32.xlu0 %v1601
        %v1603 = vpop.xlane.xlu0 %1602
        %v1604 = vrcp.pop %v1603
        %v1605 = vmul.f32 %v1600, %v1604
        %v1606 = vpack.c.bf16 %v1605, %v1605
        %1607 = vrot.lane.b32.xlu0 %v1544, 64
        %v1608 = vpop.permute.xlu0 %1607
        %v1610 = vsel %vm1010, %v1606, 0
        %v1613 = vsel %vm1028, %v1608, 0
        %1615 = vmatprep.subr.bf16.mxu0 0
        %1616 = vmatpush1.bf16.msra.mxu0 %v1613
        %1617 = vmatprep.subr.bf16.mxu0 0
        %1618 = vmatpush1.bf16.msra.mxu0 0
        %1619 = vmatprep.subr.bf16.mxu0 0
        %1620 = vmatpush1.bf16.msra.mxu0 0
        %1621 = vmatprep.subr.bf16.mxu0 0
        %1622 = vmatpush1.bf16.msra.mxu0 0
        %1623 = vmatprep.subr.bf16.mxu0 0
        %1624 = vmatpush1.bf16.msra.mxu0 0
        %1625 = vmatprep.subr.bf16.mxu0 0
        %1626 = vmatpush1.bf16.msra.mxu0 0
        %1627 = vmatprep.subr.bf16.mxu0 0
        %1628 = vmatpush1.bf16.msra.mxu0 0
        %1629 = vmatprep.subr.bf16.mxu0 0
        %1630 = vmatpush1.bf16.msra.mxu0 0
        %1631 = vmatprep.subr.bf16.mxu0 0
        %1632 = vmatpush1.bf16.msra.mxu0 0
        %1633 = vmatprep.subr.bf16.mxu0 0
        %1634 = vmatpush1.bf16.msra.mxu0 0
        %1635 = vmatprep.subr.bf16.mxu0 0
        %1636 = vmatpush1.bf16.msra.mxu0 0
        %1637 = vmatprep.subr.bf16.mxu0 0
        %1638 = vmatpush1.bf16.msra.mxu0 0
        %1639 = vmatprep.subr.bf16.mxu0 0
        %1640 = vmatpush1.bf16.msra.mxu0 0
        %1641 = vmatprep.subr.bf16.mxu0 0
        %1642 = vmatpush1.bf16.msra.mxu0 0
        %1643 = vmatprep.subr.bf16.mxu0 0
        %1644 = vmatpush1.bf16.msra.mxu0 0
        %1645 = vmatprep.subr.bf16.mxu0 0
        %1646 = vmatpush1.bf16.msra.mxu0 0
        %1647 = vmatprep.mubr.bf16.mxu0 0
        %1648 = vmatmul.mubr.bf16.gmra.mrb[0].mxu0 %v1610
        %v1649 = vpop.f32.mrb[0].mxu0
        %v1650 = vadd.f32 0.0, %v1649
        %v1651 = vpop.f32.mrb[0].mxu0
        %v1652 = vpop.f32.mrb[0].mxu0
        %v1653 = vpop.f32.mrb[0].mxu0
        %1654 = vdwg.mxu0
        %1655 = vrot.lane.b32.xlu0 %v1544, 112
        %v1656 = vpop.permute.xlu0 %1655
        %1657 = vrot.lane.b32.xlu0 %v1544, 80
        %v1658 = vpop.permute.xlu0 %1657
        %v1660 = vsel %vm962, %v1656, 0
        %v1663 = vsel %vm962, %v1658, 0
        %1665 = vmatprep.subr.bf16.mxu0 0
        %1666 = vmatpush1.bf16.xpose.msra.mxu0 %v1663
        %1667 = vmatprep.subr.bf16.mxu0 0
        %1668 = vmatpush1.bf16.xpose.msra.mxu0 0
        %1669 = vmatprep.subr.bf16.mxu0 0
        %1670 = vmatpush1.bf16.xpose.msra.mxu0 0
        %1671 = vmatprep.subr.bf16.mxu0 0
        %1672 = vmatpush1.bf16.xpose.msra.mxu0 0
        %1673 = vmatprep.subr.bf16.mxu0 0
        %1674 = vmatpush1.bf16.xpose.msra.mxu0 0
        %1675 = vmatprep.subr.bf16.mxu0 0
        %1676 = vmatpush1.bf16.xpose.msra.mxu0 0
        %1677 = vmatprep.subr.bf16.mxu0 0
        %1678 = vmatpush1.bf16.xpose.msra.mxu0 0
        %1679 = vmatprep.subr.bf16.mxu0 0
        %1680 = vmatpush1.bf16.xpose.msra.mxu0 0
        %1681 = vmatprep.subr.bf16.mxu0 0
        %1682 = vmatpush1.bf16.xpose.msra.mxu0 0
        %1683 = vmatprep.subr.bf16.mxu0 0
        %1684 = vmatpush1.bf16.xpose.msra.mxu0 0
        %1685 = vmatprep.subr.bf16.mxu0 0
        %1686 = vmatpush1.bf16.xpose.msra.mxu0 0
        %1687 = vmatprep.subr.bf16.mxu0 0
        %1688 = vmatpush1.bf16.xpose.msra.mxu0 0
        %1689 = vmatprep.subr.bf16.mxu0 0
        %1690 = vmatpush1.bf16.xpose.msra.mxu0 0
        %1691 = vmatprep.subr.bf16.mxu0 0
        %1692 = vmatpush1.bf16.xpose.msra.mxu0 0
        %1693 = vmatprep.subr.bf16.mxu0 0
        %1694 = vmatpush1.bf16.xpose.msra.mxu0 0
        %1695 = vmatprep.subr.bf16.mxu0 0
        %1696 = vmatpush1.bf16.xpose.msra.mxu0 0
        %1697 = vmatprep.mubr.bf16.mxu0 0
        %1698 = vmatmul.mubr.bf16.gmra.mrb[0].mxu0 %v1660
        %v1699 = vpop.f32.mrb[0].mxu0
        %v1700 = vadd.f32 0.0, %v1699
        %v1701 = vpop.f32.mrb[0].mxu0
        %v1702 = vpop.f32.mrb[0].mxu0
        %v1703 = vpop.f32.mrb[0].mxu0
        %1704 = vdwg.mxu0
        %v1705 = vmul.f32 %v1700, 0.25
        %v1706 = vsel %vm1010, %v1705, -inf
        %1707 = vmax.xlane.f32.xlu0 %v1706
        %v1708 = vpop.xlane.xlu0 %1707
        %v1709 = vsub.f32 %v1705, %v1708
        %v1710 = vmul.f32 %v1709, 1.442695
        %v1711 = vpow.pop %v1710
        %v1712 = vsel %vm1010, %v1711, 0.0
        %1713 = vadd.xlane.f32.xlu0 %v1712
        %v1714 = vpop.xlane.xlu0 %1713
        %v1715 = vrcp.pop %v1714
        %v1716 = vmul.f32 %v1711, %v1715
        %v1717 = vpack.c.bf16 %v1716, %v1716
        %1718 = vrot.lane.b32.xlu0 %v1544, 48
        %v1719 = vpop.permute.xlu0 %1718
        %v1721 = vsel %vm1010, %v1717, 0
        %v1724 = vsel %vm1028, %v1719, 0
        %1726 = vmatprep.subr.bf16.mxu0 0
        %1727 = vmatpush1.bf16.msra.mxu0 %v1724
        %1728 = vmatprep.subr.bf16.mxu0 0
        %1729 = vmatpush1.bf16.msra.mxu0 0
        %1730 = vmatprep.subr.bf16.mxu0 0
        %1731 = vmatpush1.bf16.msra.mxu0 0
        %1732 = vmatprep.subr.bf16.mxu0 0
        %1733 = vmatpush1.bf16.msra.mxu0 0
        %1734 = vmatprep.subr.bf16.mxu0 0
        %1735 = vmatpush1.bf16.msra.mxu0 0
        %1736 = vmatprep.subr.bf16.mxu0 0
        %1737 = vmatpush1.bf16.msra.mxu0 0
        %1738 = vmatprep.subr.bf16.mxu0 0
        %1739 = vmatpush1.bf16.msra.mxu0 0
        %1740 = vmatprep.subr.bf16.mxu0 0
        %1741 = vmatpush1.bf16.msra.mxu0 0
        %1742 = vmatprep.subr.bf16.mxu0 0
        %1743 = vmatpush1.bf16.msra.mxu0 0
        %1744 = vmatprep.subr.bf16.mxu0 0
        %1745 = vmatpush1.bf16.msra.mxu0 0
        %1746 = vmatprep.subr.bf16.mxu0 0
        %1747 = vmatpush1.bf16.msra.mxu0 0
        %1748 = vmatprep.subr.bf16.mxu0 0
        %1749 = vmatpush1.bf16.msra.mxu0 0
        %1750 = vmatprep.subr.bf16.mxu0 0
        %1751 = vmatpush1.bf16.msra.mxu0 0
        %1752 = vmatprep.subr.bf16.mxu0 0
        %1753 = vmatpush1.bf16.msra.mxu0 0
        %1754 = vmatprep.subr.bf16.mxu0 0
        %1755 = vmatpush1.bf16.msra.mxu0 0
        %1756 = vmatprep.subr.bf16.mxu0 0
        %1757 = vmatpush1.bf16.msra.mxu0 0
        %1758 = vmatprep.mubr.bf16.mxu0 0
        %1759 = vmatmul.mubr.bf16.gmra.mrb[0].mxu0 %v1721
        %v1760 = vpop.f32.mrb[0].mxu0
        %v1761 = vadd.f32 0.0, %v1760
        %v1762 = vpop.f32.mrb[0].mxu0
        %v1763 = vpop.f32.mrb[0].mxu0
        %v1764 = vpop.f32.mrb[0].mxu0
        %1765 = vdwg.mxu0
        %1767 = vrot.lane.b32.xlu0 %v1761, 16
        %v1768 = vpop.permute.xlu0 %1767
        %v1770 = vsel %vm962, %v1650, %v1768
        %v1771 = vpack.c.bf16 %v1770, %v1770
        %s1772 = scalar_lea.vmem %s9, 16
        %v1773 = vld [vmem:[%s1772] sm:$0xf]
        %v1774 = vld [vmem:[%s1772 + $0x4] sm:$0xf]
        %v1775 = vld [vmem:[%s1772 + $0x8] sm:$0xf]
        %v1776 = vld [vmem:[%s1772 + $0xc] sm:$0xf]
        %s1777 = scalar_lea.vmem %s10, 1
        %v1778 = vld [vmem:[%s1777] sm:$0x1]
        %v1780 = vlaneseq
        %v1781 = vshrl.u32 %v1780, 7
        %v1782 = vsub.s32 0, %v1781
        %v1783 = vrot.slane %v1778, %v1782
        %v1789 = vunpack.c.l.b16 %v1773
        %v1790 = vunpack.c.l.b16 %v1774
        %v1791 = vunpack.c.l.b16 %v1775
        %v1792 = vunpack.c.l.b16 %v1776
        %v1793 = vpack.c.b16 %v1790, %v1789
        %v1794 = vpack.c.b16 %v1792, %v1791
        %v1798 = vsel %vm862, %v1771, 0
        %1800 = vmatprep.subr.bf16.mxu0 0
        %1801 = vmatpush1.bf16.msra.mxu0 %v1793
        %1802 = vmatprep.subr.bf16.mxu0 0
        %1803 = vmatpush1.bf16.msra.mxu0 %v1794
        %1804 = vmatprep.subr.bf16.mxu0 0
        %1805 = vmatpush1.bf16.msra.mxu0 0
        %1806 = vmatprep.subr.bf16.mxu0 0
        %1807 = vmatpush1.bf16.msra.mxu0 0
        %1808 = vmatprep.subr.bf16.mxu0 0
        %1809 = vmatpush1.bf16.msra.mxu0 0
        %1810 = vmatprep.subr.bf16.mxu0 0
        %1811 = vmatpush1.bf16.msra.mxu0 0
        %1812 = vmatprep.subr.bf16.mxu0 0
        %1813 = vmatpush1.bf16.msra.mxu0 0
        %1814 = vmatprep.subr.bf16.mxu0 0
        %1815 = vmatpush1.bf16.msra.mxu0 0
        %1816 = vmatprep.subr.bf16.mxu0 0
        %1817 = vmatpush1.bf16.msra.mxu0 0
        %1818 = vmatprep.subr.bf16.mxu0 0
        %1819 = vmatpush1.bf16.msra.mxu0 0
        %1820 = vmatprep.subr.bf16.mxu0 0
        %1821 = vmatpush1.bf16.msra.mxu0 0
        %1822 = vmatprep.subr.bf16.mxu0 0
        %1823 = vmatpush1.bf16.msra.mxu0 0
        %1824 = vmatprep.subr.bf16.mxu0 0
        %1825 = vmatpush1.bf16.msra.mxu0 0
        %1826 = vmatprep.subr.bf16.mxu0 0
        %1827 = vmatpush1.bf16.msra.mxu0 0
        %1828 = vmatprep.subr.bf16.mxu0 0
        %1829 = vmatpush1.bf16.msra.mxu0 0
        %1830 = vmatprep.subr.bf16.mxu0 0
        %1831 = vmatpush1.bf16.msra.mxu0 0
        %1832 = vmatprep.mubr.bf16.mxu0 0
        %1833 = vmatmul.mubr.bf16.gmra.mrb[0].mxu0 %v1798
        %v1834 = vpop.f32.mrb[0].mxu0
        %v1835 = vadd.f32 %v1783, %v1834
        %v1836 = vpop.f32.mrb[0].mxu0
        %v1837 = vpop.f32.mrb[0].mxu0
        %v1838 = vpop.f32.mrb[0].mxu0
        %1839 = vdwg.mxu0
        %v1840 = vadd.f32 %v1474, %v1835
        %s1841 = scalar_lea.vmem %s11, 1
        %v1842 = vld [vmem:[%s1841] sm:$0x1]
        %s1843 = scalar_lea.vmem %s12, 1
        %v1844 = vld [vmem:[%s1843] sm:$0x1]
        %v1845 = vsel %vm862, %v1840, 0.0
        %1846 = vadd.xlane.f32.xlu0 %v1845
        %v1847 = vpop.xlane.xlu0 %1846
        %v1848 = vmul.f32 %v1847, %v866
        %v1849 = vsub.f32 %v1840, %v1848
        %v1850 = vmul.f32 %v1849, %v1849
        %v1851 = vsel %vm862, %v1850, 0.0
        %1852 = vadd.xlane.f32.xlu0 %v1851
        %v1853 = vpop.xlane.xlu0 %1852
        %v1854 = vmul.f32 %v1853, %v866
        %v1855 = vadd.f32 %v1854, 1e-12
        %v1856 = vrsqrt.pop %v1855
        %v1857 = vmul.f32 %v1849, %v1856
        %v1859 = vlaneseq
        %v1860 = vshrl.u32 %v1859, 7
        %v1861 = vsub.s32 0, %v1860
        %v1862 = vrot.slane %v1842, %v1861
        %v1864 = vmul.f32 %v1857, %v1862
        %v1866 = vlaneseq
        %v1867 = vshrl.u32 %v1866, 7
        %v1868 = vsub.s32 0, %v1867
        %v1869 = vrot.slane %v1844, %v1868
        %v1871 = vadd.f32 %v1864, %v1869
        %v1872 = vpack.c.bf16 %v1871, %v1871
        %s1873 = scalar_lea.vmem %s13, 16
        %v1874 = vld [vmem:[%s1873] sm:$0xf]
        %v1875 = vld [vmem:[%s1873 + $0x4] sm:$0xf]
        %v1876 = vld [vmem:[%s1873 + $0x8] sm:$0xf]
        %v1877 = vld [vmem:[%s1873 + $0xc] sm:$0xf]
        %s1878 = scalar_lea.vmem %s14, 1
        %v1879 = vld [vmem:[%s1878] sm:$0x1]
        %v1881 = vlaneseq
        %v1882 = vshrl.u32 %v1881, 7
        %v1883 = vsub.s32 0, %v1882
        %v1884 = vrot.slane %v1879, %v1883
        %v1890 = vunpack.c.l.b16 %v1874
        %v1891 = vunpack.c.l.b16 %v1875
        %v1892 = vunpack.c.l.b16 %v1876
        %v1893 = vunpack.c.l.b16 %v1877
        %v1894 = vpack.c.b16 %v1891, %v1890
        %v1895 = vpack.c.b16 %v1893, %v1892
        %v1899 = vsel %vm862, %v1872, 0
        %1901 = vmatprep.subr.bf16.mxu0 0
        %1902 = vmatpush1.bf16.msra.mxu0 %v1894
        %1903 = vmatprep.subr.bf16.mxu0 0
        %1904 = vmatpush1.bf16.msra.mxu0 %v1895
        %1905 = vmatprep.subr.bf16.mxu0 0
        %1906 = vmatpush1.bf16.msra.mxu0 0
        %1907 = vmatprep.subr.bf16.mxu0 0
        %1908 = vmatpush1.bf16.msra.mxu0 0
        %1909 = vmatprep.subr.bf16.mxu0 0
        %1910 = vmatpush1.bf16.msra.mxu0 0
        %1911 = vmatprep.subr.bf16.mxu0 0
        %1912 = vmatpush1.bf16.msra.mxu0 0
        %1913 = vmatprep.subr.bf16.mxu0 0
        %1914 = vmatpush1.bf16.msra.mxu0 0
        %1915 = vmatprep.subr.bf16.mxu0 0
        %1916 = vmatpush1.bf16.msra.mxu0 0
        %1917 = vmatprep.subr.bf16.mxu0 0
        %1918 = vmatpush1.bf16.msra.mxu0 0
        %1919 = vmatprep.subr.bf16.mxu0 0
        %1920 = vmatpush1.bf16.msra.mxu0 0
        %1921 = vmatprep.subr.bf16.mxu0 0
        %1922 = vmatpush1.bf16.msra.mxu0 0
        %1923 = vmatprep.subr.bf16.mxu0 0
        %1924 = vmatpush1.bf16.msra.mxu0 0
        %1925 = vmatprep.subr.bf16.mxu0 0
        %1926 = vmatpush1.bf16.msra.mxu0 0
        %1927 = vmatprep.subr.bf16.mxu0 0
        %1928 = vmatpush1.bf16.msra.mxu0 0
        %1929 = vmatprep.subr.bf16.mxu0 0
        %1930 = vmatpush1.bf16.msra.mxu0 0
        %1931 = vmatprep.subr.bf16.mxu0 0
        %1932 = vmatpush1.bf16.msra.mxu0 0
        %1933 = vmatprep.mubr.bf16.mxu0 0
        %1934 = vmatmul.mubr.bf16.gmra.mrb[0].mxu0 %v1899
        %v1935 = vpop.f32.mrb[0].mxu0
        %v1936 = vadd.f32 %v1884, %v1935
        %v1937 = vpop.f32.mrb[0].mxu0
        %v1938 = vpop.f32.mrb[0].mxu0
        %v1939 = vpop.f32.mrb[0].mxu0
        %1940 = vdwg.mxu0
        %v1941 = vmul.f32 %v1936, %v1936
        %v1942 = vmul.f32 %v1936, %v1941
        %v1943 = vmul.f32 %v1942, 0.044715
        %v1944 = vadd.f32 %v1936, %v1943
        %v1945 = vmul.f32 %v1944, 0.7978846
        %v1946 = vtanh.pop %v1945
        %v1947 = vadd.f32 %v1946, 1.0
        %v1948 = vmul.f32 %v1947, 0.5
        %v1949 = vmul.f32 %v1936, %v1948
        %v1950 = vpack.c.bf16 %v1949, %v1949
        %s1951 = scalar_lea.vmem %s15, 32
        %v1952 = vld [vmem:[%s1951] sm:$0xf]
        %v1953 = vld [vmem:[%s1951 + $0x4] sm:$0xf]
        %v1954 = vld [vmem:[%s1951 + $0x8] sm:$0xf]
        %v1955 = vld [vmem:[%s1951 + $0xc] sm:$0xf]
        %v1956 = vld [vmem:[%s1951 + $0x10] sm:$0xf]
        %v1957 = vld [vmem:[%s1951 + $0x14] sm:$0xf]
        %v1958 = vld [vmem:[%s1951 + $0x18] sm:$0xf]
        %v1959 = vld [vmem:[%s1951 + $0x1c] sm:$0xf]
        %s1960 = scalar_lea.vmem %s16, 1
        %v1961 = vld [vmem:[%s1960] sm:$0x1]
        %v1963 = vlaneseq
        %v1964 = vshrl.u32 %v1963, 7
        %v1965 = vsub.s32 0, %v1964
        %v1966 = vrot.slane %v1961, %v1965
        %v1976 = vunpack.c.l.b16 %v1952
        %v1977 = vunpack.c.l.b16 %v1953
        %v1978 = vunpack.c.l.b16 %v1954
        %v1979 = vunpack.c.l.b16 %v1955
        %v1980 = vunpack.c.l.b16 %v1956
        %v1981 = vunpack.c.l.b16 %v1957
        %v1982 = vunpack.c.l.b16 %v1958
        %v1983 = vunpack.c.l.b16 %v1959
        %v1984 = vpack.c.b16 %v1977, %v1976
        %v1985 = vpack.c.b16 %v1979, %v1978
        %v1986 = vpack.c.b16 %v1981, %v1980
        %v1987 = vpack.c.b16 %v1983, %v1982
        %v1993 = vsel %vm1401, %v1950, 0
        %1995 = vmatprep.subr.bf16.mxu0 0
        %1996 = vmatpush1.bf16.msra.mxu0 %v1984
        %1997 = vmatprep.subr.bf16.mxu0 0
        %1998 = vmatpush1.bf16.msra.mxu0 %v1985
        %1999 = vmatprep.subr.bf16.mxu0 0
        %2000 = vmatpush1.bf16.msra.mxu0 %v1986
        %2001 = vmatprep.subr.bf16.mxu0 0
        %2002 = vmatpush1.bf16.msra.mxu0 %v1987
        %2003 = vmatprep.subr.bf16.mxu0 0
        %2004 = vmatpush1.bf16.msra.mxu0 0
        %2005 = vmatprep.subr.bf16.mxu0 0
        %2006 = vmatpush1.bf16.msra.mxu0 0
        %2007 = vmatprep.subr.bf16.mxu0 0
        %2008 = vmatpush1.bf16.msra.mxu0 0
        %2009 = vmatprep.subr.bf16.mxu0 0
        %2010 = vmatpush1.bf16.msra.mxu0 0
        %2011 = vmatprep.subr.bf16.mxu0 0
        %2012 = vmatpush1.bf16.msra.mxu0 0
        %2013 = vmatprep.subr.bf16.mxu0 0
        %2014 = vmatpush1.bf16.msra.mxu0 0
        %2015 = vmatprep.subr.bf16.mxu0 0
        %2016 = vmatpush1.bf16.msra.mxu0 0
        %2017 = vmatprep.subr.bf16.mxu0 0
        %2018 = vmatpush1.bf16.msra.mxu0 0
        %2019 = vmatprep.subr.bf16.mxu0 0
        %2020 = vmatpush1.bf16.msra.mxu0 0
        %2021 = vmatprep.subr.bf16.mxu0 0
        %2022 = vmatpush1.bf16.msra.mxu0 0
        %2023 = vmatprep.subr.bf16.mxu0 0
        %2024 = vmatpush1.bf16.msra.mxu0 0
        %2025 = vmatprep.subr.bf16.mxu0 0
        %2026 = vmatpush1.bf16.msra.mxu0 0
        %2027 = vmatprep.mubr.bf16.mxu0 0
        %2028 = vmatmul.mubr.bf16.gmra.mrb[0].mxu0 %v1993
        %v2029 = vpop.f32.mrb[0].mxu0
        %v2030 = vadd.f32 %v1966, %v2029
        %v2031 = vpop.f32.mrb[0].mxu0
        %v2032 = vpop.f32.mrb[0].mxu0
        %v2033 = vpop.f32.mrb[0].mxu0
        %2034 = vdwg.mxu0
        %v2035 = vadd.f32 %v1871, %v2030
        %s2036 = scalar_lea.vmem %s17, 1
        %v2037 = vld [vmem:[%s2036] sm:$0x1]
        %s2038 = scalar_lea.vmem %s18, 1
        %v2039 = vld [vmem:[%s2038] sm:$0x1]
        %v2040 = vsel %vm862, %v2035, 0.0
        %2041 = vadd.xlane.f32.xlu0 %v2040
        %v2042 = vpop.xlane.xlu0 %2041
        %v2043 = vmul.f32 %v2042, %v866
        %v2044 = vsub.f32 %v2035, %v2043
        %v2045 = vmul.f32 %v2044, %v2044
        %v2046 = vsel %vm862, %v2045, 0.0
        %2047 = vadd.xlane.f32.xlu0 %v2046
        %v2048 = vpop.xlane.xlu0 %2047
        %v2049 = vmul.f32 %v2048, %v866
        %v2050 = vadd.f32 %v2049, 1e-12
        %v2051 = vrsqrt.pop %v2050
        %v2052 = vmul.f32 %v2044, %v2051
        %v2054 = vlaneseq
        %v2055 = vshrl.u32 %v2054, 7
        %v2056 = vsub.s32 0, %v2055
        %v2057 = vrot.slane %v2037, %v2056
        %v2059 = vmul.f32 %v2052, %v2057
        %v2061 = vlaneseq
        %v2062 = vshrl.u32 %v2061, 7
        %v2063 = vsub.s32 0, %v2062
        %v2064 = vrot.slane %v2039, %v2063
        %v2066 = vadd.f32 %v2059, %v2064
        %v2067 = vpack.c.bf16 %v2066, %v2066
        %v2068 = vld [vmem:[%s19] sm:$0xf]
        %v2069 = vld [vmem:[%s19 + $0x4] sm:$0xf]
        %v2070 = vld [vmem:[%s19 + $0x8] sm:$0xf]
        %v2071 = vld [vmem:[%s19 + $0xc] sm:$0xf]
        %v2072 = vld [vmem:[%s20] sm:$0x1]
        %v2077 = vunpack.c.l.b16 %v2068
        %v2078 = vunpack.c.l.b16 %v2069
        %v2079 = vunpack.c.l.b16 %v2070
        %v2080 = vunpack.c.l.b16 %v2071
        %v2081 = vpack.c.b16 %v2078, %v2077
        %v2082 = vpack.c.b16 %v2080, %v2079
        %v2086 = vsel %vm862, %v2067, 0
        %2088 = vmatprep.subr.bf16.mxu0 0
        %2089 = vmatpush1.bf16.msra.mxu0 %v2081
        %2090 = vmatprep.subr.bf16.mxu0 0
        %2091 = vmatpush1.bf16.msra.mxu0 %v2082
        %2092 = vmatprep.subr.bf16.mxu0 0
        %2093 = vmatpush1.bf16.msra.mxu0 0
        %2094 = vmatprep.subr.bf16.mxu0 0
        %2095 = vmatpush1.bf16.msra.mxu0 0
        %2096 = vmatprep.subr.bf16.mxu0 0
        %2097 = vmatpush1.bf16.msra.mxu0 0
        %2098 = vmatprep.subr.bf16.mxu0 0
        %2099 = vmatpush1.bf16.msra.mxu0 0
        %2100 = vmatprep.subr.bf16.mxu0 0
        %2101 = vmatpush1.bf16.msra.mxu0 0
        %2102 = vmatprep.subr.bf16.mxu0 0
        %2103 = vmatpush1.bf16.msra.mxu0 0
        %2104 = vmatprep.subr.bf16.mxu0 0
        %2105 = vmatpush1.bf16.msra.mxu0 0
        %2106 = vmatprep.subr.bf16.mxu0 0
        %2107 = vmatpush1.bf16.msra.mxu0 0
        %2108 = vmatprep.subr.bf16.mxu0 0
        %2109 = vmatpush1.bf16.msra.mxu0 0
        %2110 = vmatprep.subr.bf16.mxu0 0
        %2111 = vmatpush1.bf16.msra.mxu0 0
        %2112 = vmatprep.subr.bf16.mxu0 0
        %2113 = vmatpush1.bf16.msra.mxu0 0
        %2114 = vmatprep.subr.bf16.mxu0 0
        %2115 = vmatpush1.bf16.msra.mxu0 0
        %2116 = vmatprep.subr.bf16.mxu0 0
        %2117 = vmatpush1.bf16.msra.mxu0 0
        %2118 = vmatprep.subr.bf16.mxu0 0
        %2119 = vmatpush1.bf16.msra.mxu0 0
        %2120 = vmatprep.mubr.bf16.mxu0 0
        %2121 = vmatmul.mubr.bf16.gmra.mrb[0].mxu0 %v2086
        %v2122 = vpop.f32.mrb[0].mxu0
        %v2123 = vadd.f32 %v2072, %v2122
        %v2124 = vpop.f32.mrb[0].mxu0
        %v2125 = vpop.f32.mrb[0].mxu0
        %v2126 = vpop.f32.mrb[0].mxu0
        %2127 = vdwg.mxu0
        %vm2128 = vcmask 1040384
        %v2129 = vsel %vm2128, %v2123, -inf
        %2130 = vmax.xlane.f32.xlu0 %v2129
        %v2131 = vpop.xlane.xlu0 %2130
        %v2132 = vsub.f32 %v2123, %v2131
        %v2133 = vmul.f32 %v2132, 1.442695
        %v2134 = vpow.pop %v2133
        %v2135 = vsel %vm2128, %v2134, 0.0
        %2136 = vadd.xlane.f32.xlu0 %v2135
        %v2137 = vpop.xlane.xlu0 %2136
        %v2138 = vrcp.pop %v2137
        %v2139 = vmul.f32 %v2134, %v2138
        %2140 = vst [vmem:[%s712] sm:$0x1] %v2139
        %vm2141 = vcmp.eq.f32.partialorder %v2123, %v2131
        %v2142 = vsel %vm2141, %v739, 128
        %v2143 = vsel %vm2128, %v2142, 2147483647
        %v2144 = vand.u32 %v2143, 65535
        %v2145 = vshra.s32 %v2143, 16
        %v2146 = vcvt.s32.f32 %v2144
        %v2147 = vcvt.s32.f32 %v2145
        %2148 = vmin.xlane.f32.xlu0 %v2147
        %v2149 = vpop.xlane.xlu0 %2148
        %vm2150 = vcmp.eq.f32.partialorder %v2147, %v2149
        %v2151 = vsel %vm2150, %v2146, inf
        %2152 = vmin.xlane.f32.xlu0 %v2151
        %v2153 = vpop.xlane.xlu0 %2152
        %v2154 = vcvt.f32.s32 %v2153
        %v2155 = vcvt.f32.s32 %v2149
        %v2156 = vshll.u32 %v2155, 16
        %v2157 = vadd.s32 %v2156, %v2154
        %vm2158 = vcmask 0
        %2159 = vst.msk [vmem:[%s732] sm:$0x1] %vm2158, %v2157
        %v2160 = vlog2.pop %v2137
        %v2161 = vmul.f32 %v2160, 0.6931472
        %v2162 = vsub.f32 %v2132, %v2161
        %v2163 = vld [vmem:[%s729] sm:$0x1]
        %2164 = vset.pattern.permute.xlu0 0
        %2165 = vperm.xlu0 %2164, %v2163
        %v2166 = vpop.permute.xlu0 %2165
        %v2167 = vlaneseq
        %v2168 = vshrl.u32 %v2167, 7
        %v2169 = vsub.s32 0, %v2168
        %v2170 = vrot.slane %v2166, %v2169
        %vm2171 = vcmp.eq.s32.totalorder %v739, %v2170
        %v2172 = vsel %vm2171, 1, 0
        %v2173 = vcvt.s32.f32 %v2172
        %v2174 = vmul.f32 %v2162, %v2173
        %v2175 = vsel %vm2128, %v2174, 0.0
        %2176 = vadd.xlane.f32.xlu0 %v2175
        %v2177 = vpop.xlane.xlu0 %2176
        %v2178 = vsub.f32 0.0, %v2177
        %2179 = vst.msk [vmem:[%s735] sm:$0x1] %vm2158, %v2178
        %s2180 = sand.u32 %s497, 1
        %s2181 = scalar_lea.sflag [#allocation3], %s2180
        %s2182 = sand.u32 %s497, 1
        %s2183 = scalar_lea.vmem [#allocation2], %s2182
        %p2184 = scmp.lt.s32.totalorder %s38, 1
        %s2185 = scalar_select %p2184, %s38, 1
        %s2186 = scalar_lea.vmem %s22, %s2185
        %p2187 = scmp.lt.s32.totalorder %s38, 1
        %s2188 = scalar_select %p2187, %s38, 1
        %s2189 = scalar_lea.vmem %s23, %s2188
        // Predicated region
        $region105: #{koelectra_m_forward.1} parent=103 // pred_check
          %p2190 = pneg %p507
        $region106: #{koelectra_m_forward.1} parent=103 // pred_check_branch
          %2192 = sbr.rel (%p2190) target = $region108
        $region107: #{koelectra_m_forward.1} parent=103 // pred_region
          %s2194 = ssub.s32 16, 16
          %2195 = vsyncadd %s2181, %s2194
          %s2196 = smul.addr %s38, 16
          %s2197 = scalar_lea.hbm %s21, %s2196
          %s2199 = sshll.u32 %s2183, 4
          %s2200 = int_to_ptr.vmem [resolvable:$true] %s2199
          %2202 = dma.vmem_to_hbm [thread:$0]  %s2200, 16, %s2197, %s2181
        $region108: #{koelectra_m_forward.1} parent=103 // pred_fallthru
          _
        // Predicated region
        $region109: #{koelectra_m_forward.1} parent=103 // pred_check
          %p2203 = pneg %p533
        $region110: #{koelectra_m_forward.1} parent=103 // pred_check_branch
          %2205 = sbr.rel (%p2203) target = $region112
        $region111: #{koelectra_m_forward.1} parent=103 // pred_region
          _
        $region112: #{koelectra_m_forward.1} parent=103 // pred_fallthru
          _
        // Predicated region
        $region113: #{koelectra_m_forward.1} parent=103 // pred_check
          %p2206 = pneg %p559
        $region114: #{koelectra_m_forward.1} parent=103 // pred_check_branch
          %2208 = sbr.rel (%p2206) target = $region116
        $region115: #{koelectra_m_forward.1} parent=103 // pred_region
          _
        $region116: #{koelectra_m_forward.1} parent=103 // pred_fallthru
          _
      $region104: #{koelectra_m_forward.1} parent=5 // pred_fallthru
        _
      %p2209 = scmp.le.s32.totalorder 2, %s33
      // Predicated region
      $region117: #{koelectra_m_forward.1} parent=5 // pred_check
        %p2210 = pneg %p2209
      $region118: #{koelectra_m_forward.1} parent=5 // pred_check_branch
        %2212 = sbr.rel (%p2210) target = $region120
      $region119: #{koelectra_m_forward.1} parent=5 // pred_region
        %s2213 = ssub.s32 %s33, 2
        // Predicated region
        $region121: #{koelectra_m_forward.1} parent=119 // pred_check
          %p2214 = pneg %p513
        $region122: #{koelectra_m_forward.1} parent=119 // pred_check_branch
          %2216 = sbr.rel (%p2214) target = $region124
        $region123: #{koelectra_m_forward.1} parent=119 // pred_region
          %s2217 = sand.u32 %s498, 1
          %s2218 = scalar_lea.sflag [#allocation3], %s2217
          %s2219 = sand.u32 %s498, 1
          %s2220 = scalar_lea.vmem [#allocation2], %s2219
          %2221 = dma.done %s2218, 16
        $region124: #{koelectra_m_forward.1} parent=119 // pred_fallthru
          _
        // Predicated region
        $region125: #{koelectra_m_forward.1} parent=119 // pred_check
          %p2222 = pneg %p539
        $region126: #{koelectra_m_forward.1} parent=119 // pred_check_branch
          %2224 = sbr.rel (%p2222) target = $region128
        $region127: #{koelectra_m_forward.1} parent=119 // pred_region
          %p2225 = scmp.lt.s32.totalorder %s39, 1
          %s2226 = scalar_select %p2225, %s39, 1
          %s2227 = scalar_lea.vmem %s22, %s2226
        $region128: #{koelectra_m_forward.1} parent=119 // pred_fallthru
          _
        // Predicated region
        $region129: #{koelectra_m_forward.1} parent=119 // pred_check
          %p2228 = pneg %p565
        $region130: #{koelectra_m_forward.1} parent=119 // pred_check_branch
          %2230 = sbr.rel (%p2228) target = $region132
        $region131: #{koelectra_m_forward.1} parent=119 // pred_region
          %p2231 = scmp.lt.s32.totalorder %s39, 1
          %s2232 = scalar_select %p2231, %s39, 1
          %s2233 = scalar_lea.vmem %s23, %s2232
        $region132: #{koelectra_m_forward.1} parent=119 // pred_fallthru
          _
      $region120: #{koelectra_m_forward.1} parent=5 // pred_fallthru
        _
    $region6: #{koelectra_m_forward.1} parent=1 // loop_footer
      %s37 = sadd.s32 1, %s33
    $region7: #{koelectra_m_forward.1} parent=1 // loop_footer_branch
      %32 = sbr.rel target = $region3
    $region8: #{koelectra_m_forward.1} parent=1 // loop_exit
      _
    %2234 = vsyncpa [#allocation3], 1
    %s2235 = scalar_lea.sflag [#allocation3], 1
    %2236 = vsyncpa %s2235, 1

</llo_original>
